<compile_context>
chip_gen: v6e
topology: v6e:2x2x1
jax: 0.10.0
libtpu: 0.0.40
codegen_flags: <defaults>
</compile_context>

<pallas_src>
import jax
import jax.numpy as jnp
from jax.experimental import pallas as pl
from jax.experimental.pallas import tpu as pltpu

# ------------- scaled-down, structurally faithful hyperparameters -------------
BOARD_H = 8
BOARD_W = 8
OUT_CH = 4                                   # (original: 64)
BOARD_SIZE = OUT_CH * BOARD_H * BOARD_W      # 256  (original: 361)
INPUT_CHANNELS = 4 * BOARD_SIZE              # 1024 (original: 4*361 = 1444)
KSIZE = 3
TAPS = KSIZE * KSIZE                         # 9
TC = TAPS * OUT_CH                           # 36 tap-packed conv output columns
BATCH = 8

HP, WP = BOARD_H + 2, BOARD_W + 2            # spatially padded board (10, 10)
PP = HP * WP                                 # padded positions per sample (100)
PPA = 104                                    # per-sample row stride (8-aligned)
GUARD = 16                                   # guard rows (>= WP + 1, 8-aligned)
PCA = OUT_CH * PPA                           # 416: flatten+linear contraction len

HALVES = 2                                   # batch split (one half per TC on v7x)
HALF_B = BATCH // HALVES                     # 4 samples per half
NRH = HALF_B * PPA                           # 416 activation rows per half
HRG = NRH + 2 * GUARD                        # 448 guarded rows per half

TK = 256                                     # K tile of the conv contraction
KT = INPUT_CHANNELS // TK                    # 4 pipelined K steps

assert GUARD >= WP + 1 and GUARD % 8 == 0 and PPA % 8 == 0 and PPA >= PP
assert INPUT_CHANNELS % TK == 0 and BATCH % HALVES == 0 and HRG % 8 == 0


# ---------------------------------- kernel ----------------------------------
def _go_policy_kernel(x2g_ref, wcat_ref, bc_ref, wstack_ref, bl_ref,
                      o_ref, yall_ref, bmat_ref):
    """Fused conv3x3(pad=1) + bias + ReLU + flatten + linear for one batch half."""
    k = pl.program_id(1)

    # ---- stage 1: tap-packed conv matmul, accumulated over the K grid axis ----
    @pl.when(k == 0)
    def _():
        yall_ref[...] = jnp.zeros_like(yall_ref)

    yall_ref[...] += jnp.dot(x2g_ref[...], wcat_ref[...],
                             preferred_element_type=jnp.float32)

    # ---- stage 2 (last K step): tap combine + ReLU + fused flatten/linear ----
    @pl.when(k == pl.num_programs(1) - 1)
    def _():
        # 3x3 shift-and-add hoisted over all samples of this half: 9 slices of
        # the whole (NRH, OUT_CH) region instead of 9 per-sample slices.
        # Cross-sample / border leakage only lands on zero rows of wstack.
        acc = jnp.zeros((NRH, OUT_CH), jnp.float32)
        for kh in range(KSIZE):
            for kw in range(KSIZE):
                t = kh * KSIZE + kw
                off = GUARD + (kh - 1) * WP + (kw - 1)          # static offset
                acc = acc + yall_ref[off:off + NRH,
                                     t * OUT_CH:(t + 1) * OUT_CH]
        crelu = jnp.maximum(acc + bc_ref[...], 0.0)             # (NRH, OUT_CH) f32

        # Repack (sample,pos) x chan -> (chan*pos) x sample so the Flatten+Linear
        # becomes one MXU matmul.  32 small aligned slice copies (~13 KB total).
        for n in range(HALF_B):
            for c in range(OUT_CH):
                bmat_ref[c * PPA:(c + 1) * PPA, n:n + 1] = \
                    crelu[n * PPA:(n + 1) * PPA, c:c + 1]

        # Fused Flatten + Linear: one (HALF_B, PCA) @ (PCA, F) f32 MXU matmul.
        out = jnp.dot(bmat_ref[...].T, wstack_ref[...],
                      preferred_element_type=jnp.float32) + bl_ref[...]
        o_ref[0] = out                                          # single lane-dense store


# ---------------------------------- wrapper ----------------------------------
def go_policy_forward(x, params):
    """x: (BATCH, INPUT_CHANNELS, H, W) float32 -> (BATCH, BOARD_SIZE) float32."""
    N, C, H, W = x.shape
    assert (N, C, H, W) == (BATCH, INPUT_CHANNELS, BOARD_H, BOARD_W)
    F = BOARD_SIZE

    wc, bc = params["conv_w"], params["conv_b"]      # (OUT_CH, C, 3, 3), (OUT_CH,)
    wl, bl = params["lin_w"], params["lin_b"]        # (F, F), (F,)

    # Guarded, NHWC-flattened, spatially padded input with an 8-aligned
    # per-sample row stride, split into two independently guarded halves.
    # TODO(synk): accepting NHWC inputs upstream would remove this wrapper-side
    # transpose/pad round-trip through HBM (comparable to the kernel's traffic).
    xp = jnp.pad(x, ((0, 0), (0, 0), (1, 1), (1, 1)))            # (N, C, HP, WP)
    xh = xp.transpose(0, 2, 3, 1).reshape(N, PP, C)              # (N, 100, C)
    xh = jnp.pad(xh, ((0, 0), (0, PPA - PP), (0, 0)))            # (N, 104, C)
    xh = xh.reshape(HALVES, NRH, C)                              # (2, 416, C)
    x2g = jnp.pad(xh, ((0, 0), (GUARD, GUARD), (0, 0)))          # (2, 448, C)
    x2g = x2g.reshape(HALVES * HRG, C).astype(jnp.bfloat16)      # (896, C)

    # Conv weight, tap-packed: (C, TAPS*OUT_CH), column index = t*OUT_CH + co.
    wcat = (wc.transpose(2, 3, 1, 0)                 # (kh, kw, C, OUT_CH)
              .reshape(TAPS, C, OUT_CH)
              .transpose(1, 0, 2)
              .reshape(C, TC)
              .astype(jnp.bfloat16))

    # Linear weight as a lane-dense 2-D slab (PCA, F), row index = c*PPA + p,
    # with the NCHW flatten permutation, the conv spatial zero padding and the
    # per-sample stride padding folded in at trace time.  Kept f32 so stage-2
    # matches the f32 Linear of the reference exactly (size is negligible).
    wl4 = wl.reshape(F, OUT_CH, H, W)
    wl4 = jnp.pad(wl4, ((0, 0), (0, 0), (1, 1), (1, 1)))         # (F, OUT_CH, HP, WP)
    wl4 = wl4.transpose(1, 2, 3, 0).reshape(OUT_CH, PP, F)       # (OUT_CH, 100, F)
    wl4 = jnp.pad(wl4, ((0, 0), (0, PPA - PP), (0, 0)))          # (OUT_CH, 104, F)
    wstack = wl4.reshape(PCA, F)                                  # (416, 256) f32

    out = pl.pallas_call(
        _go_policy_kernel,
        out_shape=jax.ShapeDtypeStruct((HALVES, HALF_B, F), jnp.float32),
        grid=(HALVES, KT),
        in_specs=[
            pl.BlockSpec((HRG, TK), lambda h, k: (h, k)),        # x2g (K-tiled)
            pl.BlockSpec((TK, TC), lambda h, k: (k, 0)),         # wcat (K-tiled)
            pl.BlockSpec((1, OUT_CH), lambda h, k: (0, 0)),      # conv bias
            pl.BlockSpec((PCA, F), lambda h, k: (0, 0)),         # folded linear weight
            pl.BlockSpec((1, F), lambda h, k: (0, 0)),           # linear bias
        ],
        out_specs=pl.BlockSpec((1, HALF_B, F), lambda h, k: (h, 0, 0)),
        scratch_shapes=[
            pltpu.VMEM((HRG, TC), jnp.float32),                  # conv accumulator
            pltpu.VMEM((PCA, HALF_B), jnp.float32),              # repacked activations
        ],
        compiler_params=pltpu.CompilerParams(
            dimension_semantics=("parallel", "arbitrary")),
    )(x2g, wcat, bc.reshape(1, OUT_CH), wstack, bl.reshape(1, F))

    return out.reshape(BATCH, F)


# --------------------------------- reference ---------------------------------
def reference_forward(x, params):
    """Pure-JAX reference matching PyTorch semantics (conv operands rounded to
    bf16 exactly like the kernel's MXU operands; accumulation/linear in f32)."""
    xw = x.astype(jnp.bfloat16).astype(jnp.float32)
    cw = params["conv_w"].astype(jnp.bfloat16).astype(jnp.float32)
    y = jax.lax.conv_general_dilated(
        xw, cw, window_strides=(1, 1), padding=((1, 1), (1, 1)),
        dimension_numbers=("NCHW", "OIHW", "NCHW"),
        precision=jax.lax.Precision.HIGHEST)
    y = jnp.maximum(y + params["conv_b"][None, :, None, None], 0.0)
    flat = y.reshape(y.shape[0], -1)
    return (jnp.dot(flat, params["lin_w"].T,
                    precision=jax.lax.Precision.HIGHEST)
            + params["lin_b"][None, :])


def init_params(key):
    k1, k2, k3, k4 = jax.random.split(key, 4)
    fan_conv = INPUT_CHANNELS * KSIZE * KSIZE
    fan_lin = BOARD_SIZE
    return {
        "conv_w": jax.random.normal(
            k1, (OUT_CH, INPUT_CHANNELS, KSIZE, KSIZE), jnp.float32
        ) * (1.0 / jnp.sqrt(fan_conv)),
        "conv_b": jax.random.normal(k2, (OUT_CH,), jnp.float32) * 0.01,
        "lin_w": jax.random.normal(
            k3, (BOARD_SIZE, BOARD_SIZE), jnp.float32
        ) * (1.0 / jnp.sqrt(fan_lin)),
        "lin_b": jax.random.normal(k4, (BOARD_SIZE,), jnp.float32) * 0.01,
    }


if __name__ == "__main__":
    key = jax.random.PRNGKey(0)
    k_x, k_p = jax.random.split(key)
    x = jax.random.normal(
        k_x, (BATCH, INPUT_CHANNELS, BOARD_H, BOARD_W), jnp.float32)
    params = init_params(k_p)

    out = jax.block_until_ready(jax.jit(go_policy_forward)(x, params))
    ref = jax.block_until_ready(reference_forward(x, params))

    assert out.shape == (BATCH, BOARD_SIZE), out.shape
    max_err = float(jnp.max(jnp.abs(out - ref)))
    assert jnp.allclose(out, ref, atol=2e-3, rtol=2e-3), max_err
    print("KERNEL_OK")
</pallas_src>

<mosaic_0001>
module attributes {stable_mosaic.version = 11 : i64} {
  func.func @_go_policy_kernel(%arg0: i32, %arg1: i32, %arg2: memref<448x256xbf16, #tpu.memory_space<vmem>>, %arg3: memref<256x36xbf16, #tpu.memory_space<vmem>>, %arg4: memref<1x4xf32, #tpu.memory_space<vmem>>, %arg5: memref<416x256xf32, #tpu.memory_space<vmem>>, %arg6: memref<1x256xf32, #tpu.memory_space<vmem>>, %arg7: memref<1x4x256xf32, #tpu.memory_space<vmem>>, %arg8: memref<448x36xf32, #tpu.memory_space<vmem>>, %arg9: memref<416x4xf32, #tpu.memory_space<vmem>>) attributes {dimension_semantics = [#tpu.dimension_semantics<parallel>, #tpu.dimension_semantics<arbitrary>], iteration_bounds = array<i64: 2, 4>, scalar_prefetch = 0 : i64, scratch_operands = 2 : i64, tpu.core_type = #tpu.core_type<tc>, window_params = [{transform_indices = @transform_0, window_bounds = array<i64: 448, 256>}, {transform_indices = @transform_1, window_bounds = array<i64: 256, 36>}, {pipeline_mode = #tpu.pipeline_mode<synchronous>, transform_indices = @transform_2, window_bounds = array<i64: 1, 4>}, {pipeline_mode = #tpu.pipeline_mode<synchronous>, transform_indices = @transform_3, window_bounds = array<i64: 416, 256>}, {pipeline_mode = #tpu.pipeline_mode<synchronous>, transform_indices = @transform_4, window_bounds = array<i64: 1, 256>}, {transform_indices = @transform_5, window_bounds = array<i64: 1, 4, 256>}]} {
    %c0_i32 = arith.constant 0 : i32
    %0 = arith.cmpi eq, %arg1, %c0_i32 : i32
    %1 = arith.extui %0 : i1 to i32
    %c0_i32_0 = arith.constant 0 : i32
    %2 = arith.cmpi ne, %1, %c0_i32_0 : i32
    scf.if %2 {
      %cst_9 = arith.constant 0.000000e+00 : f32
      %12 = vector.broadcast %cst_9 : f32 to vector<448x36xf32>
      %c0_10 = arith.constant 0 : index
      %c0_11 = arith.constant 0 : index
      %13 = vector.load %arg8[%c0_10, %c0_11] : memref<448x36xf32, #tpu.memory_space<vmem>>, vector<448x36xf32>
      tpu.vector_store %arg8[%c0_10, %c0_11], %12 {strides = array<i32>} : memref<448x36xf32, #tpu.memory_space<vmem>>, vector<448x36xf32>,
    } else {
    }
    %c0 = arith.constant 0 : index
    %c0_1 = arith.constant 0 : index
    %3 = vector.load %arg8[%c0, %c0_1] : memref<448x36xf32, #tpu.memory_space<vmem>>, vector<448x36xf32>
    %c0_2 = arith.constant 0 : index
    %c0_3 = arith.constant 0 : index
    %4 = vector.load %arg2[%c0_2, %c0_3] : memref<448x256xbf16, #tpu.memory_space<vmem>>, vector<448x256xbf16>
    %c0_4 = arith.constant 0 : index
    %c0_5 = arith.constant 0 : index
    %5 = vector.load %arg3[%c0_4, %c0_5] : memref<256x36xbf16, #tpu.memory_space<vmem>>, vector<256x36xbf16>
    %cst = arith.constant dense<0.000000e+00> : vector<448x36xf32>
    %6 = tpu.matmul %4, %5, %cst {dimension_numbers = #tpu.dot_dimension_numbers<[1], [0], [0], [1], [0, 0, 1, 1], [], []>} : vector<448x256xbf16>, vector<256x36xbf16>, vector<448x36xf32> -> vector<448x36xf32>
    %7 = arith.addf %3, %6 : vector<448x36xf32>
    %c0_6 = arith.constant 0 : index
    %c0_7 = arith.constant 0 : index
    %8 = vector.load %arg8[%c0_6, %c0_7] : memref<448x36xf32, #tpu.memory_space<vmem>>, vector<448x36xf32>
    tpu.vector_store %arg8[%c0_6, %c0_7], %7 {strides = array<i32>} : memref<448x36xf32, #tpu.memory_space<vmem>>, vector<448x36xf32>,
    %c3_i32 = arith.constant 3 : i32
    %9 = arith.cmpi eq, %arg1, %c3_i32 : i32
    %10 = arith.extui %9 : i1 to i32
    %c0_i32_8 = arith.constant 0 : i32
    %11 = arith.cmpi ne, %10, %c0_i32_8 : i32
    scf.if %11 {
      %cst_9 = arith.constant 0.000000e+00 : f32
      %12 = vector.broadcast %cst_9 : f32 to vector<416x4xf32>
      %c5 = arith.constant 5 : index
      %c0_10 = arith.constant 0 : index
      %13 = vector.load %arg8[%c5, %c0_10] : memref<448x36xf32, #tpu.memory_space<vmem>>, vector<416x4xf32>
      %14 = arith.addf %12, %13 : vector<416x4xf32>
      %c6 = arith.constant 6 : index
      %c4 = arith.constant 4 : index
      %15 = vector.load %arg8[%c6, %c4] : memref<448x36xf32, #tpu.memory_space<vmem>>, vector<416x4xf32>
      %16 = arith.addf %14, %15 : vector<416x4xf32>
      %c7 = arith.constant 7 : index
      %c8 = arith.constant 8 : index
      %17 = vector.load %arg8[%c7, %c8] : memref<448x36xf32, #tpu.memory_space<vmem>>, vector<416x4xf32>
      %18 = arith.addf %16, %17 : vector<416x4xf32>
      %c15 = arith.constant 15 : index
      %c12 = arith.constant 12 : index
      %19 = vector.load %arg8[%c15, %c12] : memref<448x36xf32, #tpu.memory_space<vmem>>, vector<416x4xf32>
      %20 = arith.addf %18, %19 : vector<416x4xf32>
      %c16 = arith.constant 16 : index
      %c16_11 = arith.constant 16 : index
      %21 = vector.load %arg8[%c16, %c16_11] : memref<448x36xf32, #tpu.memory_space<vmem>>, vector<416x4xf32>
      %22 = arith.addf %20, %21 : vector<416x4xf32>
      %c17 = arith.constant 17 : index
      %c20 = arith.constant 20 : index
      %23 = vector.load %arg8[%c17, %c20] : memref<448x36xf32, #tpu.memory_space<vmem>>, vector<416x4xf32>
      %24 = arith.addf %22, %23 : vector<416x4xf32>
      %c25 = arith.constant 25 : index
      %c24 = arith.constant 24 : index
      %25 = vector.load %arg8[%c25, %c24] : memref<448x36xf32, #tpu.memory_space<vmem>>, vector<416x4xf32>
      %26 = arith.addf %24, %25 : vector<416x4xf32>
      %c26 = arith.constant 26 : index
      %c28 = arith.constant 28 : index
      %27 = vector.load %arg8[%c26, %c28] : memref<448x36xf32, #tpu.memory_space<vmem>>, vector<416x4xf32>
      %28 = arith.addf %26, %27 : vector<416x4xf32>
      %c27 = arith.constant 27 : index
      %c32 = arith.constant 32 : index
      %29 = vector.load %arg8[%c27, %c32] : memref<448x36xf32, #tpu.memory_space<vmem>>, vector<416x4xf32>
      %30 = arith.addf %28, %29 : vector<416x4xf32>
      %c0_12 = arith.constant 0 : index
      %c0_13 = arith.constant 0 : index
      %31 = vector.load %arg4[%c0_12, %c0_13] : memref<1x4xf32, #tpu.memory_space<vmem>>, vector<1x4xf32>
      %32 = vector.broadcast %31 : vector<1x4xf32> to vector<416x4xf32>
      %33 = arith.addf %30, %32 : vector<416x4xf32>
      %cst_14 = arith.constant 0.000000e+00 : f32
      %34 = vector.broadcast %cst_14 : f32 to vector<416x4xf32>
      %35 = arith.maximumf %33, %34 : vector<416x4xf32>
      %36 = vector.extract_strided_slice %35 {offsets = [0, 0], sizes = [104, 1], strides = [1, 1]} : vector<416x4xf32> to vector<104x1xf32>
      %c0_15 = arith.constant 0 : index
      %c0_16 = arith.constant 0 : index
      %37 = vector.load %arg9[%c0_15, %c0_16] : memref<416x4xf32, #tpu.memory_space<vmem>>, vector<104x1xf32>
      tpu.vector_store %arg9[%c0_15, %c0_16], %36 {strides = array<i32>} : memref<416x4xf32, #tpu.memory_space<vmem>>, vector<104x1xf32>,
      %38 = vector.extract_strided_slice %35 {offsets = [0, 1], sizes = [104, 1], strides = [1, 1]} : vector<416x4xf32> to vector<104x1xf32>
      %c104 = arith.constant 104 : index
      %c0_17 = arith.constant 0 : index
      %39 = vector.load %arg9[%c104, %c0_17] : memref<416x4xf32, #tpu.memory_space<vmem>>, vector<104x1xf32>
      tpu.vector_store %arg9[%c104, %c0_17], %38 {strides = array<i32>} : memref<416x4xf32, #tpu.memory_space<vmem>>, vector<104x1xf32>,
      %40 = vector.extract_strided_slice %35 {offsets = [0, 2], sizes = [104, 1], strides = [1, 1]} : vector<416x4xf32> to vector<104x1xf32>
      %c208 = arith.constant 208 : index
      %c0_18 = arith.constant 0 : index
      %41 = vector.load %arg9[%c208, %c0_18] : memref<416x4xf32, #tpu.memory_space<vmem>>, vector<104x1xf32>
      tpu.vector_store %arg9[%c208, %c0_18], %40 {strides = array<i32>} : memref<416x4xf32, #tpu.memory_space<vmem>>, vector<104x1xf32>,
      %42 = vector.extract_strided_slice %35 {offsets = [0, 3], sizes = [104, 1], strides = [1, 1]} : vector<416x4xf32> to vector<104x1xf32>
      %c312 = arith.constant 312 : index
      %c0_19 = arith.constant 0 : index
      %43 = vector.load %arg9[%c312, %c0_19] : memref<416x4xf32, #tpu.memory_space<vmem>>, vector<104x1xf32>
      tpu.vector_store %arg9[%c312, %c0_19], %42 {strides = array<i32>} : memref<416x4xf32, #tpu.memory_space<vmem>>, vector<104x1xf32>,
      %44 = vector.extract_strided_slice %35 {offsets = [104, 0], sizes = [104, 1], strides = [1, 1]} : vector<416x4xf32> to vector<104x1xf32>
      %c0_20 = arith.constant 0 : index
      %c1 = arith.constant 1 : index
      %45 = vector.load %arg9[%c0_20, %c1] : memref<416x4xf32, #tpu.memory_space<vmem>>, vector<104x1xf32>
      tpu.vector_store %arg9[%c0_20, %c1], %44 {strides = array<i32>} : memref<416x4xf32, #tpu.memory_space<vmem>>, vector<104x1xf32>,
      %46 = vector.extract_strided_slice %35 {offsets = [104, 1], sizes = [104, 1], strides = [1, 1]} : vector<416x4xf32> to vector<104x1xf32>
      %c104_21 = arith.constant 104 : index
      %c1_22 = arith.constant 1 : index
      %47 = vector.load %arg9[%c104_21, %c1_22] : memref<416x4xf32, #tpu.memory_space<vmem>>, vector<104x1xf32>
      tpu.vector_store %arg9[%c104_21, %c1_22], %46 {strides = array<i32>} : memref<416x4xf32, #tpu.memory_space<vmem>>, vector<104x1xf32>,
      %48 = vector.extract_strided_slice %35 {offsets = [104, 2], sizes = [104, 1], strides = [1, 1]} : vector<416x4xf32> to vector<104x1xf32>
      %c208_23 = arith.constant 208 : index
      %c1_24 = arith.constant 1 : index
      %49 = vector.load %arg9[%c208_23, %c1_24] : memref<416x4xf32, #tpu.memory_space<vmem>>, vector<104x1xf32>
      tpu.vector_store %arg9[%c208_23, %c1_24], %48 {strides = array<i32>} : memref<416x4xf32, #tpu.memory_space<vmem>>, vector<104x1xf32>,
      %50 = vector.extract_strided_slice %35 {offsets = [104, 3], sizes = [104, 1], strides = [1, 1]} : vector<416x4xf32> to vector<104x1xf32>
      %c312_25 = arith.constant 312 : index
      %c1_26 = arith.constant 1 : index
      %51 = vector.load %arg9[%c312_25, %c1_26] : memref<416x4xf32, #tpu.memory_space<vmem>>, vector<104x1xf32>
      tpu.vector_store %arg9[%c312_25, %c1_26], %50 {strides = array<i32>} : memref<416x4xf32, #tpu.memory_space<vmem>>, vector<104x1xf32>,
      %52 = vector.extract_strided_slice %35 {offsets = [208, 0], sizes = [104, 1], strides = [1, 1]} : vector<416x4xf32> to vector<104x1xf32>
      %c0_27 = arith.constant 0 : index
      %c2 = arith.constant 2 : index
      %53 = vector.load %arg9[%c0_27, %c2] : memref<416x4xf32, #tpu.memory_space<vmem>>, vector<104x1xf32>
      tpu.vector_store %arg9[%c0_27, %c2], %52 {strides = array<i32>} : memref<416x4xf32, #tpu.memory_space<vmem>>, vector<104x1xf32>,
      %54 = vector.extract_strided_slice %35 {offsets = [208, 1], sizes = [104, 1], strides = [1, 1]} : vector<416x4xf32> to vector<104x1xf32>
      %c104_28 = arith.constant 104 : index
      %c2_29 = arith.constant 2 : index
      %55 = vector.load %arg9[%c104_28, %c2_29] : memref<416x4xf32, #tpu.memory_space<vmem>>, vector<104x1xf32>
      tpu.vector_store %arg9[%c104_28, %c2_29], %54 {strides = array<i32>} : memref<416x4xf32, #tpu.memory_space<vmem>>, vector<104x1xf32>,
      %56 = vector.extract_strided_slice %35 {offsets = [208, 2], sizes = [104, 1], strides = [1, 1]} : vector<416x4xf32> to vector<104x1xf32>
      %c208_30 = arith.constant 208 : index
      %c2_31 = arith.constant 2 : index
      %57 = vector.load %arg9[%c208_30, %c2_31] : memref<416x4xf32, #tpu.memory_space<vmem>>, vector<104x1xf32>
      tpu.vector_store %arg9[%c208_30, %c2_31], %56 {strides = array<i32>} : memref<416x4xf32, #tpu.memory_space<vmem>>, vector<104x1xf32>,
      %58 = vector.extract_strided_slice %35 {offsets = [208, 3], sizes = [104, 1], strides = [1, 1]} : vector<416x4xf32> to vector<104x1xf32>
      %c312_32 = arith.constant 312 : index
      %c2_33 = arith.constant 2 : index
      %59 = vector.load %arg9[%c312_32, %c2_33] : memref<416x4xf32, #tpu.memory_space<vmem>>, vector<104x1xf32>
      tpu.vector_store %arg9[%c312_32, %c2_33], %58 {strides = array<i32>} : memref<416x4xf32, #tpu.memory_space<vmem>>, vector<104x1xf32>,
      %60 = vector.extract_strided_slice %35 {offsets = [312, 0], sizes = [104, 1], strides = [1, 1]} : vector<416x4xf32> to vector<104x1xf32>
      %c0_34 = arith.constant 0 : index
      %c3 = arith.constant 3 : index
      %61 = vector.load %arg9[%c0_34, %c3] : memref<416x4xf32, #tpu.memory_space<vmem>>, vector<104x1xf32>
      tpu.vector_store %arg9[%c0_34, %c3], %60 {strides = array<i32>} : memref<416x4xf32, #tpu.memory_space<vmem>>, vector<104x1xf32>,
      %62 = vector.extract_strided_slice %35 {offsets = [312, 1], sizes = [104, 1], strides = [1, 1]} : vector<416x4xf32> to vector<104x1xf32>
      %c104_35 = arith.constant 104 : index
      %c3_36 = arith.constant 3 : index
      %63 = vector.load %arg9[%c104_35, %c3_36] : memref<416x4xf32, #tpu.memory_space<vmem>>, vector<104x1xf32>
      tpu.vector_store %arg9[%c104_35, %c3_36], %62 {strides = array<i32>} : memref<416x4xf32, #tpu.memory_space<vmem>>, vector<104x1xf32>,
      %64 = vector.extract_strided_slice %35 {offsets = [312, 2], sizes = [104, 1], strides = [1, 1]} : vector<416x4xf32> to vector<104x1xf32>
      %c208_37 = arith.constant 208 : index
      %c3_38 = arith.constant 3 : index
      %65 = vector.load %arg9[%c208_37, %c3_38] : memref<416x4xf32, #tpu.memory_space<vmem>>, vector<104x1xf32>
      tpu.vector_store %arg9[%c208_37, %c3_38], %64 {strides = array<i32>} : memref<416x4xf32, #tpu.memory_space<vmem>>, vector<104x1xf32>,
      %66 = vector.extract_strided_slice %35 {offsets = [312, 3], sizes = [104, 1], strides = [1, 1]} : vector<416x4xf32> to vector<104x1xf32>
      %c312_39 = arith.constant 312 : index
      %c3_40 = arith.constant 3 : index
      %67 = vector.load %arg9[%c312_39, %c3_40] : memref<416x4xf32, #tpu.memory_space<vmem>>, vector<104x1xf32>
      tpu.vector_store %arg9[%c312_39, %c3_40], %66 {strides = array<i32>} : memref<416x4xf32, #tpu.memory_space<vmem>>, vector<104x1xf32>,
      %c0_41 = arith.constant 0 : index
      %c0_42 = arith.constant 0 : index
      %68 = vector.load %arg9[%c0_41, %c0_42] : memref<416x4xf32, #tpu.memory_space<vmem>>, vector<416x4xf32>
      %69 = tpu.transpose %68, [1, 0] : vector<416x4xf32> -> vector<4x416xf32>
      %c0_43 = arith.constant 0 : index
      %c0_44 = arith.constant 0 : index
      %70 = vector.load %arg5[%c0_43, %c0_44] : memref<416x256xf32, #tpu.memory_space<vmem>>, vector<416x256xf32>
      %cst_45 = arith.constant dense<0.000000e+00> : vector<4x256xf32>
      %71 = tpu.matmul %69, %70, %cst_45 {dimension_numbers = #tpu.dot_dimension_numbers<[1], [0], [0], [1], [0, 0, 1, 1], [], []>} : vector<4x416xf32>, vector<416x256xf32>, vector<4x256xf32> -> vector<4x256xf32>
      %c0_46 = arith.constant 0 : index
      %c0_47 = arith.constant 0 : index
      %72 = vector.load %arg6[%c0_46, %c0_47] : memref<1x256xf32, #tpu.memory_space<vmem>>, vector<1x256xf32>
      %73 = vector.broadcast %72 : vector<1x256xf32> to vector<4x256xf32>
      %74 = arith.addf %71, %73 : vector<4x256xf32>
      %c0_48 = arith.constant 0 : index
      %c0_49 = arith.constant 0 : index
      %c0_50 = arith.constant 0 : index
      %75 = vector.load %arg7[%c0_48, %c0_49, %c0_50] : memref<1x4x256xf32, #tpu.memory_space<vmem>>, vector<1x4x256xf32>
      %76 = vector.shape_cast %75 : vector<1x4x256xf32> to vector<4x256xf32>
      %77 = vector.shape_cast %74 : vector<4x256xf32> to vector<1x4x256xf32>
      tpu.vector_store %arg7[%c0_48, %c0_49, %c0_50], %77 {strides = array<i32>} : memref<1x4x256xf32, #tpu.memory_space<vmem>>, vector<1x4x256xf32>,
    } else {
    }
    return
  }
  func.func @transform_0(%arg0: i32, %arg1: i32) -> (i32, i32) {
    %c0_i32 = arith.constant 0 : i32
    return %arg0, %arg1 : i32, i32
  }
  func.func @transform_1(%arg0: i32, %arg1: i32) -> (i32, i32) {
    %c0_i32 = arith.constant 0 : i32
    %c0_i32_0 = arith.constant 0 : i32
    return %arg1, %c0_i32 : i32, i32
  }
  func.func @transform_2(%arg0: i32, %arg1: i32) -> (i32, i32) {
    %c0_i32 = arith.constant 0 : i32
    %c0_i32_0 = arith.constant 0 : i32
    %c0_i32_1 = arith.constant 0 : i32
    return %c0_i32, %c0_i32_0 : i32, i32
  }
  func.func @transform_3(%arg0: i32, %arg1: i32) -> (i32, i32) {
    %c0_i32 = arith.constant 0 : i32
    %c0_i32_0 = arith.constant 0 : i32
    %c0_i32_1 = arith.constant 0 : i32
    return %c0_i32, %c0_i32_0 : i32, i32
  }
  func.func @transform_4(%arg0: i32, %arg1: i32) -> (i32, i32) {
    %c0_i32 = arith.constant 0 : i32
    %c0_i32_0 = arith.constant 0 : i32
    %c0_i32_1 = arith.constant 0 : i32
    return %c0_i32, %c0_i32_0 : i32, i32
  }
  func.func @transform_5(%arg0: i32, %arg1: i32) -> (i32, i32, i32) {
    %c0_i32 = arith.constant 0 : i32
    %c0_i32_0 = arith.constant 0 : i32
    %c0_i32_1 = arith.constant 0 : i32
    return %arg0, %c0_i32, %c0_i32_0 : i32, i32, i32
  }
}

</mosaic_0001>

<llo_original>
// kernel: go_policy_forward.1
$region0: #{go_policy_forward.1}
  #allocation0 [shape = 'u32[]', space=smem, size = 0x4, offset = 0x4, fixed_abs, tag = 'smem constant byte address 0x4 - core index']
  #allocation1 [shape = 'u32[144,128]{1,0:T(1,128)}', space=vmem, size = 0x12000, scoped, tag = 'internal scratch']
  #allocation2 [shape = 'f32[448,36]{1,0:T(8,128)}', space=vmem, size = 0x38000, scoped, tag = 'scratch operand']
  #allocation3 [shape = 'f32[416,4]{1,0:T(8,128)}', space=vmem, size = 0x34000, scoped, tag = 'scratch operand']
  %s0 = inlined_call_operand.vmem [shape: bf16[896,1024], index: 0, kind: input, shape index: {}]
  %s1 = inlined_call_operand.vmem [shape: bf16[1024,36], index: 1, kind: input, shape index: {}]
  %s2 = inlined_call_operand.vmem [shape: f32[1,4], index: 2, kind: input, shape index: {}]
  %s3 = inlined_call_operand.vmem [shape: f32[416,256], index: 3, kind: input, shape index: {}]
  %s4 = inlined_call_operand.vmem [shape: f32[1,256], index: 4, kind: input, shape index: {}]
  %s5 = inlined_call_operand.vmem [shape: f32[2,4,256], index: 5, kind: output, shape index: {}]
  %s6 = sld [smem:[#allocation0]]
  $region99: #{go_policy_forward.1} parent=0
    _
  %s8 = ssub.s32 1, %s6
  %s9 = scalar_select 0, %s8, %s6
  $region1: #{go_policy_forward.1} parent=0
    #allocation4 [shape = 'u8[458752]{0}', space=vmem, size = 0x70000, scoped, tag = 'input window, operand 0']
    loop: start=0, step=1, limit=10
    $region2: #{go_policy_forward.1} parent=1 // loop_pre_header
      _
    $region3: #{go_policy_forward.1} parent=1 // loop_header
      %s11 = sphi 0, %s15
      %p12 = scmp.ge.s32.totalorder %s11, 10
      %s18 = sphi 0, %s30
      %s19 = sphi 0, %s26
      %s20 = sphi 0, %s18
      %s21 = sphi 0, %s19
      %s22 = sphi 0, %s20
      %s23 = sphi 0, %s21
      %s35 = sphi 0, %s37
      %s38 = sphi 0, %s35
      %s39 = sphi 0, %s38
      %s55 = sphi 0, %s39
      %s61 = sphi 0, %s63
      %s64 = sphi 0, %s61
      %s65 = sphi 0, %s64
      %s81 = sphi 0, %s65
      %s85 = sphi 0, %s85
      %s87 = sphi 0, %s85
      %s88 = sphi 0, %s87
      %s102 = sphi 0, %s88
      %s106 = sphi 0, %s106
      %s108 = sphi 0, %s106
      %s109 = sphi 0, %s108
      %s123 = sphi 0, %s109
      %s127 = sphi 0, %s127
      %s129 = sphi 0, %s127
      %s130 = sphi 0, %s129
      %s144 = sphi 0, %s130
      %s150 = sphi 0, %s152
      %s153 = sphi 0, %s150
      %s154 = sphi 0, %s153
      %s170 = sphi 0, %s154
    $region4: #{go_policy_forward.1} parent=1 // loop_header_branch
      %14 = sbr.rel (%p12) target = $region8
    $region5: #{go_policy_forward.1} parent=1 // loop_body
      %s16 = ssub.s32 %s11, 1
      %s17 = ssub.s32 %s11, 2
      %s24 = sadd.s32 1, %s19
      %p25 = scmp.ge.s32.totalorder %s24, 4
      %s26 = scalar_select %p25, 0, %s24
      %s27 = sadd.s32 1, %s18
      %s28 = scalar_select %p25, %s27, %s18
      %p29 = scmp.ge.s32.totalorder %s28, 2
      %s30 = scalar_select %p29, 0, %s28
      %s31 = ssub.s32 %s18, %s30
      %s32 = ssub.s32 %s19, %s26
      %s33 = sor.u32 %s31, %s32
      %p34 = scmp.eq.s32.totalorder %s33, 0
      %s36 = sadd.s32 %s35, 1
      %s37 = scalar_select %p34, %s35, %s36
      %p40 = pneg %p34
      %p41 = scmp.eq.s32.totalorder %s11, 7
      %p42 = por %p40, %p41
      %p43 = scmp.ne.s32.totalorder %s35, %s38
      %p44 = scmp.eq.s32.totalorder %s11, 0
      %p45 = por %p43, %p44
      %p46 = scmp.ne.s32.totalorder %s35, %s38
      %p47 = scmp.eq.s32.totalorder %s16, 7
      %p48 = por %p46, %p47
      %p49 = scmp.ne.s32.totalorder %s38, %s39
      %p50 = scmp.eq.s32.totalorder %s16, 0
      %p51 = por %p49, %p50
      %p52 = scmp.ne.s32.totalorder %s38, %s39
      %p53 = scmp.eq.s32.totalorder %s17, 7
      %p54 = por %p52, %p53
      %p56 = scmp.ne.s32.totalorder %s39, %s55
      %p57 = scmp.eq.s32.totalorder %s17, 0
      %p58 = por %p56, %p57
      %s59 = ssub.s32 %s19, %s26
      %p60 = scmp.eq.s32.totalorder %s59, 0
      %s62 = sadd.s32 %s61, 1
      %s63 = scalar_select %p60, %s61, %s62
      %p66 = pneg %p60
      %p67 = scmp.eq.s32.totalorder %s11, 7
      %p68 = por %p66, %p67
      %p69 = scmp.ne.s32.totalorder %s61, %s64
      %p70 = scmp.eq.s32.totalorder %s11, 0
      %p71 = por %p69, %p70
      %p72 = scmp.ne.s32.totalorder %s61, %s64
      %p73 = scmp.eq.s32.totalorder %s16, 7
      %p74 = por %p72, %p73
      %p75 = scmp.ne.s32.totalorder %s64, %s65
      %p76 = scmp.eq.s32.totalorder %s16, 0
      %p77 = por %p75, %p76
      %p78 = scmp.ne.s32.totalorder %s64, %s65
      %p79 = scmp.eq.s32.totalorder %s17, 7
      %p80 = por %p78, %p79
      %p82 = scmp.ne.s32.totalorder %s65, %s81
      %p83 = scmp.eq.s32.totalorder %s17, 0
      %p84 = por %p82, %p83
      %s86 = sadd.s32 %s85, 1
      %p89 = scmp.eq.s32.totalorder %s11, 7
      %p90 = scmp.ne.s32.totalorder %s85, %s87
      %p91 = scmp.eq.s32.totalorder %s11, 0
      %p92 = por %p90, %p91
      %p93 = scmp.ne.s32.totalorder %s85, %s87
      %p94 = scmp.eq.s32.totalorder %s16, 7
      %p95 = por %p93, %p94
      %p96 = scmp.ne.s32.totalorder %s87, %s88
      %p97 = scmp.eq.s32.totalorder %s16, 0
      %p98 = por %p96, %p97
      %p99 = scmp.ne.s32.totalorder %s87, %s88
      %p100 = scmp.eq.s32.totalorder %s17, 7
      %p101 = por %p99, %p100
      %p103 = scmp.ne.s32.totalorder %s88, %s102
      %p104 = scmp.eq.s32.totalorder %s17, 0
      %p105 = por %p103, %p104
      %s107 = sadd.s32 %s106, 1
      %p110 = scmp.eq.s32.totalorder %s11, 7
      %p111 = scmp.ne.s32.totalorder %s106, %s108
      %p112 = scmp.eq.s32.totalorder %s11, 0
      %p113 = por %p111, %p112
      %p114 = scmp.ne.s32.totalorder %s106, %s108
      %p115 = scmp.eq.s32.totalorder %s16, 7
      %p116 = por %p114, %p115
      %p117 = scmp.ne.s32.totalorder %s108, %s109
      %p118 = scmp.eq.s32.totalorder %s16, 0
      %p119 = por %p117, %p118
      %p120 = scmp.ne.s32.totalorder %s108, %s109
      %p121 = scmp.eq.s32.totalorder %s17, 7
      %p122 = por %p120, %p121
      %p124 = scmp.ne.s32.totalorder %s109, %s123
      %p125 = scmp.eq.s32.totalorder %s17, 0
      %p126 = por %p124, %p125
      %s128 = sadd.s32 %s127, 1
      %p131 = scmp.eq.s32.totalorder %s11, 7
      %p132 = scmp.ne.s32.totalorder %s127, %s129
      %p133 = scmp.eq.s32.totalorder %s11, 0
      %p134 = por %p132, %p133
      %p135 = scmp.ne.s32.totalorder %s127, %s129
      %p136 = scmp.eq.s32.totalorder %s16, 7
      %p137 = por %p135, %p136
      %p138 = scmp.ne.s32.totalorder %s129, %s130
      %p139 = scmp.eq.s32.totalorder %s16, 0
      %p140 = por %p138, %p139
      %p141 = scmp.ne.s32.totalorder %s129, %s130
      %p142 = scmp.eq.s32.totalorder %s17, 7
      %p143 = por %p141, %p142
      %p145 = scmp.ne.s32.totalorder %s130, %s144
      %p146 = scmp.eq.s32.totalorder %s17, 0
      %p147 = por %p145, %p146
      %s148 = ssub.s32 %s18, %s30
      %p149 = scmp.eq.s32.totalorder %s148, 0
      %s151 = sadd.s32 %s150, 1
      %s152 = scalar_select %p149, %s150, %s151
      %p155 = pneg %p149
      %p156 = scmp.eq.s32.totalorder %s11, 7
      %p157 = por %p155, %p156
      %p158 = scmp.ne.s32.totalorder %s150, %s153
      %p159 = scmp.eq.s32.totalorder %s11, 0
      %p160 = por %p158, %p159
      %p161 = scmp.ne.s32.totalorder %s150, %s153
      %p162 = scmp.eq.s32.totalorder %s16, 7
      %p163 = por %p161, %p162
      %p164 = scmp.ne.s32.totalorder %s153, %s154
      %p165 = scmp.eq.s32.totalorder %s16, 0
      %p166 = por %p164, %p165
      %p167 = scmp.ne.s32.totalorder %s153, %s154
      %p168 = scmp.eq.s32.totalorder %s17, 7
      %p169 = por %p167, %p168
      %p171 = scmp.ne.s32.totalorder %s154, %s170
      %p172 = scmp.eq.s32.totalorder %s17, 0
      %p173 = por %p171, %p172
      %p174 = scmp.le.s32.totalorder 1, %s11
      %p175 = scmp.lt.s32.totalorder %s11, 9
      %p176 = pnand %p174, %p175
      %p177 = pneg %p176
      // Predicated region
      $region9: #{go_policy_forward.1} parent=5 // pred_check
        _
      $region10: #{go_policy_forward.1} parent=5 // pred_check_branch
        %179 = sbr.rel (%p176) target = $region12
      $region11: #{go_policy_forward.1} parent=5 // pred_region
        %s180 = ssub.s32 %s11, 1
        // Predicated region
        $region13: #{go_policy_forward.1} parent=11 // pred_check
          %p181 = pneg %p98
        $region14: #{go_policy_forward.1} parent=11 // pred_check_branch
          %183 = sbr.rel (%p181) target = $region16
        $region15: #{go_policy_forward.1} parent=11 // pred_region
          _
        $region16: #{go_policy_forward.1} parent=11 // pred_fallthru
          _
        // Predicated region
        $region17: #{go_policy_forward.1} parent=11 // pred_check
          %p184 = pneg %p119
        $region18: #{go_policy_forward.1} parent=11 // pred_check_branch
          %186 = sbr.rel (%p184) target = $region20
        $region19: #{go_policy_forward.1} parent=11 // pred_region
          _
        $region20: #{go_policy_forward.1} parent=11 // pred_fallthru
          _
        // Predicated region
        $region21: #{go_policy_forward.1} parent=11 // pred_check
          %p187 = pneg %p140
        $region22: #{go_policy_forward.1} parent=11 // pred_check_branch
          %189 = sbr.rel (%p187) target = $region24
        $region23: #{go_policy_forward.1} parent=11 // pred_region
          _
        $region24: #{go_policy_forward.1} parent=11 // pred_fallthru
          _
      $region12: #{go_policy_forward.1} parent=5 // pred_fallthru
        _
      %p190 = scmp.lt.s32.totalorder %s11, 8
      // Predicated region
      $region25: #{go_policy_forward.1} parent=5 // pred_check
        %p191 = pneg %p190
      $region26: #{go_policy_forward.1} parent=5 // pred_check_branch
        %193 = sbr.rel (%p191) target = $region28
      $region27: #{go_policy_forward.1} parent=5 // pred_region
        // Predicated region
        $region29: #{go_policy_forward.1} parent=27 // pred_check
          %p194 = pneg %p45
        $region30: #{go_policy_forward.1} parent=27 // pred_check_branch
          %196 = sbr.rel (%p194) target = $region32
        $region31: #{go_policy_forward.1} parent=27 // pred_region
          %s197 = sand.u32 %s35, 1
          %s198 = sand.u32 %s35, 1
          %s199 = smul.addr %s198, 448
          %s200 = scalar_lea.vmem [#allocation4], %s199
          %s201 = smul.u32 56, %s18
          %s202 = smul.u32 2, %s19
          %s203 = smul.addr %s201, 8
          %s204 = sadd.s32 %s202, %s203
          %s205 = smul.addr %s204, 4
          %s206 = scalar_lea.vmem %s0, %s205
          // Predicated region
          $region33: #{go_policy_forward.1} parent=31 // pred_check
            _
          $region34: #{go_policy_forward.1} parent=31 // pred_check_branch
            %208 = sbr.rel (0) target = $region36
          $region35: #{go_policy_forward.1} parent=31 // pred_region
            // Predicated region
            $region37: #{go_policy_forward.1} parent=35 // pred_check
              _
            $region38: #{go_policy_forward.1} parent=35 // pred_check_branch
              %210 = sbr.rel (0) target = $region40
            $region39: #{go_policy_forward.1} parent=35 // pred_region
              // Predicated region
              $region52: #{go_policy_forward.1} parent=39 // pred_check
                _
              $region53: #{go_policy_forward.1} parent=39 // pred_check_branch
                %336 = sbr.rel (0) target = $region55
              $region54: #{go_policy_forward.1} parent=39 // pred_region
                loop: start=0, step=1, limit=1
                $region56: #{go_policy_forward.1} parent=54 // loop_pre_header
                  _
                $region57: #{go_policy_forward.1} parent=54 // loop_header
                  %s338 = sphi 0, %s342
                  %p339 = scmp.ge.s32.totalorder %s338, 1
                  %s343 = sphi %s206, %s206
                  %s344 = sphi %s200, %s200
                $region58: #{go_policy_forward.1} parent=54 // loop_header_branch
                  %341 = sbr.rel (%p339) target = $region62
                $region59: #{go_policy_forward.1} parent=54 // loop_body
                  %v345 = vld [vmem:[%s343] sm:$0xff]
                  %346 = vst [vmem:[%s344] sm:$0xff] %v345
                  %v347 = vld [vmem:[%s343 + $0x20] sm:$0xff]
                  %348 = vst [vmem:[%s344 + $0x8] sm:$0xff] %v347
                  %v349 = vld [vmem:[%s343 + $0x40] sm:$0xff]
                  %350 = vst [vmem:[%s344 + $0x10] sm:$0xff] %v349
                  %v351 = vld [vmem:[%s343 + $0x60] sm:$0xff]
                  %352 = vst [vmem:[%s344 + $0x18] sm:$0xff] %v351
                  %v353 = vld [vmem:[%s343 + $0x80] sm:$0xff]
                  %354 = vst [vmem:[%s344 + $0x20] sm:$0xff] %v353
                  %v355 = vld [vmem:[%s343 + $0xa0] sm:$0xff]
                  %356 = vst [vmem:[%s344 + $0x28] sm:$0xff] %v355
                  %v357 = vld [vmem:[%s343 + $0xc0] sm:$0xff]
                  %358 = vst [vmem:[%s344 + $0x30] sm:$0xff] %v357
                  %v359 = vld [vmem:[%s343 + $0xe0] sm:$0xff]
                  %360 = vst [vmem:[%s344 + $0x38] sm:$0xff] %v359
                  %v361 = vld [vmem:[%s343 + $0x100] sm:$0xff]
                  %362 = vst [vmem:[%s344 + $0x40] sm:$0xff] %v361
                  %v363 = vld [vmem:[%s343 + $0x120] sm:$0xff]
                  %364 = vst [vmem:[%s344 + $0x48] sm:$0xff] %v363
                  %v365 = vld [vmem:[%s343 + $0x140] sm:$0xff]
                  %366 = vst [vmem:[%s344 + $0x50] sm:$0xff] %v365
                  %v367 = vld [vmem:[%s343 + $0x160] sm:$0xff]
                  %368 = vst [vmem:[%s344 + $0x58] sm:$0xff] %v367
                  %v369 = vld [vmem:[%s343 + $0x180] sm:$0xff]
                  %370 = vst [vmem:[%s344 + $0x60] sm:$0xff] %v369
                  %v371 = vld [vmem:[%s343 + $0x1a0] sm:$0xff]
                  %372 = vst [vmem:[%s344 + $0x68] sm:$0xff] %v371
                  %v373 = vld [vmem:[%s343 + $0x1c0] sm:$0xff]
                  %374 = vst [vmem:[%s344 + $0x70] sm:$0xff] %v373
                  %v375 = vld [vmem:[%s343 + $0x1e0] sm:$0xff]
                  %376 = vst [vmem:[%s344 + $0x78] sm:$0xff] %v375
                  %v377 = vld [vmem:[%s343 + $0x200] sm:$0xff]
                  %378 = vst [vmem:[%s344 + $0x80] sm:$0xff] %v377
                  %v379 = vld [vmem:[%s343 + $0x220] sm:$0xff]
                  %380 = vst [vmem:[%s344 + $0x88] sm:$0xff] %v379
                  %v381 = vld [vmem:[%s343 + $0x240] sm:$0xff]
                  %382 = vst [vmem:[%s344 + $0x90] sm:$0xff] %v381
                  %v383 = vld [vmem:[%s343 + $0x260] sm:$0xff]
                  %384 = vst [vmem:[%s344 + $0x98] sm:$0xff] %v383
                  %v385 = vld [vmem:[%s343 + $0x280] sm:$0xff]
                  %386 = vst [vmem:[%s344 + $0xa0] sm:$0xff] %v385
                  %v387 = vld [vmem:[%s343 + $0x2a0] sm:$0xff]
                  %388 = vst [vmem:[%s344 + $0xa8] sm:$0xff] %v387
                  %v389 = vld [vmem:[%s343 + $0x2c0] sm:$0xff]
                  %390 = vst [vmem:[%s344 + $0xb0] sm:$0xff] %v389
                  %v391 = vld [vmem:[%s343 + $0x2e0] sm:$0xff]
                  %392 = vst [vmem:[%s344 + $0xb8] sm:$0xff] %v391
                  %v393 = vld [vmem:[%s343 + $0x300] sm:$0xff]
                  %394 = vst [vmem:[%s344 + $0xc0] sm:$0xff] %v393
                  %v395 = vld [vmem:[%s343 + $0x320] sm:$0xff]
                  %396 = vst [vmem:[%s344 + $0xc8] sm:$0xff] %v395
                  %v397 = vld [vmem:[%s343 + $0x340] sm:$0xff]
                  %398 = vst [vmem:[%s344 + $0xd0] sm:$0xff] %v397
                  %v399 = vld [vmem:[%s343 + $0x360] sm:$0xff]
                  %400 = vst [vmem:[%s344 + $0xd8] sm:$0xff] %v399
                  %v401 = vld [vmem:[%s343 + $0x380] sm:$0xff]
                  %402 = vst [vmem:[%s344 + $0xe0] sm:$0xff] %v401
                  %v403 = vld [vmem:[%s343 + $0x3a0] sm:$0xff]
                  %404 = vst [vmem:[%s344 + $0xe8] sm:$0xff] %v403
                  %v405 = vld [vmem:[%s343 + $0x3c0] sm:$0xff]
                  %406 = vst [vmem:[%s344 + $0xf0] sm:$0xff] %v405
                  %v407 = vld [vmem:[%s343 + $0x3e0] sm:$0xff]
                  %408 = vst [vmem:[%s344 + $0xf8] sm:$0xff] %v407
                  %v409 = vld [vmem:[%s343 + $0x400] sm:$0xff]
                  %410 = vst [vmem:[%s344 + $0x100] sm:$0xff] %v409
                  %v411 = vld [vmem:[%s343 + $0x420] sm:$0xff]
                  %412 = vst [vmem:[%s344 + $0x108] sm:$0xff] %v411
                  %v413 = vld [vmem:[%s343 + $0x440] sm:$0xff]
                  %414 = vst [vmem:[%s344 + $0x110] sm:$0xff] %v413
                  %v415 = vld [vmem:[%s343 + $0x460] sm:$0xff]
                  %416 = vst [vmem:[%s344 + $0x118] sm:$0xff] %v415
                  %v417 = vld [vmem:[%s343 + $0x480] sm:$0xff]
                  %418 = vst [vmem:[%s344 + $0x120] sm:$0xff] %v417
                  %v419 = vld [vmem:[%s343 + $0x4a0] sm:$0xff]
                  %420 = vst [vmem:[%s344 + $0x128] sm:$0xff] %v419
                  %v421 = vld [vmem:[%s343 + $0x4c0] sm:$0xff]
                  %422 = vst [vmem:[%s344 + $0x130] sm:$0xff] %v421
                  %v423 = vld [vmem:[%s343 + $0x4e0] sm:$0xff]
                  %424 = vst [vmem:[%s344 + $0x138] sm:$0xff] %v423
                  %v425 = vld [vmem:[%s343 + $0x500] sm:$0xff]
                  %426 = vst [vmem:[%s344 + $0x140] sm:$0xff] %v425
                  %v427 = vld [vmem:[%s343 + $0x520] sm:$0xff]
                  %428 = vst [vmem:[%s344 + $0x148] sm:$0xff] %v427
                  %v429 = vld [vmem:[%s343 + $0x540] sm:$0xff]
                  %430 = vst [vmem:[%s344 + $0x150] sm:$0xff] %v429
                  %v431 = vld [vmem:[%s343 + $0x560] sm:$0xff]
                  %432 = vst [vmem:[%s344 + $0x158] sm:$0xff] %v431
                  %v433 = vld [vmem:[%s343 + $0x580] sm:$0xff]
                  %434 = vst [vmem:[%s344 + $0x160] sm:$0xff] %v433
                  %v435 = vld [vmem:[%s343 + $0x5a0] sm:$0xff]
                  %436 = vst [vmem:[%s344 + $0x168] sm:$0xff] %v435
                  %v437 = vld [vmem:[%s343 + $0x5c0] sm:$0xff]
                  %438 = vst [vmem:[%s344 + $0x170] sm:$0xff] %v437
                  %v439 = vld [vmem:[%s343 + $0x5e0] sm:$0xff]
                  %440 = vst [vmem:[%s344 + $0x178] sm:$0xff] %v439
                  %v441 = vld [vmem:[%s343 + $0x600] sm:$0xff]
                  %442 = vst [vmem:[%s344 + $0x180] sm:$0xff] %v441
                  %v443 = vld [vmem:[%s343 + $0x620] sm:$0xff]
                  %444 = vst [vmem:[%s344 + $0x188] sm:$0xff] %v443
                  %v445 = vld [vmem:[%s343 + $0x640] sm:$0xff]
                  %446 = vst [vmem:[%s344 + $0x190] sm:$0xff] %v445
                  %v447 = vld [vmem:[%s343 + $0x660] sm:$0xff]
                  %448 = vst [vmem:[%s344 + $0x198] sm:$0xff] %v447
                  %v449 = vld [vmem:[%s343 + $0x680] sm:$0xff]
                  %450 = vst [vmem:[%s344 + $0x1a0] sm:$0xff] %v449
                  %v451 = vld [vmem:[%s343 + $0x6a0] sm:$0xff]
                  %452 = vst [vmem:[%s344 + $0x1a8] sm:$0xff] %v451
                  %v453 = vld [vmem:[%s343 + $0x6c0] sm:$0xff]
                  %454 = vst [vmem:[%s344 + $0x1b0] sm:$0xff] %v453
                  %v455 = vld [vmem:[%s343 + $0x6e0] sm:$0xff]
                  %456 = vst [vmem:[%s344 + $0x1b8] sm:$0xff] %v455
                $region60: #{go_policy_forward.1} parent=54 // loop_footer
                  %s342 = sadd.s32 1, %s338
                $region61: #{go_policy_forward.1} parent=54 // loop_footer_branch
                  %337 = sbr.rel target = $region57
                $region62: #{go_policy_forward.1} parent=54 // loop_exit
                  _
              $region55: #{go_policy_forward.1} parent=39 // pred_fallthru
                _
              // Predicated region
              $region63: #{go_policy_forward.1} parent=39 // pred_check
                _
              $region64: #{go_policy_forward.1} parent=39 // pred_check_branch
                %458 = sbr.rel target = $region66
              $region65: #{go_policy_forward.1} parent=39 // pred_region
                _
              $region66: #{go_policy_forward.1} parent=39 // pred_fallthru
                _
            $region40: #{go_policy_forward.1} parent=35 // pred_fallthru
              _
            // Predicated region
            $region41: #{go_policy_forward.1} parent=35 // pred_check
              _
            $region42: #{go_policy_forward.1} parent=35 // pred_check_branch
              %212 = sbr.rel target = $region44
            $region43: #{go_policy_forward.1} parent=35 // pred_region
              %s214 = ssub.s32 256, 1
              loop: start=0, step=1, limit=1
              $region45: #{go_policy_forward.1} parent=43 // loop_pre_header
                _
              $region46: #{go_policy_forward.1} parent=43 // loop_header
                %s216 = sphi 0, %s220
                %p217 = scmp.ge.s32.totalorder %s216, 1
                %s221 = sphi %s206, %s206
                %s222 = sphi %s200, %s200
              $region47: #{go_policy_forward.1} parent=43 // loop_header_branch
                %219 = sbr.rel (%p217) target = $region51
              $region48: #{go_policy_forward.1} parent=43 // loop_body
                %v223 = vld [vmem:[%s221] sm:%s214]
                %224 = vst [vmem:[%s222] sm:%s214] %v223
                %v225 = vld [vmem:[%s221 + $0x20] sm:%s214]
                %226 = vst [vmem:[%s222 + $0x8] sm:%s214] %v225
                %v227 = vld [vmem:[%s221 + $0x40] sm:%s214]
                %228 = vst [vmem:[%s222 + $0x10] sm:%s214] %v227
                %v229 = vld [vmem:[%s221 + $0x60] sm:%s214]
                %230 = vst [vmem:[%s222 + $0x18] sm:%s214] %v229
                %v231 = vld [vmem:[%s221 + $0x80] sm:%s214]
                %232 = vst [vmem:[%s222 + $0x20] sm:%s214] %v231
                %v233 = vld [vmem:[%s221 + $0xa0] sm:%s214]
                %234 = vst [vmem:[%s222 + $0x28] sm:%s214] %v233
                %v235 = vld [vmem:[%s221 + $0xc0] sm:%s214]
                %236 = vst [vmem:[%s222 + $0x30] sm:%s214] %v235
                %v237 = vld [vmem:[%s221 + $0xe0] sm:%s214]
                %238 = vst [vmem:[%s222 + $0x38] sm:%s214] %v237
                %v239 = vld [vmem:[%s221 + $0x100] sm:%s214]
                %240 = vst [vmem:[%s222 + $0x40] sm:%s214] %v239
                %v241 = vld [vmem:[%s221 + $0x120] sm:%s214]
                %242 = vst [vmem:[%s222 + $0x48] sm:%s214] %v241
                %v243 = vld [vmem:[%s221 + $0x140] sm:%s214]
                %244 = vst [vmem:[%s222 + $0x50] sm:%s214] %v243
                %v245 = vld [vmem:[%s221 + $0x160] sm:%s214]
                %246 = vst [vmem:[%s222 + $0x58] sm:%s214] %v245
                %v247 = vld [vmem:[%s221 + $0x180] sm:%s214]
                %248 = vst [vmem:[%s222 + $0x60] sm:%s214] %v247
                %v249 = vld [vmem:[%s221 + $0x1a0] sm:%s214]
                %250 = vst [vmem:[%s222 + $0x68] sm:%s214] %v249
                %v251 = vld [vmem:[%s221 + $0x1c0] sm:%s214]
                %252 = vst [vmem:[%s222 + $0x70] sm:%s214] %v251
                %v253 = vld [vmem:[%s221 + $0x1e0] sm:%s214]
                %254 = vst [vmem:[%s222 + $0x78] sm:%s214] %v253
                %v255 = vld [vmem:[%s221 + $0x200] sm:%s214]
                %256 = vst [vmem:[%s222 + $0x80] sm:%s214] %v255
                %v257 = vld [vmem:[%s221 + $0x220] sm:%s214]
                %258 = vst [vmem:[%s222 + $0x88] sm:%s214] %v257
                %v259 = vld [vmem:[%s221 + $0x240] sm:%s214]
                %260 = vst [vmem:[%s222 + $0x90] sm:%s214] %v259
                %v261 = vld [vmem:[%s221 + $0x260] sm:%s214]
                %262 = vst [vmem:[%s222 + $0x98] sm:%s214] %v261
                %v263 = vld [vmem:[%s221 + $0x280] sm:%s214]
                %264 = vst [vmem:[%s222 + $0xa0] sm:%s214] %v263
                %v265 = vld [vmem:[%s221 + $0x2a0] sm:%s214]
                %266 = vst [vmem:[%s222 + $0xa8] sm:%s214] %v265
                %v267 = vld [vmem:[%s221 + $0x2c0] sm:%s214]
                %268 = vst [vmem:[%s222 + $0xb0] sm:%s214] %v267
                %v269 = vld [vmem:[%s221 + $0x2e0] sm:%s214]
                %270 = vst [vmem:[%s222 + $0xb8] sm:%s214] %v269
                %v271 = vld [vmem:[%s221 + $0x300] sm:%s214]
                %272 = vst [vmem:[%s222 + $0xc0] sm:%s214] %v271
                %v273 = vld [vmem:[%s221 + $0x320] sm:%s214]
                %274 = vst [vmem:[%s222 + $0xc8] sm:%s214] %v273
                %v275 = vld [vmem:[%s221 + $0x340] sm:%s214]
                %276 = vst [vmem:[%s222 + $0xd0] sm:%s214] %v275
                %v277 = vld [vmem:[%s221 + $0x360] sm:%s214]
                %278 = vst [vmem:[%s222 + $0xd8] sm:%s214] %v277
                %v279 = vld [vmem:[%s221 + $0x380] sm:%s214]
                %280 = vst [vmem:[%s222 + $0xe0] sm:%s214] %v279
                %v281 = vld [vmem:[%s221 + $0x3a0] sm:%s214]
                %282 = vst [vmem:[%s222 + $0xe8] sm:%s214] %v281
                %v283 = vld [vmem:[%s221 + $0x3c0] sm:%s214]
                %284 = vst [vmem:[%s222 + $0xf0] sm:%s214] %v283
                %v285 = vld [vmem:[%s221 + $0x3e0] sm:%s214]
                %286 = vst [vmem:[%s222 + $0xf8] sm:%s214] %v285
                %v287 = vld [vmem:[%s221 + $0x400] sm:%s214]
                %288 = vst [vmem:[%s222 + $0x100] sm:%s214] %v287
                %v289 = vld [vmem:[%s221 + $0x420] sm:%s214]
                %290 = vst [vmem:[%s222 + $0x108] sm:%s214] %v289
                %v291 = vld [vmem:[%s221 + $0x440] sm:%s214]
                %292 = vst [vmem:[%s222 + $0x110] sm:%s214] %v291
                %v293 = vld [vmem:[%s221 + $0x460] sm:%s214]
                %294 = vst [vmem:[%s222 + $0x118] sm:%s214] %v293
                %v295 = vld [vmem:[%s221 + $0x480] sm:%s214]
                %296 = vst [vmem:[%s222 + $0x120] sm:%s214] %v295
                %v297 = vld [vmem:[%s221 + $0x4a0] sm:%s214]
                %298 = vst [vmem:[%s222 + $0x128] sm:%s214] %v297
                %v299 = vld [vmem:[%s221 + $0x4c0] sm:%s214]
                %300 = vst [vmem:[%s222 + $0x130] sm:%s214] %v299
                %v301 = vld [vmem:[%s221 + $0x4e0] sm:%s214]
                %302 = vst [vmem:[%s222 + $0x138] sm:%s214] %v301
                %v303 = vld [vmem:[%s221 + $0x500] sm:%s214]
                %304 = vst [vmem:[%s222 + $0x140] sm:%s214] %v303
                %v305 = vld [vmem:[%s221 + $0x520] sm:%s214]
                %306 = vst [vmem:[%s222 + $0x148] sm:%s214] %v305
                %v307 = vld [vmem:[%s221 + $0x540] sm:%s214]
                %308 = vst [vmem:[%s222 + $0x150] sm:%s214] %v307
                %v309 = vld [vmem:[%s221 + $0x560] sm:%s214]
                %310 = vst [vmem:[%s222 + $0x158] sm:%s214] %v309
                %v311 = vld [vmem:[%s221 + $0x580] sm:%s214]
                %312 = vst [vmem:[%s222 + $0x160] sm:%s214] %v311
                %v313 = vld [vmem:[%s221 + $0x5a0] sm:%s214]
                %314 = vst [vmem:[%s222 + $0x168] sm:%s214] %v313
                %v315 = vld [vmem:[%s221 + $0x5c0] sm:%s214]
                %316 = vst [vmem:[%s222 + $0x170] sm:%s214] %v315
                %v317 = vld [vmem:[%s221 + $0x5e0] sm:%s214]
                %318 = vst [vmem:[%s222 + $0x178] sm:%s214] %v317
                %v319 = vld [vmem:[%s221 + $0x600] sm:%s214]
                %320 = vst [vmem:[%s222 + $0x180] sm:%s214] %v319
                %v321 = vld [vmem:[%s221 + $0x620] sm:%s214]
                %322 = vst [vmem:[%s222 + $0x188] sm:%s214] %v321
                %v323 = vld [vmem:[%s221 + $0x640] sm:%s214]
                %324 = vst [vmem:[%s222 + $0x190] sm:%s214] %v323
                %v325 = vld [vmem:[%s221 + $0x660] sm:%s214]
                %326 = vst [vmem:[%s222 + $0x198] sm:%s214] %v325
                %v327 = vld [vmem:[%s221 + $0x680] sm:%s214]
                %328 = vst [vmem:[%s222 + $0x1a0] sm:%s214] %v327
                %v329 = vld [vmem:[%s221 + $0x6a0] sm:%s214]
                %330 = vst [vmem:[%s222 + $0x1a8] sm:%s214] %v329
                %v331 = vld [vmem:[%s221 + $0x6c0] sm:%s214]
                %332 = vst [vmem:[%s222 + $0x1b0] sm:%s214] %v331
                %v333 = vld [vmem:[%s221 + $0x6e0] sm:%s214]
                %334 = vst [vmem:[%s222 + $0x1b8] sm:%s214] %v333
              $region49: #{go_policy_forward.1} parent=43 // loop_footer
                %s220 = sadd.s32 1, %s216
              $region50: #{go_policy_forward.1} parent=43 // loop_footer_branch
                %215 = sbr.rel target = $region46
              $region51: #{go_policy_forward.1} parent=43 // loop_exit
                _
            $region44: #{go_policy_forward.1} parent=35 // pred_fallthru
              _
          $region36: #{go_policy_forward.1} parent=31 // pred_fallthru
            _
          %459 = vnop
        $region32: #{go_policy_forward.1} parent=27 // pred_fallthru
          _
        // Predicated region
        $region67: #{go_policy_forward.1} parent=27 // pred_check
          %p460 = pneg %p71
        $region68: #{go_policy_forward.1} parent=27 // pred_check_branch
          %462 = sbr.rel (%p460) target = $region70
        $region69: #{go_policy_forward.1} parent=27 // pred_region
          %s463 = smul.u32 32, %s19
          %p464 = scmp.lt.s32.totalorder %s463, 127
          %s465 = scalar_select %p464, %s463, 127
          %s466 = smul.addr %s465, 4
          %s467 = scalar_lea.vmem %s1, %s466
          %s468 = smul.u32 32, %s19
        $region70: #{go_policy_forward.1} parent=27 // pred_fallthru
          _
      $region28: #{go_policy_forward.1} parent=5 // pred_fallthru
        _
      %p469 = scmp.le.s32.totalorder 1, %s11
      %p470 = scmp.lt.s32.totalorder %s11, 9
      %p471 = pnand %p469, %p470
      %p472 = pneg %p471
      // Predicated region
      $region71: #{go_policy_forward.1} parent=5 // pred_check
        _
      $region72: #{go_policy_forward.1} parent=5 // pred_check_branch
        %474 = sbr.rel (%p471) target = $region74
      $region73: #{go_policy_forward.1} parent=5 // pred_region
        %s475 = ssub.s32 %s11, 1
        %s476 = sand.u32 %s38, 1
        %s477 = sand.u32 %s38, 1
        %s478 = smul.addr %s477, 448
        %s479 = scalar_lea.vmem [#allocation4], %s478
        // Predicated region
        $region75: #{go_policy_forward.1} parent=73 // pred_check
          %p480 = pneg %p51
        $region76: #{go_policy_forward.1} parent=73 // pred_check_branch
          %482 = sbr.rel (%p480) target = $region78
        $region77: #{go_policy_forward.1} parent=73 // pred_region
          _
        $region78: #{go_policy_forward.1} parent=73 // pred_fallthru
          _
        %s483 = sand.u32 %s38, 1
        %s484 = sand.u32 %s38, 1
        %s485 = smul.addr %s484, 448
        %s486 = scalar_lea.vmem [#allocation4], %s485
        %p487 = pneg %p51
        %p488 = pneg %p48
        %s489 = smul.u32 32, %s21
        %p490 = scmp.lt.s32.totalorder %s489, 127
        %s491 = scalar_select %p490, %s489, 127
        %s492 = smul.addr %s491, 4
        %s493 = scalar_lea.vmem %s1, %s492
        %p494 = pneg %p77
        %p495 = pneg %p74
        %p496 = pneg %p98
        %p497 = pneg %p95
        %p498 = pneg %p119
        %p499 = pneg %p116
        %p500 = pneg %p140
        %p501 = pneg %p137
        %p502 = pneg %p166
        %p503 = pneg %p163
        %p504 = scmp.lt.s32.totalorder %s20, 1
        %s505 = scalar_select %p504, %s20, 1
        %s506 = smul.addr %s505, 2
        %s507 = smul.addr %s506, 4
        %s508 = scalar_lea.vmem %s5, %s507
        %s509 = smul.u32 56, %s20
        %s510 = smul.u32 2, %s21
        %s511 = smul.u32 32, %s21
        %p512 = scmp.lt.s32.totalorder %s511, 127
        %s513 = scalar_select %p512, %s511, 127
        %s514 = smul.addr %s513, 4
        %s515 = scalar_lea.vmem %s1, %s514
        %s516 = smul.u32 32, %s21
        %p517 = scmp.lt.s32.totalorder %s20, 1
        %s518 = scalar_select %p517, %s20, 1
        %s519 = smul.addr %s518, 2
        %s520 = smul.addr %s519, 4
        %s521 = scalar_lea.vmem %s5, %s520
        %p523 = scmp.eq.s32.totalorder %s21, 0
        // Predicated region
        $region79: #{go_policy_forward.1} parent=73 // pred_check
          %p524 = pneg %p523
        $region80: #{go_policy_forward.1} parent=73 // pred_check_branch
          %526 = sbr.rel (%p524) target = $region82
        $region81: #{go_policy_forward.1} parent=73 // pred_region
          %vm527 = vcmask 293888
          %528 = vst.msk [vmem:[#allocation2] sm:$0xff] %vm527, 0.0
          %529 = vst.msk [vmem:[#allocation2 + $0x8] sm:$0xff] %vm527, 0.0
          %530 = vst.msk [vmem:[#allocation2 + $0x10] sm:$0xff] %vm527, 0.0
          %531 = vst.msk [vmem:[#allocation2 + $0x18] sm:$0xff] %vm527, 0.0
          %532 = vst.msk [vmem:[#allocation2 + $0x20] sm:$0xff] %vm527, 0.0
          %533 = vst.msk [vmem:[#allocation2 + $0x28] sm:$0xff] %vm527, 0.0
          %534 = vst.msk [vmem:[#allocation2 + $0x30] sm:$0xff] %vm527, 0.0
          %535 = vst.msk [vmem:[#allocation2 + $0x38] sm:$0xff] %vm527, 0.0
          %536 = vst.msk [vmem:[#allocation2 + $0x40] sm:$0xff] %vm527, 0.0
          %537 = vst.msk [vmem:[#allocation2 + $0x48] sm:$0xff] %vm527, 0.0
          %538 = vst.msk [vmem:[#allocation2 + $0x50] sm:$0xff] %vm527, 0.0
          %539 = vst.msk [vmem:[#allocation2 + $0x58] sm:$0xff] %vm527, 0.0
          %540 = vst.msk [vmem:[#allocation2 + $0x60] sm:$0xff] %vm527, 0.0
          %541 = vst.msk [vmem:[#allocation2 + $0x68] sm:$0xff] %vm527, 0.0
          %542 = vst.msk [vmem:[#allocation2 + $0x70] sm:$0xff] %vm527, 0.0
          %543 = vst.msk [vmem:[#allocation2 + $0x78] sm:$0xff] %vm527, 0.0
          %544 = vst.msk [vmem:[#allocation2 + $0x80] sm:$0xff] %vm527, 0.0
          %545 = vst.msk [vmem:[#allocation2 + $0x88] sm:$0xff] %vm527, 0.0
          %546 = vst.msk [vmem:[#allocation2 + $0x90] sm:$0xff] %vm527, 0.0
          %547 = vst.msk [vmem:[#allocation2 + $0x98] sm:$0xff] %vm527, 0.0
          %548 = vst.msk [vmem:[#allocation2 + $0xa0] sm:$0xff] %vm527, 0.0
          %549 = vst.msk [vmem:[#allocation2 + $0xa8] sm:$0xff] %vm527, 0.0
          %550 = vst.msk [vmem:[#allocation2 + $0xb0] sm:$0xff] %vm527, 0.0
          %551 = vst.msk [vmem:[#allocation2 + $0xb8] sm:$0xff] %vm527, 0.0
          %552 = vst.msk [vmem:[#allocation2 + $0xc0] sm:$0xff] %vm527, 0.0
          %553 = vst.msk [vmem:[#allocation2 + $0xc8] sm:$0xff] %vm527, 0.0
          %554 = vst.msk [vmem:[#allocation2 + $0xd0] sm:$0xff] %vm527, 0.0
          %555 = vst.msk [vmem:[#allocation2 + $0xd8] sm:$0xff] %vm527, 0.0
          %556 = vst.msk [vmem:[#allocation2 + $0xe0] sm:$0xff] %vm527, 0.0
          %557 = vst.msk [vmem:[#allocation2 + $0xe8] sm:$0xff] %vm527, 0.0
          %558 = vst.msk [vmem:[#allocation2 + $0xf0] sm:$0xff] %vm527, 0.0
          %559 = vst.msk [vmem:[#allocation2 + $0xf8] sm:$0xff] %vm527, 0.0
          %560 = vst.msk [vmem:[#allocation2 + $0x100] sm:$0xff] %vm527, 0.0
          %561 = vst.msk [vmem:[#allocation2 + $0x108] sm:$0xff] %vm527, 0.0
          %562 = vst.msk [vmem:[#allocation2 + $0x110] sm:$0xff] %vm527, 0.0
          %563 = vst.msk [vmem:[#allocation2 + $0x118] sm:$0xff] %vm527, 0.0
          %564 = vst.msk [vmem:[#allocation2 + $0x120] sm:$0xff] %vm527, 0.0
          %565 = vst.msk [vmem:[#allocation2 + $0x128] sm:$0xff] %vm527, 0.0
          %566 = vst.msk [vmem:[#allocation2 + $0x130] sm:$0xff] %vm527, 0.0
          %567 = vst.msk [vmem:[#allocation2 + $0x138] sm:$0xff] %vm527, 0.0
          %568 = vst.msk [vmem:[#allocation2 + $0x140] sm:$0xff] %vm527, 0.0
          %569 = vst.msk [vmem:[#allocation2 + $0x148] sm:$0xff] %vm527, 0.0
          %570 = vst.msk [vmem:[#allocation2 + $0x150] sm:$0xff] %vm527, 0.0
          %571 = vst.msk [vmem:[#allocation2 + $0x158] sm:$0xff] %vm527, 0.0
          %572 = vst.msk [vmem:[#allocation2 + $0x160] sm:$0xff] %vm527, 0.0
          %573 = vst.msk [vmem:[#allocation2 + $0x168] sm:$0xff] %vm527, 0.0
          %574 = vst.msk [vmem:[#allocation2 + $0x170] sm:$0xff] %vm527, 0.0
          %575 = vst.msk [vmem:[#allocation2 + $0x178] sm:$0xff] %vm527, 0.0
          %576 = vst.msk [vmem:[#allocation2 + $0x180] sm:$0xff] %vm527, 0.0
          %577 = vst.msk [vmem:[#allocation2 + $0x188] sm:$0xff] %vm527, 0.0
          %578 = vst.msk [vmem:[#allocation2 + $0x190] sm:$0xff] %vm527, 0.0
          %579 = vst.msk [vmem:[#allocation2 + $0x198] sm:$0xff] %vm527, 0.0
          %580 = vst.msk [vmem:[#allocation2 + $0x1a0] sm:$0xff] %vm527, 0.0
          %581 = vst.msk [vmem:[#allocation2 + $0x1a8] sm:$0xff] %vm527, 0.0
          %582 = vst.msk [vmem:[#allocation2 + $0x1b0] sm:$0xff] %vm527, 0.0
          %583 = vst.msk [vmem:[#allocation2 + $0x1b8] sm:$0xff] %vm527, 0.0
        $region82: #{go_policy_forward.1} parent=73 // pred_fallthru
          _
        %v584 = vld [vmem:[#allocation2] sm:$0xff]
        %v585 = vld [vmem:[#allocation2 + $0x8] sm:$0xff]
        %v586 = vld [vmem:[#allocation2 + $0x10] sm:$0xff]
        %v587 = vld [vmem:[#allocation2 + $0x18] sm:$0xff]
        %v588 = vld [vmem:[#allocation2 + $0x20] sm:$0xff]
        %v589 = vld [vmem:[#allocation2 + $0x28] sm:$0xff]
        %v590 = vld [vmem:[#allocation2 + $0x30] sm:$0xff]
        %v591 = vld [vmem:[#allocation2 + $0x38] sm:$0xff]
        %v592 = vld [vmem:[#allocation2 + $0x40] sm:$0xff]
        %v593 = vld [vmem:[#allocation2 + $0x48] sm:$0xff]
        %v594 = vld [vmem:[#allocation2 + $0x50] sm:$0xff]
        %v595 = vld [vmem:[#allocation2 + $0x58] sm:$0xff]
        %v596 = vld [vmem:[#allocation2 + $0x60] sm:$0xff]
        %v597 = vld [vmem:[#allocation2 + $0x68] sm:$0xff]
        %v598 = vld [vmem:[#allocation2 + $0x70] sm:$0xff]
        %v599 = vld [vmem:[#allocation2 + $0x78] sm:$0xff]
        %v600 = vld [vmem:[#allocation2 + $0x80] sm:$0xff]
        %v601 = vld [vmem:[#allocation2 + $0x88] sm:$0xff]
        %v602 = vld [vmem:[#allocation2 + $0x90] sm:$0xff]
        %v603 = vld [vmem:[#allocation2 + $0x98] sm:$0xff]
        %v604 = vld [vmem:[#allocation2 + $0xa0] sm:$0xff]
        %v605 = vld [vmem:[#allocation2 + $0xa8] sm:$0xff]
        %v606 = vld [vmem:[#allocation2 + $0xb0] sm:$0xff]
        %v607 = vld [vmem:[#allocation2 + $0xb8] sm:$0xff]
        %v608 = vld [vmem:[#allocation2 + $0xc0] sm:$0xff]
        %v609 = vld [vmem:[#allocation2 + $0xc8] sm:$0xff]
        %v610 = vld [vmem:[#allocation2 + $0xd0] sm:$0xff]
        %v611 = vld [vmem:[#allocation2 + $0xd8] sm:$0xff]
        %v612 = vld [vmem:[#allocation2 + $0xe0] sm:$0xff]
        %v613 = vld [vmem:[#allocation2 + $0xe8] sm:$0xff]
        %v614 = vld [vmem:[#allocation2 + $0xf0] sm:$0xff]
        %v615 = vld [vmem:[#allocation2 + $0xf8] sm:$0xff]
        %v616 = vld [vmem:[#allocation2 + $0x100] sm:$0xff]
        %v617 = vld [vmem:[#allocation2 + $0x108] sm:$0xff]
        %v618 = vld [vmem:[#allocation2 + $0x110] sm:$0xff]
        %v619 = vld [vmem:[#allocation2 + $0x118] sm:$0xff]
        %v620 = vld [vmem:[#allocation2 + $0x120] sm:$0xff]
        %v621 = vld [vmem:[#allocation2 + $0x128] sm:$0xff]
        %v622 = vld [vmem:[#allocation2 + $0x130] sm:$0xff]
        %v623 = vld [vmem:[#allocation2 + $0x138] sm:$0xff]
        %v624 = vld [vmem:[#allocation2 + $0x140] sm:$0xff]
        %v625 = vld [vmem:[#allocation2 + $0x148] sm:$0xff]
        %v626 = vld [vmem:[#allocation2 + $0x150] sm:$0xff]
        %v627 = vld [vmem:[#allocation2 + $0x158] sm:$0xff]
        %v628 = vld [vmem:[#allocation2 + $0x160] sm:$0xff]
        %v629 = vld [vmem:[#allocation2 + $0x168] sm:$0xff]
        %v630 = vld [vmem:[#allocation2 + $0x170] sm:$0xff]
        %v631 = vld [vmem:[#allocation2 + $0x178] sm:$0xff]
        %v632 = vld [vmem:[#allocation2 + $0x180] sm:$0xff]
        %v633 = vld [vmem:[#allocation2 + $0x188] sm:$0xff]
        %v634 = vld [vmem:[#allocation2 + $0x190] sm:$0xff]
        %v635 = vld [vmem:[#allocation2 + $0x198] sm:$0xff]
        %v636 = vld [vmem:[#allocation2 + $0x1a0] sm:$0xff]
        %v637 = vld [vmem:[#allocation2 + $0x1a8] sm:$0xff]
        %v638 = vld [vmem:[#allocation2 + $0x1b0] sm:$0xff]
        %v639 = vld [vmem:[#allocation2 + $0x1b8] sm:$0xff]
        %v640 = vld [vmem:[%s479] sm:$0xff]
        %v641 = vld [vmem:[%s479 + $0x8] sm:$0xff]
        %v642 = vld [vmem:[%s479 + $0x10] sm:$0xff]
        %v643 = vld [vmem:[%s479 + $0x18] sm:$0xff]
        %v644 = vld [vmem:[%s479 + $0x20] sm:$0xff]
        %v645 = vld [vmem:[%s479 + $0x28] sm:$0xff]
        %v646 = vld [vmem:[%s479 + $0x30] sm:$0xff]
        %v647 = vld [vmem:[%s479 + $0x38] sm:$0xff]
        %v648 = vld [vmem:[%s479 + $0x40] sm:$0xff]
        %v649 = vld [vmem:[%s479 + $0x48] sm:$0xff]
        %v650 = vld [vmem:[%s479 + $0x50] sm:$0xff]
        %v651 = vld [vmem:[%s479 + $0x58] sm:$0xff]
        %v652 = vld [vmem:[%s479 + $0x60] sm:$0xff]
        %v653 = vld [vmem:[%s479 + $0x68] sm:$0xff]
        %v654 = vld [vmem:[%s479 + $0x70] sm:$0xff]
        %v655 = vld [vmem:[%s479 + $0x78] sm:$0xff]
        %v656 = vld [vmem:[%s479 + $0x80] sm:$0xff]
        %v657 = vld [vmem:[%s479 + $0x88] sm:$0xff]
        %v658 = vld [vmem:[%s479 + $0x90] sm:$0xff]
        %v659 = vld [vmem:[%s479 + $0x98] sm:$0xff]
        %v660 = vld [vmem:[%s479 + $0xa0] sm:$0xff]
        %v661 = vld [vmem:[%s479 + $0xa8] sm:$0xff]
        %v662 = vld [vmem:[%s479 + $0xb0] sm:$0xff]
        %v663 = vld [vmem:[%s479 + $0xb8] sm:$0xff]
        %v664 = vld [vmem:[%s479 + $0xc0] sm:$0xff]
        %v665 = vld [vmem:[%s479 + $0xc8] sm:$0xff]
        %v666 = vld [vmem:[%s479 + $0xd0] sm:$0xff]
        %v667 = vld [vmem:[%s479 + $0xd8] sm:$0xff]
        %v668 = vld [vmem:[%s479 + $0xe0] sm:$0xff]
        %v669 = vld [vmem:[%s479 + $0xe8] sm:$0xff]
        %v670 = vld [vmem:[%s479 + $0xf0] sm:$0xff]
        %v671 = vld [vmem:[%s479 + $0xf8] sm:$0xff]
        %v672 = vld [vmem:[%s479 + $0x100] sm:$0xff]
        %v673 = vld [vmem:[%s479 + $0x108] sm:$0xff]
        %v674 = vld [vmem:[%s479 + $0x110] sm:$0xff]
        %v675 = vld [vmem:[%s479 + $0x118] sm:$0xff]
        %v676 = vld [vmem:[%s479 + $0x120] sm:$0xff]
        %v677 = vld [vmem:[%s479 + $0x128] sm:$0xff]
        %v678 = vld [vmem:[%s479 + $0x130] sm:$0xff]
        %v679 = vld [vmem:[%s479 + $0x138] sm:$0xff]
        %v680 = vld [vmem:[%s479 + $0x140] sm:$0xff]
        %v681 = vld [vmem:[%s479 + $0x148] sm:$0xff]
        %v682 = vld [vmem:[%s479 + $0x150] sm:$0xff]
        %v683 = vld [vmem:[%s479 + $0x158] sm:$0xff]
        %v684 = vld [vmem:[%s479 + $0x160] sm:$0xff]
        %v685 = vld [vmem:[%s479 + $0x168] sm:$0xff]
        %v686 = vld [vmem:[%s479 + $0x170] sm:$0xff]
        %v687 = vld [vmem:[%s479 + $0x178] sm:$0xff]
        %v688 = vld [vmem:[%s479 + $0x180] sm:$0xff]
        %v689 = vld [vmem:[%s479 + $0x188] sm:$0xff]
        %v690 = vld [vmem:[%s479 + $0x190] sm:$0xff]
        %v691 = vld [vmem:[%s479 + $0x198] sm:$0xff]
        %v692 = vld [vmem:[%s479 + $0x1a0] sm:$0xff]
        %v693 = vld [vmem:[%s479 + $0x1a8] sm:$0xff]
        %v694 = vld [vmem:[%s479 + $0x1b0] sm:$0xff]
        %v695 = vld [vmem:[%s479 + $0x1b8] sm:$0xff]
        %v696 = vld [vmem:[%s515] sm:$0xf]
        %v697 = vld [vmem:[%s515 + $0x4] sm:$0xf]
        %v698 = vld [vmem:[%s515 + $0x8] sm:$0xf]
        %v699 = vld [vmem:[%s515 + $0xc] sm:$0xf]
        %v700 = vld [vmem:[%s515 + $0x10] sm:$0xf]
        %v701 = vld [vmem:[%s515 + $0x14] sm:$0xf]
        %v702 = vld [vmem:[%s515 + $0x18] sm:$0xf]
        %v703 = vld [vmem:[%s515 + $0x1c] sm:$0xf]
        %v704 = vld [vmem:[%s515 + $0x20] sm:$0xf]
        %v705 = vld [vmem:[%s515 + $0x24] sm:$0xf]
        %v706 = vld [vmem:[%s515 + $0x28] sm:$0xf]
        %v707 = vld [vmem:[%s515 + $0x2c] sm:$0xf]
        %v708 = vld [vmem:[%s515 + $0x30] sm:$0xf]
        %v709 = vld [vmem:[%s515 + $0x34] sm:$0xf]
        %v710 = vld [vmem:[%s515 + $0x38] sm:$0xf]
        %v711 = vld [vmem:[%s515 + $0x3c] sm:$0xf]
        %v712 = vld [vmem:[%s515 + $0x40] sm:$0xf]
        %v713 = vld [vmem:[%s515 + $0x44] sm:$0xf]
        %v714 = vld [vmem:[%s515 + $0x48] sm:$0xf]
        %v715 = vld [vmem:[%s515 + $0x4c] sm:$0xf]
        %v716 = vld [vmem:[%s515 + $0x50] sm:$0xf]
        %v717 = vld [vmem:[%s515 + $0x54] sm:$0xf]
        %v718 = vld [vmem:[%s515 + $0x58] sm:$0xf]
        %v719 = vld [vmem:[%s515 + $0x5c] sm:$0xf]
        %v720 = vld [vmem:[%s515 + $0x60] sm:$0xf]
        %v721 = vld [vmem:[%s515 + $0x64] sm:$0xf]
        %v722 = vld [vmem:[%s515 + $0x68] sm:$0xf]
        %v723 = vld [vmem:[%s515 + $0x6c] sm:$0xf]
        %v724 = vld [vmem:[%s515 + $0x70] sm:$0xf]
        %v725 = vld [vmem:[%s515 + $0x74] sm:$0xf]
        %v726 = vld [vmem:[%s515 + $0x78] sm:$0xf]
        %v727 = vld [vmem:[%s515 + $0x7c] sm:$0xf]
        %v784 = vunpack.c.l.b16 %v640
        %v785 = vunpack.c.h.b16 %v640
        %v786 = vunpack.c.l.b16 %v641
        %v787 = vunpack.c.h.b16 %v641
        %v788 = vunpack.c.l.b16 %v642
        %v789 = vunpack.c.h.b16 %v642
        %v790 = vunpack.c.l.b16 %v643
        %v791 = vunpack.c.h.b16 %v643
        %v792 = vunpack.c.l.b16 %v644
        %v793 = vunpack.c.h.b16 %v644
        %v794 = vunpack.c.l.b16 %v645
        %v795 = vunpack.c.h.b16 %v645
        %v796 = vunpack.c.l.b16 %v646
        %v797 = vunpack.c.h.b16 %v646
        %v798 = vunpack.c.l.b16 %v647
        %v799 = vunpack.c.h.b16 %v647
        %v800 = vunpack.c.l.b16 %v648
        %v801 = vunpack.c.h.b16 %v648
        %v802 = vunpack.c.l.b16 %v649
        %v803 = vunpack.c.h.b16 %v649
        %v804 = vunpack.c.l.b16 %v650
        %v805 = vunpack.c.h.b16 %v650
        %v806 = vunpack.c.l.b16 %v651
        %v807 = vunpack.c.h.b16 %v651
        %v808 = vunpack.c.l.b16 %v652
        %v809 = vunpack.c.h.b16 %v652
        %v810 = vunpack.c.l.b16 %v653
        %v811 = vunpack.c.h.b16 %v653
        %v812 = vunpack.c.l.b16 %v654
        %v813 = vunpack.c.h.b16 %v654
        %v814 = vunpack.c.l.b16 %v655
        %v815 = vunpack.c.h.b16 %v655
        %v816 = vunpack.c.l.b16 %v656
        %v817 = vunpack.c.h.b16 %v656
        %v818 = vunpack.c.l.b16 %v657
        %v819 = vunpack.c.h.b16 %v657
        %v820 = vunpack.c.l.b16 %v658
        %v821 = vunpack.c.h.b16 %v658
        %v822 = vunpack.c.l.b16 %v659
        %v823 = vunpack.c.h.b16 %v659
        %v824 = vunpack.c.l.b16 %v660
        %v825 = vunpack.c.h.b16 %v660
        %v826 = vunpack.c.l.b16 %v661
        %v827 = vunpack.c.h.b16 %v661
        %v828 = vunpack.c.l.b16 %v662
        %v829 = vunpack.c.h.b16 %v662
        %v830 = vunpack.c.l.b16 %v663
        %v831 = vunpack.c.h.b16 %v663
        %v832 = vunpack.c.l.b16 %v664
        %v833 = vunpack.c.h.b16 %v664
        %v834 = vunpack.c.l.b16 %v665
        %v835 = vunpack.c.h.b16 %v665
        %v836 = vunpack.c.l.b16 %v666
        %v837 = vunpack.c.h.b16 %v666
        %v838 = vunpack.c.l.b16 %v667
        %v839 = vunpack.c.h.b16 %v667
        %v840 = vunpack.c.l.b16 %v668
        %v841 = vunpack.c.h.b16 %v668
        %v842 = vunpack.c.l.b16 %v669
        %v843 = vunpack.c.h.b16 %v669
        %v844 = vunpack.c.l.b16 %v670
        %v845 = vunpack.c.h.b16 %v670
        %v846 = vunpack.c.l.b16 %v671
        %v847 = vunpack.c.h.b16 %v671
        %v848 = vunpack.c.l.b16 %v672
        %v849 = vunpack.c.h.b16 %v672
        %v850 = vunpack.c.l.b16 %v673
        %v851 = vunpack.c.h.b16 %v673
        %v852 = vunpack.c.l.b16 %v674
        %v853 = vunpack.c.h.b16 %v674
        %v854 = vunpack.c.l.b16 %v675
        %v855 = vunpack.c.h.b16 %v675
        %v856 = vunpack.c.l.b16 %v676
        %v857 = vunpack.c.h.b16 %v676
        %v858 = vunpack.c.l.b16 %v677
        %v859 = vunpack.c.h.b16 %v677
        %v860 = vunpack.c.l.b16 %v678
        %v861 = vunpack.c.h.b16 %v678
        %v862 = vunpack.c.l.b16 %v679
        %v863 = vunpack.c.h.b16 %v679
        %v864 = vunpack.c.l.b16 %v680
        %v865 = vunpack.c.h.b16 %v680
        %v866 = vunpack.c.l.b16 %v681
        %v867 = vunpack.c.h.b16 %v681
        %v868 = vunpack.c.l.b16 %v682
        %v869 = vunpack.c.h.b16 %v682
        %v870 = vunpack.c.l.b16 %v683
        %v871 = vunpack.c.h.b16 %v683
        %v872 = vunpack.c.l.b16 %v684
        %v873 = vunpack.c.h.b16 %v684
        %v874 = vunpack.c.l.b16 %v685
        %v875 = vunpack.c.h.b16 %v685
        %v876 = vunpack.c.l.b16 %v686
        %v877 = vunpack.c.h.b16 %v686
        %v878 = vunpack.c.l.b16 %v687
        %v879 = vunpack.c.h.b16 %v687
        %v880 = vunpack.c.l.b16 %v688
        %v881 = vunpack.c.h.b16 %v688
        %v882 = vunpack.c.l.b16 %v689
        %v883 = vunpack.c.h.b16 %v689
        %v884 = vunpack.c.l.b16 %v690
        %v885 = vunpack.c.h.b16 %v690
        %v886 = vunpack.c.l.b16 %v691
        %v887 = vunpack.c.h.b16 %v691
        %v888 = vunpack.c.l.b16 %v692
        %v889 = vunpack.c.h.b16 %v692
        %v890 = vunpack.c.l.b16 %v693
        %v891 = vunpack.c.h.b16 %v693
        %v892 = vunpack.c.l.b16 %v694
        %v893 = vunpack.c.h.b16 %v694
        %v894 = vunpack.c.l.b16 %v695
        %v895 = vunpack.c.h.b16 %v695
        %v896 = vpack.c.b16 %v786, %v784
        %v897 = vpack.c.b16 %v787, %v785
        %v898 = vpack.c.b16 %v790, %v788
        %v899 = vpack.c.b16 %v791, %v789
        %v900 = vpack.c.b16 %v794, %v792
        %v901 = vpack.c.b16 %v795, %v793
        %v902 = vpack.c.b16 %v798, %v796
        %v903 = vpack.c.b16 %v799, %v797
        %v904 = vpack.c.b16 %v802, %v800
        %v905 = vpack.c.b16 %v803, %v801
        %v906 = vpack.c.b16 %v806, %v804
        %v907 = vpack.c.b16 %v807, %v805
        %v908 = vpack.c.b16 %v810, %v808
        %v909 = vpack.c.b16 %v811, %v809
        %v910 = vpack.c.b16 %v814, %v812
        %v911 = vpack.c.b16 %v815, %v813
        %v912 = vpack.c.b16 %v818, %v816
        %v913 = vpack.c.b16 %v819, %v817
        %v914 = vpack.c.b16 %v822, %v820
        %v915 = vpack.c.b16 %v823, %v821
        %v916 = vpack.c.b16 %v826, %v824
        %v917 = vpack.c.b16 %v827, %v825
        %v918 = vpack.c.b16 %v830, %v828
        %v919 = vpack.c.b16 %v831, %v829
        %v920 = vpack.c.b16 %v834, %v832
        %v921 = vpack.c.b16 %v835, %v833
        %v922 = vpack.c.b16 %v838, %v836
        %v923 = vpack.c.b16 %v839, %v837
        %v924 = vpack.c.b16 %v842, %v840
        %v925 = vpack.c.b16 %v843, %v841
        %v926 = vpack.c.b16 %v846, %v844
        %v927 = vpack.c.b16 %v847, %v845
        %v928 = vpack.c.b16 %v850, %v848
        %v929 = vpack.c.b16 %v851, %v849
        %v930 = vpack.c.b16 %v854, %v852
        %v931 = vpack.c.b16 %v855, %v853
        %v932 = vpack.c.b16 %v858, %v856
        %v933 = vpack.c.b16 %v859, %v857
        %v934 = vpack.c.b16 %v862, %v860
        %v935 = vpack.c.b16 %v863, %v861
        %v936 = vpack.c.b16 %v866, %v864
        %v937 = vpack.c.b16 %v867, %v865
        %v938 = vpack.c.b16 %v870, %v868
        %v939 = vpack.c.b16 %v871, %v869
        %v940 = vpack.c.b16 %v874, %v872
        %v941 = vpack.c.b16 %v875, %v873
        %v942 = vpack.c.b16 %v878, %v876
        %v943 = vpack.c.b16 %v879, %v877
        %v944 = vpack.c.b16 %v882, %v880
        %v945 = vpack.c.b16 %v883, %v881
        %v946 = vpack.c.b16 %v886, %v884
        %v947 = vpack.c.b16 %v887, %v885
        %v948 = vpack.c.b16 %v890, %v888
        %v949 = vpack.c.b16 %v891, %v889
        %v950 = vpack.c.b16 %v894, %v892
        %v951 = vpack.c.b16 %v895, %v893
        %v1040 = vunpack.c.l.b16 %v696
        %v1041 = vunpack.c.l.b16 %v697
        %v1042 = vunpack.c.l.b16 %v698
        %v1043 = vunpack.c.l.b16 %v699
        %v1044 = vunpack.c.l.b16 %v700
        %v1045 = vunpack.c.l.b16 %v701
        %v1046 = vunpack.c.l.b16 %v702
        %v1047 = vunpack.c.l.b16 %v703
        %v1048 = vunpack.c.l.b16 %v704
        %v1049 = vunpack.c.l.b16 %v705
        %v1050 = vunpack.c.l.b16 %v706
        %v1051 = vunpack.c.l.b16 %v707
        %v1052 = vunpack.c.l.b16 %v708
        %v1053 = vunpack.c.l.b16 %v709
        %v1054 = vunpack.c.l.b16 %v710
        %v1055 = vunpack.c.l.b16 %v711
        %v1056 = vunpack.c.l.b16 %v712
        %v1057 = vunpack.c.l.b16 %v713
        %v1058 = vunpack.c.l.b16 %v714
        %v1059 = vunpack.c.l.b16 %v715
        %v1060 = vunpack.c.l.b16 %v716
        %v1061 = vunpack.c.l.b16 %v717
        %v1062 = vunpack.c.l.b16 %v718
        %v1063 = vunpack.c.l.b16 %v719
        %v1064 = vunpack.c.l.b16 %v720
        %v1065 = vunpack.c.l.b16 %v721
        %v1066 = vunpack.c.l.b16 %v722
        %v1067 = vunpack.c.l.b16 %v723
        %v1068 = vunpack.c.l.b16 %v724
        %v1069 = vunpack.c.l.b16 %v725
        %v1070 = vunpack.c.l.b16 %v726
        %v1071 = vunpack.c.l.b16 %v727
        %v1072 = vpack.c.b16 %v1041, %v1040
        %v1073 = vpack.c.b16 %v1043, %v1042
        %v1074 = vpack.c.b16 %v1045, %v1044
        %v1075 = vpack.c.b16 %v1047, %v1046
        %v1076 = vpack.c.b16 %v1049, %v1048
        %v1077 = vpack.c.b16 %v1051, %v1050
        %v1078 = vpack.c.b16 %v1053, %v1052
        %v1079 = vpack.c.b16 %v1055, %v1054
        %v1080 = vpack.c.b16 %v1057, %v1056
        %v1081 = vpack.c.b16 %v1059, %v1058
        %v1082 = vpack.c.b16 %v1061, %v1060
        %v1083 = vpack.c.b16 %v1063, %v1062
        %v1084 = vpack.c.b16 %v1065, %v1064
        %v1085 = vpack.c.b16 %v1067, %v1066
        %v1086 = vpack.c.b16 %v1069, %v1068
        %v1087 = vpack.c.b16 %v1071, %v1070
        %1104 = vmatprep.subr.bf16.mxu0 0
        %1105 = vmatpush1.bf16.msra.mxu0 %v1079
        %1106 = vmatprep.subr.bf16.mxu0 0
        %1107 = vmatpush1.bf16.msra.mxu0 %v1078
        %1108 = vmatprep.subr.bf16.mxu0 0
        %1109 = vmatpush1.bf16.msra.mxu0 %v1077
        %1110 = vmatprep.subr.bf16.mxu0 0
        %1111 = vmatpush1.bf16.msra.mxu0 %v1076
        %1112 = vmatprep.subr.bf16.mxu0 0
        %1113 = vmatpush1.bf16.msra.mxu0 %v1075
        %1114 = vmatprep.subr.bf16.mxu0 0
        %1115 = vmatpush1.bf16.msra.mxu0 %v1074
        %1116 = vmatprep.subr.bf16.mxu0 0
        %1117 = vmatpush1.bf16.msra.mxu0 %v1073
        %1118 = vmatprep.subr.bf16.mxu0 0
        %1119 = vmatpush1.bf16.msra.mxu0 %v1072
        %1120 = vmatprep.subr.bf16.mxu0 0
        %1121 = vmatpush2.bf16.msra.mxu0 %v1087
        %1122 = vmatprep.subr.bf16.mxu0 0
        %1123 = vmatpush2.bf16.msra.mxu0 %v1086
        %1124 = vmatprep.subr.bf16.mxu0 0
        %1125 = vmatpush2.bf16.msra.mxu0 %v1085
        %1126 = vmatprep.subr.bf16.mxu0 0
        %1127 = vmatpush2.bf16.msra.mxu0 %v1084
        %1128 = vmatprep.subr.bf16.mxu0 0
        %1129 = vmatpush2.bf16.msra.mxu0 %v1083
        %1130 = vmatprep.subr.bf16.mxu0 0
        %1131 = vmatpush2.bf16.msra.mxu0 %v1082
        %1132 = vmatprep.subr.bf16.mxu0 0
        %1133 = vmatpush2.bf16.msra.mxu0 %v1081
        %1134 = vmatprep.subr.bf16.mxu0 0
        %1135 = vmatpush2.bf16.msra.mxu0 %v1080
        %1136 = vmatprep.mubr.bf16.mxu0 %v897
        %1137 = vmatmul.mubr.bf16.gmra.mxu0 %v896
        %v1138 = vpop.f32.mrf.mxu0
        %v1139 = vadd.f32 0.0, %v1138
        %v1140 = vpop.f32.mrf.mxu0
        %v1141 = vpop.f32.mrf.mxu0
        %v1142 = vadd.f32 0.0, %v1141
        %v1143 = vpop.f32.mrf.mxu0
        %1144 = vmatprep.mubr.bf16.mxu0 %v899
        %1145 = vmatmul.mubr.bf16.gmra.mxu0 %v898
        %v1146 = vpop.f32.mrf.mxu0
        %v1147 = vadd.f32 0.0, %v1146
        %v1148 = vpop.f32.mrf.mxu0
        %v1149 = vpop.f32.mrf.mxu0
        %v1150 = vadd.f32 0.0, %v1149
        %v1151 = vpop.f32.mrf.mxu0
        %1152 = vmatprep.mubr.bf16.mxu0 %v901
        %1153 = vmatmul.mubr.bf16.gmra.mxu0 %v900
        %v1154 = vpop.f32.mrf.mxu0
        %v1155 = vadd.f32 0.0, %v1154
        %v1156 = vpop.f32.mrf.mxu0
        %v1157 = vpop.f32.mrf.mxu0
        %v1158 = vadd.f32 0.0, %v1157
        %v1159 = vpop.f32.mrf.mxu0
        %1160 = vmatprep.mubr.bf16.mxu0 %v903
        %1161 = vmatmul.mubr.bf16.gmra.mxu0 %v902
        %v1162 = vpop.f32.mrf.mxu0
        %v1163 = vadd.f32 0.0, %v1162
        %v1164 = vpop.f32.mrf.mxu0
        %v1165 = vpop.f32.mrf.mxu0
        %v1166 = vadd.f32 0.0, %v1165
        %v1167 = vpop.f32.mrf.mxu0
        %1168 = vmatprep.mubr.bf16.mxu0 %v905
        %1169 = vmatmul.mubr.bf16.gmra.mxu0 %v904
        %v1170 = vpop.f32.mrf.mxu0
        %v1171 = vadd.f32 0.0, %v1170
        %v1172 = vpop.f32.mrf.mxu0
        %v1173 = vpop.f32.mrf.mxu0
        %v1174 = vadd.f32 0.0, %v1173
        %v1175 = vpop.f32.mrf.mxu0
        %1176 = vmatprep.mubr.bf16.mxu0 %v907
        %1177 = vmatmul.mubr.bf16.gmra.mxu0 %v906
        %v1178 = vpop.f32.mrf.mxu0
        %v1179 = vadd.f32 0.0, %v1178
        %v1180 = vpop.f32.mrf.mxu0
        %v1181 = vpop.f32.mrf.mxu0
        %v1182 = vadd.f32 0.0, %v1181
        %v1183 = vpop.f32.mrf.mxu0
        %1184 = vmatprep.mubr.bf16.mxu0 %v909
        %1185 = vmatmul.mubr.bf16.gmra.mxu0 %v908
        %v1186 = vpop.f32.mrf.mxu0
        %v1187 = vadd.f32 0.0, %v1186
        %v1188 = vpop.f32.mrf.mxu0
        %v1189 = vpop.f32.mrf.mxu0
        %v1190 = vadd.f32 0.0, %v1189
        %v1191 = vpop.f32.mrf.mxu0
        %1192 = vmatprep.mubr.bf16.mxu0 %v911
        %1193 = vmatmul.mubr.bf16.gmra.mxu0 %v910
        %v1194 = vpop.f32.mrf.mxu0
        %v1195 = vadd.f32 0.0, %v1194
        %v1196 = vpop.f32.mrf.mxu0
        %v1197 = vpop.f32.mrf.mxu0
        %v1198 = vadd.f32 0.0, %v1197
        %v1199 = vpop.f32.mrf.mxu0
        %1200 = vmatprep.mubr.bf16.mxu0 %v913
        %1201 = vmatmul.mubr.bf16.gmra.mxu0 %v912
        %v1202 = vpop.f32.mrf.mxu0
        %v1203 = vadd.f32 0.0, %v1202
        %v1204 = vpop.f32.mrf.mxu0
        %v1205 = vpop.f32.mrf.mxu0
        %v1206 = vadd.f32 0.0, %v1205
        %v1207 = vpop.f32.mrf.mxu0
        %1208 = vmatprep.mubr.bf16.mxu0 %v915
        %1209 = vmatmul.mubr.bf16.gmra.mxu0 %v914
        %v1210 = vpop.f32.mrf.mxu0
        %v1211 = vadd.f32 0.0, %v1210
        %v1212 = vpop.f32.mrf.mxu0
        %v1213 = vpop.f32.mrf.mxu0
        %v1214 = vadd.f32 0.0, %v1213
        %v1215 = vpop.f32.mrf.mxu0
        %1216 = vmatprep.mubr.bf16.mxu0 %v917
        %1217 = vmatmul.mubr.bf16.gmra.mxu0 %v916
        %v1218 = vpop.f32.mrf.mxu0
        %v1219 = vadd.f32 0.0, %v1218
        %v1220 = vpop.f32.mrf.mxu0
        %v1221 = vpop.f32.mrf.mxu0
        %v1222 = vadd.f32 0.0, %v1221
        %v1223 = vpop.f32.mrf.mxu0
        %1224 = vmatprep.mubr.bf16.mxu0 %v919
        %1225 = vmatmul.mubr.bf16.gmra.mxu0 %v918
        %v1226 = vpop.f32.mrf.mxu0
        %v1227 = vadd.f32 0.0, %v1226
        %v1228 = vpop.f32.mrf.mxu0
        %v1229 = vpop.f32.mrf.mxu0
        %v1230 = vadd.f32 0.0, %v1229
        %v1231 = vpop.f32.mrf.mxu0
        %1232 = vmatprep.mubr.bf16.mxu0 %v921
        %1233 = vmatmul.mubr.bf16.gmra.mxu0 %v920
        %v1234 = vpop.f32.mrf.mxu0
        %v1235 = vadd.f32 0.0, %v1234
        %v1236 = vpop.f32.mrf.mxu0
        %v1237 = vpop.f32.mrf.mxu0
        %v1238 = vadd.f32 0.0, %v1237
        %v1239 = vpop.f32.mrf.mxu0
        %1240 = vmatprep.mubr.bf16.mxu0 %v923
        %1241 = vmatmul.mubr.bf16.gmra.mxu0 %v922
        %v1242 = vpop.f32.mrf.mxu0
        %v1243 = vadd.f32 0.0, %v1242
        %v1244 = vpop.f32.mrf.mxu0
        %v1245 = vpop.f32.mrf.mxu0
        %v1246 = vadd.f32 0.0, %v1245
        %v1247 = vpop.f32.mrf.mxu0
        %1248 = vmatprep.mubr.bf16.mxu0 %v925
        %1249 = vmatmul.mubr.bf16.gmra.mxu0 %v924
        %v1250 = vpop.f32.mrf.mxu0
        %v1251 = vadd.f32 0.0, %v1250
        %v1252 = vpop.f32.mrf.mxu0
        %v1253 = vpop.f32.mrf.mxu0
        %v1254 = vadd.f32 0.0, %v1253
        %v1255 = vpop.f32.mrf.mxu0
        %1256 = vmatprep.mubr.bf16.mxu0 %v927
        %1257 = vmatmul.mubr.bf16.gmra.mxu0 %v926
        %v1258 = vpop.f32.mrf.mxu0
        %v1259 = vadd.f32 0.0, %v1258
        %v1260 = vpop.f32.mrf.mxu0
        %v1261 = vpop.f32.mrf.mxu0
        %v1262 = vadd.f32 0.0, %v1261
        %v1263 = vpop.f32.mrf.mxu0
        %1264 = vmatprep.mubr.bf16.mxu0 %v929
        %1265 = vmatmul.mubr.bf16.gmra.mxu0 %v928
        %v1266 = vpop.f32.mrf.mxu0
        %v1267 = vadd.f32 0.0, %v1266
        %v1268 = vpop.f32.mrf.mxu0
        %v1269 = vpop.f32.mrf.mxu0
        %v1270 = vadd.f32 0.0, %v1269
        %v1271 = vpop.f32.mrf.mxu0
        %1272 = vmatprep.mubr.bf16.mxu0 %v931
        %1273 = vmatmul.mubr.bf16.gmra.mxu0 %v930
        %v1274 = vpop.f32.mrf.mxu0
        %v1275 = vadd.f32 0.0, %v1274
        %v1276 = vpop.f32.mrf.mxu0
        %v1277 = vpop.f32.mrf.mxu0
        %v1278 = vadd.f32 0.0, %v1277
        %v1279 = vpop.f32.mrf.mxu0
        %1280 = vmatprep.mubr.bf16.mxu0 %v933
        %1281 = vmatmul.mubr.bf16.gmra.mxu0 %v932
        %v1282 = vpop.f32.mrf.mxu0
        %v1283 = vadd.f32 0.0, %v1282
        %v1284 = vpop.f32.mrf.mxu0
        %v1285 = vpop.f32.mrf.mxu0
        %v1286 = vadd.f32 0.0, %v1285
        %v1287 = vpop.f32.mrf.mxu0
        %1288 = vmatprep.mubr.bf16.mxu0 %v935
        %1289 = vmatmul.mubr.bf16.gmra.mxu0 %v934
        %v1290 = vpop.f32.mrf.mxu0
        %v1291 = vadd.f32 0.0, %v1290
        %v1292 = vpop.f32.mrf.mxu0
        %v1293 = vpop.f32.mrf.mxu0
        %v1294 = vadd.f32 0.0, %v1293
        %v1295 = vpop.f32.mrf.mxu0
        %1296 = vmatprep.mubr.bf16.mxu0 %v937
        %1297 = vmatmul.mubr.bf16.gmra.mxu0 %v936
        %v1298 = vpop.f32.mrf.mxu0
        %v1299 = vadd.f32 0.0, %v1298
        %v1300 = vpop.f32.mrf.mxu0
        %v1301 = vpop.f32.mrf.mxu0
        %v1302 = vadd.f32 0.0, %v1301
        %v1303 = vpop.f32.mrf.mxu0
        %1304 = vmatprep.mubr.bf16.mxu0 %v939
        %1305 = vmatmul.mubr.bf16.gmra.mxu0 %v938
        %v1306 = vpop.f32.mrf.mxu0
        %v1307 = vadd.f32 0.0, %v1306
        %v1308 = vpop.f32.mrf.mxu0
        %v1309 = vpop.f32.mrf.mxu0
        %v1310 = vadd.f32 0.0, %v1309
        %v1311 = vpop.f32.mrf.mxu0
        %1312 = vmatprep.mubr.bf16.mxu0 %v941
        %1313 = vmatmul.mubr.bf16.gmra.mxu0 %v940
        %v1314 = vpop.f32.mrf.mxu0
        %v1315 = vadd.f32 0.0, %v1314
        %v1316 = vpop.f32.mrf.mxu0
        %v1317 = vpop.f32.mrf.mxu0
        %v1318 = vadd.f32 0.0, %v1317
        %v1319 = vpop.f32.mrf.mxu0
        %1320 = vmatprep.mubr.bf16.mxu0 %v943
        %1321 = vmatmul.mubr.bf16.gmra.mxu0 %v942
        %v1322 = vpop.f32.mrf.mxu0
        %v1323 = vadd.f32 0.0, %v1322
        %v1324 = vpop.f32.mrf.mxu0
        %v1325 = vpop.f32.mrf.mxu0
        %v1326 = vadd.f32 0.0, %v1325
        %v1327 = vpop.f32.mrf.mxu0
        %1328 = vmatprep.mubr.bf16.mxu0 %v945
        %1329 = vmatmul.mubr.bf16.gmra.mxu0 %v944
        %v1330 = vpop.f32.mrf.mxu0
        %v1331 = vadd.f32 0.0, %v1330
        %v1332 = vpop.f32.mrf.mxu0
        %v1333 = vpop.f32.mrf.mxu0
        %v1334 = vadd.f32 0.0, %v1333
        %v1335 = vpop.f32.mrf.mxu0
        %1336 = vmatprep.mubr.bf16.mxu0 %v947
        %1337 = vmatmul.mubr.bf16.gmra.mxu0 %v946
        %v1338 = vpop.f32.mrf.mxu0
        %v1339 = vadd.f32 0.0, %v1338
        %v1340 = vpop.f32.mrf.mxu0
        %v1341 = vpop.f32.mrf.mxu0
        %v1342 = vadd.f32 0.0, %v1341
        %v1343 = vpop.f32.mrf.mxu0
        %1344 = vmatprep.mubr.bf16.mxu0 %v949
        %1345 = vmatmul.mubr.bf16.gmra.mxu0 %v948
        %v1346 = vpop.f32.mrf.mxu0
        %v1347 = vadd.f32 0.0, %v1346
        %v1348 = vpop.f32.mrf.mxu0
        %v1349 = vpop.f32.mrf.mxu0
        %v1350 = vadd.f32 0.0, %v1349
        %v1351 = vpop.f32.mrf.mxu0
        %1352 = vmatprep.mubr.bf16.mxu0 %v951
        %1353 = vmatmul.mubr.bf16.gmra.mxu0 %v950
        %v1354 = vpop.f32.mrf.mxu0
        %v1355 = vadd.f32 0.0, %v1354
        %v1356 = vpop.f32.mrf.mxu0
        %v1357 = vpop.f32.mrf.mxu0
        %v1358 = vadd.f32 0.0, %v1357
        %v1359 = vpop.f32.mrf.mxu0
        %1360 = vdwg.mxu0
        %v1361 = vadd.f32 %v584, %v1139
        %v1362 = vadd.f32 %v585, %v1142
        %v1363 = vadd.f32 %v586, %v1147
        %v1364 = vadd.f32 %v587, %v1150
        %v1365 = vadd.f32 %v588, %v1155
        %v1366 = vadd.f32 %v589, %v1158
        %v1367 = vadd.f32 %v590, %v1163
        %v1368 = vadd.f32 %v591, %v1166
        %v1369 = vadd.f32 %v592, %v1171
        %v1370 = vadd.f32 %v593, %v1174
        %v1371 = vadd.f32 %v594, %v1179
        %v1372 = vadd.f32 %v595, %v1182
        %v1373 = vadd.f32 %v596, %v1187
        %v1374 = vadd.f32 %v597, %v1190
        %v1375 = vadd.f32 %v598, %v1195
        %v1376 = vadd.f32 %v599, %v1198
        %v1377 = vadd.f32 %v600, %v1203
        %v1378 = vadd.f32 %v601, %v1206
        %v1379 = vadd.f32 %v602, %v1211
        %v1380 = vadd.f32 %v603, %v1214
        %v1381 = vadd.f32 %v604, %v1219
        %v1382 = vadd.f32 %v605, %v1222
        %v1383 = vadd.f32 %v606, %v1227
        %v1384 = vadd.f32 %v607, %v1230
        %v1385 = vadd.f32 %v608, %v1235
        %v1386 = vadd.f32 %v609, %v1238
        %v1387 = vadd.f32 %v610, %v1243
        %v1388 = vadd.f32 %v611, %v1246
        %v1389 = vadd.f32 %v612, %v1251
        %v1390 = vadd.f32 %v613, %v1254
        %v1391 = vadd.f32 %v614, %v1259
        %v1392 = vadd.f32 %v615, %v1262
        %v1393 = vadd.f32 %v616, %v1267
        %v1394 = vadd.f32 %v617, %v1270
        %v1395 = vadd.f32 %v618, %v1275
        %v1396 = vadd.f32 %v619, %v1278
        %v1397 = vadd.f32 %v620, %v1283
        %v1398 = vadd.f32 %v621, %v1286
        %v1399 = vadd.f32 %v622, %v1291
        %v1400 = vadd.f32 %v623, %v1294
        %v1401 = vadd.f32 %v624, %v1299
        %v1402 = vadd.f32 %v625, %v1302
        %v1403 = vadd.f32 %v626, %v1307
        %v1404 = vadd.f32 %v627, %v1310
        %v1405 = vadd.f32 %v628, %v1315
        %v1406 = vadd.f32 %v629, %v1318
        %v1407 = vadd.f32 %v630, %v1323
        %v1408 = vadd.f32 %v631, %v1326
        %v1409 = vadd.f32 %v632, %v1331
        %v1410 = vadd.f32 %v633, %v1334
        %v1411 = vadd.f32 %v634, %v1339
        %v1412 = vadd.f32 %v635, %v1342
        %v1413 = vadd.f32 %v636, %v1347
        %v1414 = vadd.f32 %v637, %v1350
        %v1415 = vadd.f32 %v638, %v1355
        %v1416 = vadd.f32 %v639, %v1358
        %vm1417 = vcmask 293888
        %1418 = vst.msk [vmem:[#allocation2] sm:$0xff] %vm1417, %v1361
        %1419 = vst.msk [vmem:[#allocation2 + $0x8] sm:$0xff] %vm1417, %v1362
        %1420 = vst.msk [vmem:[#allocation2 + $0x10] sm:$0xff] %vm1417, %v1363
        %1421 = vst.msk [vmem:[#allocation2 + $0x18] sm:$0xff] %vm1417, %v1364
        %1422 = vst.msk [vmem:[#allocation2 + $0x20] sm:$0xff] %vm1417, %v1365
        %1423 = vst.msk [vmem:[#allocation2 + $0x28] sm:$0xff] %vm1417, %v1366
        %1424 = vst.msk [vmem:[#allocation2 + $0x30] sm:$0xff] %vm1417, %v1367
        %1425 = vst.msk [vmem:[#allocation2 + $0x38] sm:$0xff] %vm1417, %v1368
        %1426 = vst.msk [vmem:[#allocation2 + $0x40] sm:$0xff] %vm1417, %v1369
        %1427 = vst.msk [vmem:[#allocation2 + $0x48] sm:$0xff] %vm1417, %v1370
        %1428 = vst.msk [vmem:[#allocation2 + $0x50] sm:$0xff] %vm1417, %v1371
        %1429 = vst.msk [vmem:[#allocation2 + $0x58] sm:$0xff] %vm1417, %v1372
        %1430 = vst.msk [vmem:[#allocation2 + $0x60] sm:$0xff] %vm1417, %v1373
        %1431 = vst.msk [vmem:[#allocation2 + $0x68] sm:$0xff] %vm1417, %v1374
        %1432 = vst.msk [vmem:[#allocation2 + $0x70] sm:$0xff] %vm1417, %v1375
        %1433 = vst.msk [vmem:[#allocation2 + $0x78] sm:$0xff] %vm1417, %v1376
        %1434 = vst.msk [vmem:[#allocation2 + $0x80] sm:$0xff] %vm1417, %v1377
        %1435 = vst.msk [vmem:[#allocation2 + $0x88] sm:$0xff] %vm1417, %v1378
        %1436 = vst.msk [vmem:[#allocation2 + $0x90] sm:$0xff] %vm1417, %v1379
        %1437 = vst.msk [vmem:[#allocation2 + $0x98] sm:$0xff] %vm1417, %v1380
        %1438 = vst.msk [vmem:[#allocation2 + $0xa0] sm:$0xff] %vm1417, %v1381
        %1439 = vst.msk [vmem:[#allocation2 + $0xa8] sm:$0xff] %vm1417, %v1382
        %1440 = vst.msk [vmem:[#allocation2 + $0xb0] sm:$0xff] %vm1417, %v1383
        %1441 = vst.msk [vmem:[#allocation2 + $0xb8] sm:$0xff] %vm1417, %v1384
        %1442 = vst.msk [vmem:[#allocation2 + $0xc0] sm:$0xff] %vm1417, %v1385
        %1443 = vst.msk [vmem:[#allocation2 + $0xc8] sm:$0xff] %vm1417, %v1386
        %1444 = vst.msk [vmem:[#allocation2 + $0xd0] sm:$0xff] %vm1417, %v1387
        %1445 = vst.msk [vmem:[#allocation2 + $0xd8] sm:$0xff] %vm1417, %v1388
        %1446 = vst.msk [vmem:[#allocation2 + $0xe0] sm:$0xff] %vm1417, %v1389
        %1447 = vst.msk [vmem:[#allocation2 + $0xe8] sm:$0xff] %vm1417, %v1390
        %1448 = vst.msk [vmem:[#allocation2 + $0xf0] sm:$0xff] %vm1417, %v1391
        %1449 = vst.msk [vmem:[#allocation2 + $0xf8] sm:$0xff] %vm1417, %v1392
        %1450 = vst.msk [vmem:[#allocation2 + $0x100] sm:$0xff] %vm1417, %v1393
        %1451 = vst.msk [vmem:[#allocation2 + $0x108] sm:$0xff] %vm1417, %v1394
        %1452 = vst.msk [vmem:[#allocation2 + $0x110] sm:$0xff] %vm1417, %v1395
        %1453 = vst.msk [vmem:[#allocation2 + $0x118] sm:$0xff] %vm1417, %v1396
        %1454 = vst.msk [vmem:[#allocation2 + $0x120] sm:$0xff] %vm1417, %v1397
        %1455 = vst.msk [vmem:[#allocation2 + $0x128] sm:$0xff] %vm1417, %v1398
        %1456 = vst.msk [vmem:[#allocation2 + $0x130] sm:$0xff] %vm1417, %v1399
        %1457 = vst.msk [vmem:[#allocation2 + $0x138] sm:$0xff] %vm1417, %v1400
        %1458 = vst.msk [vmem:[#allocation2 + $0x140] sm:$0xff] %vm1417, %v1401
        %1459 = vst.msk [vmem:[#allocation2 + $0x148] sm:$0xff] %vm1417, %v1402
        %1460 = vst.msk [vmem:[#allocation2 + $0x150] sm:$0xff] %vm1417, %v1403
        %1461 = vst.msk [vmem:[#allocation2 + $0x158] sm:$0xff] %vm1417, %v1404
        %1462 = vst.msk [vmem:[#allocation2 + $0x160] sm:$0xff] %vm1417, %v1405
        %1463 = vst.msk [vmem:[#allocation2 + $0x168] sm:$0xff] %vm1417, %v1406
        %1464 = vst.msk [vmem:[#allocation2 + $0x170] sm:$0xff] %vm1417, %v1407
        %1465 = vst.msk [vmem:[#allocation2 + $0x178] sm:$0xff] %vm1417, %v1408
        %1466 = vst.msk [vmem:[#allocation2 + $0x180] sm:$0xff] %vm1417, %v1409
        %1467 = vst.msk [vmem:[#allocation2 + $0x188] sm:$0xff] %vm1417, %v1410
        %1468 = vst.msk [vmem:[#allocation2 + $0x190] sm:$0xff] %vm1417, %v1411
        %1469 = vst.msk [vmem:[#allocation2 + $0x198] sm:$0xff] %vm1417, %v1412
        %1470 = vst.msk [vmem:[#allocation2 + $0x1a0] sm:$0xff] %vm1417, %v1413
        %1471 = vst.msk [vmem:[#allocation2 + $0x1a8] sm:$0xff] %vm1417, %v1414
        %1472 = vst.msk [vmem:[#allocation2 + $0x1b0] sm:$0xff] %vm1417, %v1415
        %1473 = vst.msk [vmem:[#allocation2 + $0x1b8] sm:$0xff] %vm1417, %v1416
        %p1474 = scmp.eq.s32.totalorder %s21, 3
        // Predicated region
        $region83: #{go_policy_forward.1} parent=73 // pred_check
          %p1475 = pneg %p1474
        $region84: #{go_policy_forward.1} parent=73 // pred_check_branch
          %1477 = sbr.rel (%p1475) target = $region86
        $region85: #{go_policy_forward.1} parent=73 // pred_region
          %v1478 = vld [vmem:[#allocation2 + $0x5] sm:$0xff]
          %v1479 = vld [vmem:[#allocation2 + $0xd] sm:$0xff]
          %v1480 = vld [vmem:[#allocation2 + $0x15] sm:$0xff]
          %v1481 = vld [vmem:[#allocation2 + $0x1d] sm:$0xff]
          %v1482 = vld [vmem:[#allocation2 + $0x25] sm:$0xff]
          %v1483 = vld [vmem:[#allocation2 + $0x2d] sm:$0xff]
          %v1484 = vld [vmem:[#allocation2 + $0x35] sm:$0xff]
          %v1485 = vld [vmem:[#allocation2 + $0x3d] sm:$0xff]
          %v1486 = vld [vmem:[#allocation2 + $0x45] sm:$0xff]
          %v1487 = vld [vmem:[#allocation2 + $0x4d] sm:$0xff]
          %v1488 = vld [vmem:[#allocation2 + $0x55] sm:$0xff]
          %v1489 = vld [vmem:[#allocation2 + $0x5d] sm:$0xff]
          %v1490 = vld [vmem:[#allocation2 + $0x65] sm:$0xff]
          %v1491 = vld [vmem:[#allocation2 + $0x6d] sm:$0xff]
          %v1492 = vld [vmem:[#allocation2 + $0x75] sm:$0xff]
          %v1493 = vld [vmem:[#allocation2 + $0x7d] sm:$0xff]
          %v1494 = vld [vmem:[#allocation2 + $0x85] sm:$0xff]
          %v1495 = vld [vmem:[#allocation2 + $0x8d] sm:$0xff]
          %v1496 = vld [vmem:[#allocation2 + $0x95] sm:$0xff]
          %v1497 = vld [vmem:[#allocation2 + $0x9d] sm:$0xff]
          %v1498 = vld [vmem:[#allocation2 + $0xa5] sm:$0xff]
          %v1499 = vld [vmem:[#allocation2 + $0xad] sm:$0xff]
          %v1500 = vld [vmem:[#allocation2 + $0xb5] sm:$0xff]
          %v1501 = vld [vmem:[#allocation2 + $0xbd] sm:$0xff]
          %v1502 = vld [vmem:[#allocation2 + $0xc5] sm:$0xff]
          %v1503 = vld [vmem:[#allocation2 + $0xcd] sm:$0xff]
          %v1504 = vld [vmem:[#allocation2 + $0xd5] sm:$0xff]
          %v1505 = vld [vmem:[#allocation2 + $0xdd] sm:$0xff]
          %v1506 = vld [vmem:[#allocation2 + $0xe5] sm:$0xff]
          %v1507 = vld [vmem:[#allocation2 + $0xed] sm:$0xff]
          %v1508 = vld [vmem:[#allocation2 + $0xf5] sm:$0xff]
          %v1509 = vld [vmem:[#allocation2 + $0xfd] sm:$0xff]
          %v1510 = vld [vmem:[#allocation2 + $0x105] sm:$0xff]
          %v1511 = vld [vmem:[#allocation2 + $0x10d] sm:$0xff]
          %v1512 = vld [vmem:[#allocation2 + $0x115] sm:$0xff]
          %v1513 = vld [vmem:[#allocation2 + $0x11d] sm:$0xff]
          %v1514 = vld [vmem:[#allocation2 + $0x125] sm:$0xff]
          %v1515 = vld [vmem:[#allocation2 + $0x12d] sm:$0xff]
          %v1516 = vld [vmem:[#allocation2 + $0x135] sm:$0xff]
          %v1517 = vld [vmem:[#allocation2 + $0x13d] sm:$0xff]
          %v1518 = vld [vmem:[#allocation2 + $0x145] sm:$0xff]
          %v1519 = vld [vmem:[#allocation2 + $0x14d] sm:$0xff]
          %v1520 = vld [vmem:[#allocation2 + $0x155] sm:$0xff]
          %v1521 = vld [vmem:[#allocation2 + $0x15d] sm:$0xff]
          %v1522 = vld [vmem:[#allocation2 + $0x165] sm:$0xff]
          %v1523 = vld [vmem:[#allocation2 + $0x16d] sm:$0xff]
          %v1524 = vld [vmem:[#allocation2 + $0x175] sm:$0xff]
          %v1525 = vld [vmem:[#allocation2 + $0x17d] sm:$0xff]
          %v1526 = vld [vmem:[#allocation2 + $0x185] sm:$0xff]
          %v1527 = vld [vmem:[#allocation2 + $0x18d] sm:$0xff]
          %v1528 = vld [vmem:[#allocation2 + $0x195] sm:$0xff]
          %v1529 = vld [vmem:[#allocation2 + $0x19d] sm:$0xff]
          %v1530 = vadd.f32 %v1478, 0.0
          %v1531 = vadd.f32 %v1479, 0.0
          %v1532 = vadd.f32 %v1480, 0.0
          %v1533 = vadd.f32 %v1481, 0.0
          %v1534 = vadd.f32 %v1482, 0.0
          %v1535 = vadd.f32 %v1483, 0.0
          %v1536 = vadd.f32 %v1484, 0.0
          %v1537 = vadd.f32 %v1485, 0.0
          %v1538 = vadd.f32 %v1486, 0.0
          %v1539 = vadd.f32 %v1487, 0.0
          %v1540 = vadd.f32 %v1488, 0.0
          %v1541 = vadd.f32 %v1489, 0.0
          %v1542 = vadd.f32 %v1490, 0.0
          %v1543 = vadd.f32 %v1491, 0.0
          %v1544 = vadd.f32 %v1492, 0.0
          %v1545 = vadd.f32 %v1493, 0.0
          %v1546 = vadd.f32 %v1494, 0.0
          %v1547 = vadd.f32 %v1495, 0.0
          %v1548 = vadd.f32 %v1496, 0.0
          %v1549 = vadd.f32 %v1497, 0.0
          %v1550 = vadd.f32 %v1498, 0.0
          %v1551 = vadd.f32 %v1499, 0.0
          %v1552 = vadd.f32 %v1500, 0.0
          %v1553 = vadd.f32 %v1501, 0.0
          %v1554 = vadd.f32 %v1502, 0.0
          %v1555 = vadd.f32 %v1503, 0.0
          %v1556 = vadd.f32 %v1504, 0.0
          %v1557 = vadd.f32 %v1505, 0.0
          %v1558 = vadd.f32 %v1506, 0.0
          %v1559 = vadd.f32 %v1507, 0.0
          %v1560 = vadd.f32 %v1508, 0.0
          %v1561 = vadd.f32 %v1509, 0.0
          %v1562 = vadd.f32 %v1510, 0.0
          %v1563 = vadd.f32 %v1511, 0.0
          %v1564 = vadd.f32 %v1512, 0.0
          %v1565 = vadd.f32 %v1513, 0.0
          %v1566 = vadd.f32 %v1514, 0.0
          %v1567 = vadd.f32 %v1515, 0.0
          %v1568 = vadd.f32 %v1516, 0.0
          %v1569 = vadd.f32 %v1517, 0.0
          %v1570 = vadd.f32 %v1518, 0.0
          %v1571 = vadd.f32 %v1519, 0.0
          %v1572 = vadd.f32 %v1520, 0.0
          %v1573 = vadd.f32 %v1521, 0.0
          %v1574 = vadd.f32 %v1522, 0.0
          %v1575 = vadd.f32 %v1523, 0.0
          %v1576 = vadd.f32 %v1524, 0.0
          %v1577 = vadd.f32 %v1525, 0.0
          %v1578 = vadd.f32 %v1526, 0.0
          %v1579 = vadd.f32 %v1527, 0.0
          %v1580 = vadd.f32 %v1528, 0.0
          %v1581 = vadd.f32 %v1529, 0.0
          %v1582 = vld [vmem:[#allocation2 + $0x6] sm:$0xff]
          %v1583 = vld [vmem:[#allocation2 + $0xe] sm:$0xff]
          %v1584 = vld [vmem:[#allocation2 + $0x16] sm:$0xff]
          %v1585 = vld [vmem:[#allocation2 + $0x1e] sm:$0xff]
          %v1586 = vld [vmem:[#allocation2 + $0x26] sm:$0xff]
          %v1587 = vld [vmem:[#allocation2 + $0x2e] sm:$0xff]
          %v1588 = vld [vmem:[#allocation2 + $0x36] sm:$0xff]
          %v1589 = vld [vmem:[#allocation2 + $0x3e] sm:$0xff]
          %v1590 = vld [vmem:[#allocation2 + $0x46] sm:$0xff]
          %v1591 = vld [vmem:[#allocation2 + $0x4e] sm:$0xff]
          %v1592 = vld [vmem:[#allocation2 + $0x56] sm:$0xff]
          %v1593 = vld [vmem:[#allocation2 + $0x5e] sm:$0xff]
          %v1594 = vld [vmem:[#allocation2 + $0x66] sm:$0xff]
          %v1595 = vld [vmem:[#allocation2 + $0x6e] sm:$0xff]
          %v1596 = vld [vmem:[#allocation2 + $0x76] sm:$0xff]
          %v1597 = vld [vmem:[#allocation2 + $0x7e] sm:$0xff]
          %v1598 = vld [vmem:[#allocation2 + $0x86] sm:$0xff]
          %v1599 = vld [vmem:[#allocation2 + $0x8e] sm:$0xff]
          %v1600 = vld [vmem:[#allocation2 + $0x96] sm:$0xff]
          %v1601 = vld [vmem:[#allocation2 + $0x9e] sm:$0xff]
          %v1602 = vld [vmem:[#allocation2 + $0xa6] sm:$0xff]
          %v1603 = vld [vmem:[#allocation2 + $0xae] sm:$0xff]
          %v1604 = vld [vmem:[#allocation2 + $0xb6] sm:$0xff]
          %v1605 = vld [vmem:[#allocation2 + $0xbe] sm:$0xff]
          %v1606 = vld [vmem:[#allocation2 + $0xc6] sm:$0xff]
          %v1607 = vld [vmem:[#allocation2 + $0xce] sm:$0xff]
          %v1608 = vld [vmem:[#allocation2 + $0xd6] sm:$0xff]
          %v1609 = vld [vmem:[#allocation2 + $0xde] sm:$0xff]
          %v1610 = vld [vmem:[#allocation2 + $0xe6] sm:$0xff]
          %v1611 = vld [vmem:[#allocation2 + $0xee] sm:$0xff]
          %v1612 = vld [vmem:[#allocation2 + $0xf6] sm:$0xff]
          %v1613 = vld [vmem:[#allocation2 + $0xfe] sm:$0xff]
          %v1614 = vld [vmem:[#allocation2 + $0x106] sm:$0xff]
          %v1615 = vld [vmem:[#allocation2 + $0x10e] sm:$0xff]
          %v1616 = vld [vmem:[#allocation2 + $0x116] sm:$0xff]
          %v1617 = vld [vmem:[#allocation2 + $0x11e] sm:$0xff]
          %v1618 = vld [vmem:[#allocation2 + $0x126] sm:$0xff]
          %v1619 = vld [vmem:[#allocation2 + $0x12e] sm:$0xff]
          %v1620 = vld [vmem:[#allocation2 + $0x136] sm:$0xff]
          %v1621 = vld [vmem:[#allocation2 + $0x13e] sm:$0xff]
          %v1622 = vld [vmem:[#allocation2 + $0x146] sm:$0xff]
          %v1623 = vld [vmem:[#allocation2 + $0x14e] sm:$0xff]
          %v1624 = vld [vmem:[#allocation2 + $0x156] sm:$0xff]
          %v1625 = vld [vmem:[#allocation2 + $0x15e] sm:$0xff]
          %v1626 = vld [vmem:[#allocation2 + $0x166] sm:$0xff]
          %v1627 = vld [vmem:[#allocation2 + $0x16e] sm:$0xff]
          %v1628 = vld [vmem:[#allocation2 + $0x176] sm:$0xff]
          %v1629 = vld [vmem:[#allocation2 + $0x17e] sm:$0xff]
          %v1630 = vld [vmem:[#allocation2 + $0x186] sm:$0xff]
          %v1631 = vld [vmem:[#allocation2 + $0x18e] sm:$0xff]
          %v1632 = vld [vmem:[#allocation2 + $0x196] sm:$0xff]
          %v1633 = vld [vmem:[#allocation2 + $0x19e] sm:$0xff]
          %1686 = vrot.lane.b32.xlu0 %v1582, 124
          %v1687 = vpop.permute.xlu0 %1686
          %1688 = vrot.lane.b32.xlu0 %v1583, 124
          %v1689 = vpop.permute.xlu0 %1688
          %1690 = vrot.lane.b32.xlu0 %v1584, 124
          %v1691 = vpop.permute.xlu0 %1690
          %1692 = vrot.lane.b32.xlu0 %v1585, 124
          %v1693 = vpop.permute.xlu0 %1692
          %1694 = vrot.lane.b32.xlu0 %v1586, 124
          %v1695 = vpop.permute.xlu0 %1694
          %1696 = vrot.lane.b32.xlu0 %v1587, 124
          %v1697 = vpop.permute.xlu0 %1696
          %1698 = vrot.lane.b32.xlu0 %v1588, 124
          %v1699 = vpop.permute.xlu0 %1698
          %1700 = vrot.lane.b32.xlu0 %v1589, 124
          %v1701 = vpop.permute.xlu0 %1700
          %1702 = vrot.lane.b32.xlu0 %v1590, 124
          %v1703 = vpop.permute.xlu0 %1702
          %1704 = vrot.lane.b32.xlu0 %v1591, 124
          %v1705 = vpop.permute.xlu0 %1704
          %1706 = vrot.lane.b32.xlu0 %v1592, 124
          %v1707 = vpop.permute.xlu0 %1706
          %1708 = vrot.lane.b32.xlu0 %v1593, 124
          %v1709 = vpop.permute.xlu0 %1708
          %1710 = vrot.lane.b32.xlu0 %v1594, 124
          %v1711 = vpop.permute.xlu0 %1710
          %1712 = vrot.lane.b32.xlu0 %v1595, 124
          %v1713 = vpop.permute.xlu0 %1712
          %1714 = vrot.lane.b32.xlu0 %v1596, 124
          %v1715 = vpop.permute.xlu0 %1714
          %1716 = vrot.lane.b32.xlu0 %v1597, 124
          %v1717 = vpop.permute.xlu0 %1716
          %1718 = vrot.lane.b32.xlu0 %v1598, 124
          %v1719 = vpop.permute.xlu0 %1718
          %1720 = vrot.lane.b32.xlu0 %v1599, 124
          %v1721 = vpop.permute.xlu0 %1720
          %1722 = vrot.lane.b32.xlu0 %v1600, 124
          %v1723 = vpop.permute.xlu0 %1722
          %1724 = vrot.lane.b32.xlu0 %v1601, 124
          %v1725 = vpop.permute.xlu0 %1724
          %1726 = vrot.lane.b32.xlu0 %v1602, 124
          %v1727 = vpop.permute.xlu0 %1726
          %1728 = vrot.lane.b32.xlu0 %v1603, 124
          %v1729 = vpop.permute.xlu0 %1728
          %1730 = vrot.lane.b32.xlu0 %v1604, 124
          %v1731 = vpop.permute.xlu0 %1730
          %1732 = vrot.lane.b32.xlu0 %v1605, 124
          %v1733 = vpop.permute.xlu0 %1732
          %1734 = vrot.lane.b32.xlu0 %v1606, 124
          %v1735 = vpop.permute.xlu0 %1734
          %1736 = vrot.lane.b32.xlu0 %v1607, 124
          %v1737 = vpop.permute.xlu0 %1736
          %1738 = vrot.lane.b32.xlu0 %v1608, 124
          %v1739 = vpop.permute.xlu0 %1738
          %1740 = vrot.lane.b32.xlu0 %v1609, 124
          %v1741 = vpop.permute.xlu0 %1740
          %1742 = vrot.lane.b32.xlu0 %v1610, 124
          %v1743 = vpop.permute.xlu0 %1742
          %1744 = vrot.lane.b32.xlu0 %v1611, 124
          %v1745 = vpop.permute.xlu0 %1744
          %1746 = vrot.lane.b32.xlu0 %v1612, 124
          %v1747 = vpop.permute.xlu0 %1746
          %1748 = vrot.lane.b32.xlu0 %v1613, 124
          %v1749 = vpop.permute.xlu0 %1748
          %1750 = vrot.lane.b32.xlu0 %v1614, 124
          %v1751 = vpop.permute.xlu0 %1750
          %1752 = vrot.lane.b32.xlu0 %v1615, 124
          %v1753 = vpop.permute.xlu0 %1752
          %1754 = vrot.lane.b32.xlu0 %v1616, 124
          %v1755 = vpop.permute.xlu0 %1754
          %1756 = vrot.lane.b32.xlu0 %v1617, 124
          %v1757 = vpop.permute.xlu0 %1756
          %1758 = vrot.lane.b32.xlu0 %v1618, 124
          %v1759 = vpop.permute.xlu0 %1758
          %1760 = vrot.lane.b32.xlu0 %v1619, 124
          %v1761 = vpop.permute.xlu0 %1760
          %1762 = vrot.lane.b32.xlu0 %v1620, 124
          %v1763 = vpop.permute.xlu0 %1762
          %1764 = vrot.lane.b32.xlu0 %v1621, 124
          %v1765 = vpop.permute.xlu0 %1764
          %1766 = vrot.lane.b32.xlu0 %v1622, 124
          %v1767 = vpop.permute.xlu0 %1766
          %1768 = vrot.lane.b32.xlu0 %v1623, 124
          %v1769 = vpop.permute.xlu0 %1768
          %1770 = vrot.lane.b32.xlu0 %v1624, 124
          %v1771 = vpop.permute.xlu0 %1770
          %1772 = vrot.lane.b32.xlu0 %v1625, 124
          %v1773 = vpop.permute.xlu0 %1772
          %1774 = vrot.lane.b32.xlu0 %v1626, 124
          %v1775 = vpop.permute.xlu0 %1774
          %1776 = vrot.lane.b32.xlu0 %v1627, 124
          %v1777 = vpop.permute.xlu0 %1776
          %1778 = vrot.lane.b32.xlu0 %v1628, 124
          %v1779 = vpop.permute.xlu0 %1778
          %1780 = vrot.lane.b32.xlu0 %v1629, 124
          %v1781 = vpop.permute.xlu0 %1780
          %1782 = vrot.lane.b32.xlu0 %v1630, 124
          %v1783 = vpop.permute.xlu0 %1782
          %1784 = vrot.lane.b32.xlu0 %v1631, 124
          %v1785 = vpop.permute.xlu0 %1784
          %1786 = vrot.lane.b32.xlu0 %v1632, 124
          %v1787 = vpop.permute.xlu0 %1786
          %1788 = vrot.lane.b32.xlu0 %v1633, 124
          %v1789 = vpop.permute.xlu0 %1788
          %v1842 = vadd.f32 %v1530, %v1687
          %v1843 = vadd.f32 %v1531, %v1689
          %v1844 = vadd.f32 %v1532, %v1691
          %v1845 = vadd.f32 %v1533, %v1693
          %v1846 = vadd.f32 %v1534, %v1695
          %v1847 = vadd.f32 %v1535, %v1697
          %v1848 = vadd.f32 %v1536, %v1699
          %v1849 = vadd.f32 %v1537, %v1701
          %v1850 = vadd.f32 %v1538, %v1703
          %v1851 = vadd.f32 %v1539, %v1705
          %v1852 = vadd.f32 %v1540, %v1707
          %v1853 = vadd.f32 %v1541, %v1709
          %v1854 = vadd.f32 %v1542, %v1711
          %v1855 = vadd.f32 %v1543, %v1713
          %v1856 = vadd.f32 %v1544, %v1715
          %v1857 = vadd.f32 %v1545, %v1717
          %v1858 = vadd.f32 %v1546, %v1719
          %v1859 = vadd.f32 %v1547, %v1721
          %v1860 = vadd.f32 %v1548, %v1723
          %v1861 = vadd.f32 %v1549, %v1725
          %v1862 = vadd.f32 %v1550, %v1727
          %v1863 = vadd.f32 %v1551, %v1729
          %v1864 = vadd.f32 %v1552, %v1731
          %v1865 = vadd.f32 %v1553, %v1733
          %v1866 = vadd.f32 %v1554, %v1735
          %v1867 = vadd.f32 %v1555, %v1737
          %v1868 = vadd.f32 %v1556, %v1739
          %v1869 = vadd.f32 %v1557, %v1741
          %v1870 = vadd.f32 %v1558, %v1743
          %v1871 = vadd.f32 %v1559, %v1745
          %v1872 = vadd.f32 %v1560, %v1747
          %v1873 = vadd.f32 %v1561, %v1749
          %v1874 = vadd.f32 %v1562, %v1751
          %v1875 = vadd.f32 %v1563, %v1753
          %v1876 = vadd.f32 %v1564, %v1755
          %v1877 = vadd.f32 %v1565, %v1757
          %v1878 = vadd.f32 %v1566, %v1759
          %v1879 = vadd.f32 %v1567, %v1761
          %v1880 = vadd.f32 %v1568, %v1763
          %v1881 = vadd.f32 %v1569, %v1765
          %v1882 = vadd.f32 %v1570, %v1767
          %v1883 = vadd.f32 %v1571, %v1769
          %v1884 = vadd.f32 %v1572, %v1771
          %v1885 = vadd.f32 %v1573, %v1773
          %v1886 = vadd.f32 %v1574, %v1775
          %v1887 = vadd.f32 %v1575, %v1777
          %v1888 = vadd.f32 %v1576, %v1779
          %v1889 = vadd.f32 %v1577, %v1781
          %v1890 = vadd.f32 %v1578, %v1783
          %v1891 = vadd.f32 %v1579, %v1785
          %v1892 = vadd.f32 %v1580, %v1787
          %v1893 = vadd.f32 %v1581, %v1789
          %v1894 = vld [vmem:[#allocation2 + $0x7] sm:$0xff]
          %v1895 = vld [vmem:[#allocation2 + $0xf] sm:$0xff]
          %v1896 = vld [vmem:[#allocation2 + $0x17] sm:$0xff]
          %v1897 = vld [vmem:[#allocation2 + $0x1f] sm:$0xff]
          %v1898 = vld [vmem:[#allocation2 + $0x27] sm:$0xff]
          %v1899 = vld [vmem:[#allocation2 + $0x2f] sm:$0xff]
          %v1900 = vld [vmem:[#allocation2 + $0x37] sm:$0xff]
          %v1901 = vld [vmem:[#allocation2 + $0x3f] sm:$0xff]
          %v1902 = vld [vmem:[#allocation2 + $0x47] sm:$0xff]
          %v1903 = vld [vmem:[#allocation2 + $0x4f] sm:$0xff]
          %v1904 = vld [vmem:[#allocation2 + $0x57] sm:$0xff]
          %v1905 = vld [vmem:[#allocation2 + $0x5f] sm:$0xff]
          %v1906 = vld [vmem:[#allocation2 + $0x67] sm:$0xff]
          %v1907 = vld [vmem:[#allocation2 + $0x6f] sm:$0xff]
          %v1908 = vld [vmem:[#allocation2 + $0x77] sm:$0xff]
          %v1909 = vld [vmem:[#allocation2 + $0x7f] sm:$0xff]
          %v1910 = vld [vmem:[#allocation2 + $0x87] sm:$0xff]
          %v1911 = vld [vmem:[#allocation2 + $0x8f] sm:$0xff]
          %v1912 = vld [vmem:[#allocation2 + $0x97] sm:$0xff]
          %v1913 = vld [vmem:[#allocation2 + $0x9f] sm:$0xff]
          %v1914 = vld [vmem:[#allocation2 + $0xa7] sm:$0xff]
          %v1915 = vld [vmem:[#allocation2 + $0xaf] sm:$0xff]
          %v1916 = vld [vmem:[#allocation2 + $0xb7] sm:$0xff]
          %v1917 = vld [vmem:[#allocation2 + $0xbf] sm:$0xff]
          %v1918 = vld [vmem:[#allocation2 + $0xc7] sm:$0xff]
          %v1919 = vld [vmem:[#allocation2 + $0xcf] sm:$0xff]
          %v1920 = vld [vmem:[#allocation2 + $0xd7] sm:$0xff]
          %v1921 = vld [vmem:[#allocation2 + $0xdf] sm:$0xff]
          %v1922 = vld [vmem:[#allocation2 + $0xe7] sm:$0xff]
          %v1923 = vld [vmem:[#allocation2 + $0xef] sm:$0xff]
          %v1924 = vld [vmem:[#allocation2 + $0xf7] sm:$0xff]
          %v1925 = vld [vmem:[#allocation2 + $0xff] sm:$0xff]
          %v1926 = vld [vmem:[#allocation2 + $0x107] sm:$0xff]
          %v1927 = vld [vmem:[#allocation2 + $0x10f] sm:$0xff]
          %v1928 = vld [vmem:[#allocation2 + $0x117] sm:$0xff]
          %v1929 = vld [vmem:[#allocation2 + $0x11f] sm:$0xff]
          %v1930 = vld [vmem:[#allocation2 + $0x127] sm:$0xff]
          %v1931 = vld [vmem:[#allocation2 + $0x12f] sm:$0xff]
          %v1932 = vld [vmem:[#allocation2 + $0x137] sm:$0xff]
          %v1933 = vld [vmem:[#allocation2 + $0x13f] sm:$0xff]
          %v1934 = vld [vmem:[#allocation2 + $0x147] sm:$0xff]
          %v1935 = vld [vmem:[#allocation2 + $0x14f] sm:$0xff]
          %v1936 = vld [vmem:[#allocation2 + $0x157] sm:$0xff]
          %v1937 = vld [vmem:[#allocation2 + $0x15f] sm:$0xff]
          %v1938 = vld [vmem:[#allocation2 + $0x167] sm:$0xff]
          %v1939 = vld [vmem:[#allocation2 + $0x16f] sm:$0xff]
          %v1940 = vld [vmem:[#allocation2 + $0x177] sm:$0xff]
          %v1941 = vld [vmem:[#allocation2 + $0x17f] sm:$0xff]
          %v1942 = vld [vmem:[#allocation2 + $0x187] sm:$0xff]
          %v1943 = vld [vmem:[#allocation2 + $0x18f] sm:$0xff]
          %v1944 = vld [vmem:[#allocation2 + $0x197] sm:$0xff]
          %v1945 = vld [vmem:[#allocation2 + $0x19f] sm:$0xff]
          %1998 = vrot.lane.b32.xlu0 %v1894, 120
          %v1999 = vpop.permute.xlu0 %1998
          %2000 = vrot.lane.b32.xlu0 %v1895, 120
          %v2001 = vpop.permute.xlu0 %2000
          %2002 = vrot.lane.b32.xlu0 %v1896, 120
          %v2003 = vpop.permute.xlu0 %2002
          %2004 = vrot.lane.b32.xlu0 %v1897, 120
          %v2005 = vpop.permute.xlu0 %2004
          %2006 = vrot.lane.b32.xlu0 %v1898, 120
          %v2007 = vpop.permute.xlu0 %2006
          %2008 = vrot.lane.b32.xlu0 %v1899, 120
          %v2009 = vpop.permute.xlu0 %2008
          %2010 = vrot.lane.b32.xlu0 %v1900, 120
          %v2011 = vpop.permute.xlu0 %2010
          %2012 = vrot.lane.b32.xlu0 %v1901, 120
          %v2013 = vpop.permute.xlu0 %2012
          %2014 = vrot.lane.b32.xlu0 %v1902, 120
          %v2015 = vpop.permute.xlu0 %2014
          %2016 = vrot.lane.b32.xlu0 %v1903, 120
          %v2017 = vpop.permute.xlu0 %2016
          %2018 = vrot.lane.b32.xlu0 %v1904, 120
          %v2019 = vpop.permute.xlu0 %2018
          %2020 = vrot.lane.b32.xlu0 %v1905, 120
          %v2021 = vpop.permute.xlu0 %2020
          %2022 = vrot.lane.b32.xlu0 %v1906, 120
          %v2023 = vpop.permute.xlu0 %2022
          %2024 = vrot.lane.b32.xlu0 %v1907, 120
          %v2025 = vpop.permute.xlu0 %2024
          %2026 = vrot.lane.b32.xlu0 %v1908, 120
          %v2027 = vpop.permute.xlu0 %2026
          %2028 = vrot.lane.b32.xlu0 %v1909, 120
          %v2029 = vpop.permute.xlu0 %2028
          %2030 = vrot.lane.b32.xlu0 %v1910, 120
          %v2031 = vpop.permute.xlu0 %2030
          %2032 = vrot.lane.b32.xlu0 %v1911, 120
          %v2033 = vpop.permute.xlu0 %2032
          %2034 = vrot.lane.b32.xlu0 %v1912, 120
          %v2035 = vpop.permute.xlu0 %2034
          %2036 = vrot.lane.b32.xlu0 %v1913, 120
          %v2037 = vpop.permute.xlu0 %2036
          %2038 = vrot.lane.b32.xlu0 %v1914, 120
          %v2039 = vpop.permute.xlu0 %2038
          %2040 = vrot.lane.b32.xlu0 %v1915, 120
          %v2041 = vpop.permute.xlu0 %2040
          %2042 = vrot.lane.b32.xlu0 %v1916, 120
          %v2043 = vpop.permute.xlu0 %2042
          %2044 = vrot.lane.b32.xlu0 %v1917, 120
          %v2045 = vpop.permute.xlu0 %2044
          %2046 = vrot.lane.b32.xlu0 %v1918, 120
          %v2047 = vpop.permute.xlu0 %2046
          %2048 = vrot.lane.b32.xlu0 %v1919, 120
          %v2049 = vpop.permute.xlu0 %2048
          %2050 = vrot.lane.b32.xlu0 %v1920, 120
          %v2051 = vpop.permute.xlu0 %2050
          %2052 = vrot.lane.b32.xlu0 %v1921, 120
          %v2053 = vpop.permute.xlu0 %2052
          %2054 = vrot.lane.b32.xlu0 %v1922, 120
          %v2055 = vpop.permute.xlu0 %2054
          %2056 = vrot.lane.b32.xlu0 %v1923, 120
          %v2057 = vpop.permute.xlu0 %2056
          %2058 = vrot.lane.b32.xlu0 %v1924, 120
          %v2059 = vpop.permute.xlu0 %2058
          %2060 = vrot.lane.b32.xlu0 %v1925, 120
          %v2061 = vpop.permute.xlu0 %2060
          %2062 = vrot.lane.b32.xlu0 %v1926, 120
          %v2063 = vpop.permute.xlu0 %2062
          %2064 = vrot.lane.b32.xlu0 %v1927, 120
          %v2065 = vpop.permute.xlu0 %2064
          %2066 = vrot.lane.b32.xlu0 %v1928, 120
          %v2067 = vpop.permute.xlu0 %2066
          %2068 = vrot.lane.b32.xlu0 %v1929, 120
          %v2069 = vpop.permute.xlu0 %2068
          %2070 = vrot.lane.b32.xlu0 %v1930, 120
          %v2071 = vpop.permute.xlu0 %2070
          %2072 = vrot.lane.b32.xlu0 %v1931, 120
          %v2073 = vpop.permute.xlu0 %2072
          %2074 = vrot.lane.b32.xlu0 %v1932, 120
          %v2075 = vpop.permute.xlu0 %2074
          %2076 = vrot.lane.b32.xlu0 %v1933, 120
          %v2077 = vpop.permute.xlu0 %2076
          %2078 = vrot.lane.b32.xlu0 %v1934, 120
          %v2079 = vpop.permute.xlu0 %2078
          %2080 = vrot.lane.b32.xlu0 %v1935, 120
          %v2081 = vpop.permute.xlu0 %2080
          %2082 = vrot.lane.b32.xlu0 %v1936, 120
          %v2083 = vpop.permute.xlu0 %2082
          %2084 = vrot.lane.b32.xlu0 %v1937, 120
          %v2085 = vpop.permute.xlu0 %2084
          %2086 = vrot.lane.b32.xlu0 %v1938, 120
          %v2087 = vpop.permute.xlu0 %2086
          %2088 = vrot.lane.b32.xlu0 %v1939, 120
          %v2089 = vpop.permute.xlu0 %2088
          %2090 = vrot.lane.b32.xlu0 %v1940, 120
          %v2091 = vpop.permute.xlu0 %2090
          %2092 = vrot.lane.b32.xlu0 %v1941, 120
          %v2093 = vpop.permute.xlu0 %2092
          %2094 = vrot.lane.b32.xlu0 %v1942, 120
          %v2095 = vpop.permute.xlu0 %2094
          %2096 = vrot.lane.b32.xlu0 %v1943, 120
          %v2097 = vpop.permute.xlu0 %2096
          %2098 = vrot.lane.b32.xlu0 %v1944, 120
          %v2099 = vpop.permute.xlu0 %2098
          %2100 = vrot.lane.b32.xlu0 %v1945, 120
          %v2101 = vpop.permute.xlu0 %2100
          %v2154 = vadd.f32 %v1842, %v1999
          %v2155 = vadd.f32 %v1843, %v2001
          %v2156 = vadd.f32 %v1844, %v2003
          %v2157 = vadd.f32 %v1845, %v2005
          %v2158 = vadd.f32 %v1846, %v2007
          %v2159 = vadd.f32 %v1847, %v2009
          %v2160 = vadd.f32 %v1848, %v2011
          %v2161 = vadd.f32 %v1849, %v2013
          %v2162 = vadd.f32 %v1850, %v2015
          %v2163 = vadd.f32 %v1851, %v2017
          %v2164 = vadd.f32 %v1852, %v2019
          %v2165 = vadd.f32 %v1853, %v2021
          %v2166 = vadd.f32 %v1854, %v2023
          %v2167 = vadd.f32 %v1855, %v2025
          %v2168 = vadd.f32 %v1856, %v2027
          %v2169 = vadd.f32 %v1857, %v2029
          %v2170 = vadd.f32 %v1858, %v2031
          %v2171 = vadd.f32 %v1859, %v2033
          %v2172 = vadd.f32 %v1860, %v2035
          %v2173 = vadd.f32 %v1861, %v2037
          %v2174 = vadd.f32 %v1862, %v2039
          %v2175 = vadd.f32 %v1863, %v2041
          %v2176 = vadd.f32 %v1864, %v2043
          %v2177 = vadd.f32 %v1865, %v2045
          %v2178 = vadd.f32 %v1866, %v2047
          %v2179 = vadd.f32 %v1867, %v2049
          %v2180 = vadd.f32 %v1868, %v2051
          %v2181 = vadd.f32 %v1869, %v2053
          %v2182 = vadd.f32 %v1870, %v2055
          %v2183 = vadd.f32 %v1871, %v2057
          %v2184 = vadd.f32 %v1872, %v2059
          %v2185 = vadd.f32 %v1873, %v2061
          %v2186 = vadd.f32 %v1874, %v2063
          %v2187 = vadd.f32 %v1875, %v2065
          %v2188 = vadd.f32 %v1876, %v2067
          %v2189 = vadd.f32 %v1877, %v2069
          %v2190 = vadd.f32 %v1878, %v2071
          %v2191 = vadd.f32 %v1879, %v2073
          %v2192 = vadd.f32 %v1880, %v2075
          %v2193 = vadd.f32 %v1881, %v2077
          %v2194 = vadd.f32 %v1882, %v2079
          %v2195 = vadd.f32 %v1883, %v2081
          %v2196 = vadd.f32 %v1884, %v2083
          %v2197 = vadd.f32 %v1885, %v2085
          %v2198 = vadd.f32 %v1886, %v2087
          %v2199 = vadd.f32 %v1887, %v2089
          %v2200 = vadd.f32 %v1888, %v2091
          %v2201 = vadd.f32 %v1889, %v2093
          %v2202 = vadd.f32 %v1890, %v2095
          %v2203 = vadd.f32 %v1891, %v2097
          %v2204 = vadd.f32 %v1892, %v2099
          %v2205 = vadd.f32 %v1893, %v2101
          %v2206 = vld [vmem:[#allocation2 + $0x1a7] sm:$0xff]
          %2208 = vrot.lane.b32.xlu0 %v1895, 116
          %v2209 = vpop.permute.xlu0 %2208
          %2210 = vrot.lane.b32.xlu0 %v1896, 116
          %v2211 = vpop.permute.xlu0 %2210
          %2212 = vrot.lane.b32.xlu0 %v1897, 116
          %v2213 = vpop.permute.xlu0 %2212
          %2214 = vrot.lane.b32.xlu0 %v1898, 116
          %v2215 = vpop.permute.xlu0 %2214
          %2216 = vrot.lane.b32.xlu0 %v1899, 116
          %v2217 = vpop.permute.xlu0 %2216
          %2218 = vrot.lane.b32.xlu0 %v1900, 116
          %v2219 = vpop.permute.xlu0 %2218
          %2220 = vrot.lane.b32.xlu0 %v1901, 116
          %v2221 = vpop.permute.xlu0 %2220
          %2222 = vrot.lane.b32.xlu0 %v1902, 116
          %v2223 = vpop.permute.xlu0 %2222
          %2224 = vrot.lane.b32.xlu0 %v1903, 116
          %v2225 = vpop.permute.xlu0 %2224
          %2226 = vrot.lane.b32.xlu0 %v1904, 116
          %v2227 = vpop.permute.xlu0 %2226
          %2228 = vrot.lane.b32.xlu0 %v1905, 116
          %v2229 = vpop.permute.xlu0 %2228
          %2230 = vrot.lane.b32.xlu0 %v1906, 116
          %v2231 = vpop.permute.xlu0 %2230
          %2232 = vrot.lane.b32.xlu0 %v1907, 116
          %v2233 = vpop.permute.xlu0 %2232
          %2234 = vrot.lane.b32.xlu0 %v1908, 116
          %v2235 = vpop.permute.xlu0 %2234
          %2236 = vrot.lane.b32.xlu0 %v1909, 116
          %v2237 = vpop.permute.xlu0 %2236
          %2238 = vrot.lane.b32.xlu0 %v1910, 116
          %v2239 = vpop.permute.xlu0 %2238
          %2240 = vrot.lane.b32.xlu0 %v1911, 116
          %v2241 = vpop.permute.xlu0 %2240
          %2242 = vrot.lane.b32.xlu0 %v1912, 116
          %v2243 = vpop.permute.xlu0 %2242
          %2244 = vrot.lane.b32.xlu0 %v1913, 116
          %v2245 = vpop.permute.xlu0 %2244
          %2246 = vrot.lane.b32.xlu0 %v1914, 116
          %v2247 = vpop.permute.xlu0 %2246
          %2248 = vrot.lane.b32.xlu0 %v1915, 116
          %v2249 = vpop.permute.xlu0 %2248
          %2250 = vrot.lane.b32.xlu0 %v1916, 116
          %v2251 = vpop.permute.xlu0 %2250
          %2252 = vrot.lane.b32.xlu0 %v1917, 116
          %v2253 = vpop.permute.xlu0 %2252
          %2254 = vrot.lane.b32.xlu0 %v1918, 116
          %v2255 = vpop.permute.xlu0 %2254
          %2256 = vrot.lane.b32.xlu0 %v1919, 116
          %v2257 = vpop.permute.xlu0 %2256
          %2258 = vrot.lane.b32.xlu0 %v1920, 116
          %v2259 = vpop.permute.xlu0 %2258
          %2260 = vrot.lane.b32.xlu0 %v1921, 116
          %v2261 = vpop.permute.xlu0 %2260
          %2262 = vrot.lane.b32.xlu0 %v1922, 116
          %v2263 = vpop.permute.xlu0 %2262
          %2264 = vrot.lane.b32.xlu0 %v1923, 116
          %v2265 = vpop.permute.xlu0 %2264
          %2266 = vrot.lane.b32.xlu0 %v1924, 116
          %v2267 = vpop.permute.xlu0 %2266
          %2268 = vrot.lane.b32.xlu0 %v1925, 116
          %v2269 = vpop.permute.xlu0 %2268
          %2270 = vrot.lane.b32.xlu0 %v1926, 116
          %v2271 = vpop.permute.xlu0 %2270
          %2272 = vrot.lane.b32.xlu0 %v1927, 116
          %v2273 = vpop.permute.xlu0 %2272
          %2274 = vrot.lane.b32.xlu0 %v1928, 116
          %v2275 = vpop.permute.xlu0 %2274
          %2276 = vrot.lane.b32.xlu0 %v1929, 116
          %v2277 = vpop.permute.xlu0 %2276
          %2278 = vrot.lane.b32.xlu0 %v1930, 116
          %v2279 = vpop.permute.xlu0 %2278
          %2280 = vrot.lane.b32.xlu0 %v1931, 116
          %v2281 = vpop.permute.xlu0 %2280
          %2282 = vrot.lane.b32.xlu0 %v1932, 116
          %v2283 = vpop.permute.xlu0 %2282
          %2284 = vrot.lane.b32.xlu0 %v1933, 116
          %v2285 = vpop.permute.xlu0 %2284
          %2286 = vrot.lane.b32.xlu0 %v1934, 116
          %v2287 = vpop.permute.xlu0 %2286
          %2288 = vrot.lane.b32.xlu0 %v1935, 116
          %v2289 = vpop.permute.xlu0 %2288
          %2290 = vrot.lane.b32.xlu0 %v1936, 116
          %v2291 = vpop.permute.xlu0 %2290
          %2292 = vrot.lane.b32.xlu0 %v1937, 116
          %v2293 = vpop.permute.xlu0 %2292
          %2294 = vrot.lane.b32.xlu0 %v1938, 116
          %v2295 = vpop.permute.xlu0 %2294
          %2296 = vrot.lane.b32.xlu0 %v1939, 116
          %v2297 = vpop.permute.xlu0 %2296
          %2298 = vrot.lane.b32.xlu0 %v1940, 116
          %v2299 = vpop.permute.xlu0 %2298
          %2300 = vrot.lane.b32.xlu0 %v1941, 116
          %v2301 = vpop.permute.xlu0 %2300
          %2302 = vrot.lane.b32.xlu0 %v1942, 116
          %v2303 = vpop.permute.xlu0 %2302
          %2304 = vrot.lane.b32.xlu0 %v1943, 116
          %v2305 = vpop.permute.xlu0 %2304
          %2306 = vrot.lane.b32.xlu0 %v1944, 116
          %v2307 = vpop.permute.xlu0 %2306
          %2308 = vrot.lane.b32.xlu0 %v1945, 116
          %v2309 = vpop.permute.xlu0 %2308
          %2310 = vrot.lane.b32.xlu0 %v2206, 116
          %v2311 = vpop.permute.xlu0 %2310
          %v2364 = vadd.f32 %v2154, %v2209
          %v2365 = vadd.f32 %v2155, %v2211
          %v2366 = vadd.f32 %v2156, %v2213
          %v2367 = vadd.f32 %v2157, %v2215
          %v2368 = vadd.f32 %v2158, %v2217
          %v2369 = vadd.f32 %v2159, %v2219
          %v2370 = vadd.f32 %v2160, %v2221
          %v2371 = vadd.f32 %v2161, %v2223
          %v2372 = vadd.f32 %v2162, %v2225
          %v2373 = vadd.f32 %v2163, %v2227
          %v2374 = vadd.f32 %v2164, %v2229
          %v2375 = vadd.f32 %v2165, %v2231
          %v2376 = vadd.f32 %v2166, %v2233
          %v2377 = vadd.f32 %v2167, %v2235
          %v2378 = vadd.f32 %v2168, %v2237
          %v2379 = vadd.f32 %v2169, %v2239
          %v2380 = vadd.f32 %v2170, %v2241
          %v2381 = vadd.f32 %v2171, %v2243
          %v2382 = vadd.f32 %v2172, %v2245
          %v2383 = vadd.f32 %v2173, %v2247
          %v2384 = vadd.f32 %v2174, %v2249
          %v2385 = vadd.f32 %v2175, %v2251
          %v2386 = vadd.f32 %v2176, %v2253
          %v2387 = vadd.f32 %v2177, %v2255
          %v2388 = vadd.f32 %v2178, %v2257
          %v2389 = vadd.f32 %v2179, %v2259
          %v2390 = vadd.f32 %v2180, %v2261
          %v2391 = vadd.f32 %v2181, %v2263
          %v2392 = vadd.f32 %v2182, %v2265
          %v2393 = vadd.f32 %v2183, %v2267
          %v2394 = vadd.f32 %v2184, %v2269
          %v2395 = vadd.f32 %v2185, %v2271
          %v2396 = vadd.f32 %v2186, %v2273
          %v2397 = vadd.f32 %v2187, %v2275
          %v2398 = vadd.f32 %v2188, %v2277
          %v2399 = vadd.f32 %v2189, %v2279
          %v2400 = vadd.f32 %v2190, %v2281
          %v2401 = vadd.f32 %v2191, %v2283
          %v2402 = vadd.f32 %v2192, %v2285
          %v2403 = vadd.f32 %v2193, %v2287
          %v2404 = vadd.f32 %v2194, %v2289
          %v2405 = vadd.f32 %v2195, %v2291
          %v2406 = vadd.f32 %v2196, %v2293
          %v2407 = vadd.f32 %v2197, %v2295
          %v2408 = vadd.f32 %v2198, %v2297
          %v2409 = vadd.f32 %v2199, %v2299
          %v2410 = vadd.f32 %v2200, %v2301
          %v2411 = vadd.f32 %v2201, %v2303
          %v2412 = vadd.f32 %v2202, %v2305
          %v2413 = vadd.f32 %v2203, %v2307
          %v2414 = vadd.f32 %v2204, %v2309
          %v2415 = vadd.f32 %v2205, %v2311
          %v2416 = vld [vmem:[#allocation2 + $0x10] sm:$0xff]
          %v2417 = vld [vmem:[#allocation2 + $0x18] sm:$0xff]
          %v2418 = vld [vmem:[#allocation2 + $0x20] sm:$0xff]
          %v2419 = vld [vmem:[#allocation2 + $0x28] sm:$0xff]
          %v2420 = vld [vmem:[#allocation2 + $0x30] sm:$0xff]
          %v2421 = vld [vmem:[#allocation2 + $0x38] sm:$0xff]
          %v2422 = vld [vmem:[#allocation2 + $0x40] sm:$0xff]
          %v2423 = vld [vmem:[#allocation2 + $0x48] sm:$0xff]
          %v2424 = vld [vmem:[#allocation2 + $0x50] sm:$0xff]
          %v2425 = vld [vmem:[#allocation2 + $0x58] sm:$0xff]
          %v2426 = vld [vmem:[#allocation2 + $0x60] sm:$0xff]
          %v2427 = vld [vmem:[#allocation2 + $0x68] sm:$0xff]
          %v2428 = vld [vmem:[#allocation2 + $0x70] sm:$0xff]
          %v2429 = vld [vmem:[#allocation2 + $0x78] sm:$0xff]
          %v2430 = vld [vmem:[#allocation2 + $0x80] sm:$0xff]
          %v2431 = vld [vmem:[#allocation2 + $0x88] sm:$0xff]
          %v2432 = vld [vmem:[#allocation2 + $0x90] sm:$0xff]
          %v2433 = vld [vmem:[#allocation2 + $0x98] sm:$0xff]
          %v2434 = vld [vmem:[#allocation2 + $0xa0] sm:$0xff]
          %v2435 = vld [vmem:[#allocation2 + $0xa8] sm:$0xff]
          %v2436 = vld [vmem:[#allocation2 + $0xb0] sm:$0xff]
          %v2437 = vld [vmem:[#allocation2 + $0xb8] sm:$0xff]
          %v2438 = vld [vmem:[#allocation2 + $0xc0] sm:$0xff]
          %v2439 = vld [vmem:[#allocation2 + $0xc8] sm:$0xff]
          %v2440 = vld [vmem:[#allocation2 + $0xd0] sm:$0xff]
          %v2441 = vld [vmem:[#allocation2 + $0xd8] sm:$0xff]
          %v2442 = vld [vmem:[#allocation2 + $0xe0] sm:$0xff]
          %v2443 = vld [vmem:[#allocation2 + $0xe8] sm:$0xff]
          %v2444 = vld [vmem:[#allocation2 + $0xf0] sm:$0xff]
          %v2445 = vld [vmem:[#allocation2 + $0xf8] sm:$0xff]
          %v2446 = vld [vmem:[#allocation2 + $0x100] sm:$0xff]
          %v2447 = vld [vmem:[#allocation2 + $0x108] sm:$0xff]
          %v2448 = vld [vmem:[#allocation2 + $0x110] sm:$0xff]
          %v2449 = vld [vmem:[#allocation2 + $0x118] sm:$0xff]
          %v2450 = vld [vmem:[#allocation2 + $0x120] sm:$0xff]
          %v2451 = vld [vmem:[#allocation2 + $0x128] sm:$0xff]
          %v2452 = vld [vmem:[#allocation2 + $0x130] sm:$0xff]
          %v2453 = vld [vmem:[#allocation2 + $0x138] sm:$0xff]
          %v2454 = vld [vmem:[#allocation2 + $0x140] sm:$0xff]
          %v2455 = vld [vmem:[#allocation2 + $0x148] sm:$0xff]
          %v2456 = vld [vmem:[#allocation2 + $0x150] sm:$0xff]
          %v2457 = vld [vmem:[#allocation2 + $0x158] sm:$0xff]
          %v2458 = vld [vmem:[#allocation2 + $0x160] sm:$0xff]
          %v2459 = vld [vmem:[#allocation2 + $0x168] sm:$0xff]
          %v2460 = vld [vmem:[#allocation2 + $0x170] sm:$0xff]
          %v2461 = vld [vmem:[#allocation2 + $0x178] sm:$0xff]
          %v2462 = vld [vmem:[#allocation2 + $0x180] sm:$0xff]
          %v2463 = vld [vmem:[#allocation2 + $0x188] sm:$0xff]
          %v2464 = vld [vmem:[#allocation2 + $0x190] sm:$0xff]
          %v2465 = vld [vmem:[#allocation2 + $0x198] sm:$0xff]
          %v2466 = vld [vmem:[#allocation2 + $0x1a0] sm:$0xff]
          %v2467 = vld [vmem:[#allocation2 + $0x1a8] sm:$0xff]
          %2520 = vrot.lane.b32.xlu0 %v2416, 112
          %v2521 = vpop.permute.xlu0 %2520
          %2522 = vrot.lane.b32.xlu0 %v2417, 112
          %v2523 = vpop.permute.xlu0 %2522
          %2524 = vrot.lane.b32.xlu0 %v2418, 112
          %v2525 = vpop.permute.xlu0 %2524
          %2526 = vrot.lane.b32.xlu0 %v2419, 112
          %v2527 = vpop.permute.xlu0 %2526
          %2528 = vrot.lane.b32.xlu0 %v2420, 112
          %v2529 = vpop.permute.xlu0 %2528
          %2530 = vrot.lane.b32.xlu0 %v2421, 112
          %v2531 = vpop.permute.xlu0 %2530
          %2532 = vrot.lane.b32.xlu0 %v2422, 112
          %v2533 = vpop.permute.xlu0 %2532
          %2534 = vrot.lane.b32.xlu0 %v2423, 112
          %v2535 = vpop.permute.xlu0 %2534
          %2536 = vrot.lane.b32.xlu0 %v2424, 112
          %v2537 = vpop.permute.xlu0 %2536
          %2538 = vrot.lane.b32.xlu0 %v2425, 112
          %v2539 = vpop.permute.xlu0 %2538
          %2540 = vrot.lane.b32.xlu0 %v2426, 112
          %v2541 = vpop.permute.xlu0 %2540
          %2542 = vrot.lane.b32.xlu0 %v2427, 112
          %v2543 = vpop.permute.xlu0 %2542
          %2544 = vrot.lane.b32.xlu0 %v2428, 112
          %v2545 = vpop.permute.xlu0 %2544
          %2546 = vrot.lane.b32.xlu0 %v2429, 112
          %v2547 = vpop.permute.xlu0 %2546
          %2548 = vrot.lane.b32.xlu0 %v2430, 112
          %v2549 = vpop.permute.xlu0 %2548
          %2550 = vrot.lane.b32.xlu0 %v2431, 112
          %v2551 = vpop.permute.xlu0 %2550
          %2552 = vrot.lane.b32.xlu0 %v2432, 112
          %v2553 = vpop.permute.xlu0 %2552
          %2554 = vrot.lane.b32.xlu0 %v2433, 112
          %v2555 = vpop.permute.xlu0 %2554
          %2556 = vrot.lane.b32.xlu0 %v2434, 112
          %v2557 = vpop.permute.xlu0 %2556
          %2558 = vrot.lane.b32.xlu0 %v2435, 112
          %v2559 = vpop.permute.xlu0 %2558
          %2560 = vrot.lane.b32.xlu0 %v2436, 112
          %v2561 = vpop.permute.xlu0 %2560
          %2562 = vrot.lane.b32.xlu0 %v2437, 112
          %v2563 = vpop.permute.xlu0 %2562
          %2564 = vrot.lane.b32.xlu0 %v2438, 112
          %v2565 = vpop.permute.xlu0 %2564
          %2566 = vrot.lane.b32.xlu0 %v2439, 112
          %v2567 = vpop.permute.xlu0 %2566
          %2568 = vrot.lane.b32.xlu0 %v2440, 112
          %v2569 = vpop.permute.xlu0 %2568
          %2570 = vrot.lane.b32.xlu0 %v2441, 112
          %v2571 = vpop.permute.xlu0 %2570
          %2572 = vrot.lane.b32.xlu0 %v2442, 112
          %v2573 = vpop.permute.xlu0 %2572
          %2574 = vrot.lane.b32.xlu0 %v2443, 112
          %v2575 = vpop.permute.xlu0 %2574
          %2576 = vrot.lane.b32.xlu0 %v2444, 112
          %v2577 = vpop.permute.xlu0 %2576
          %2578 = vrot.lane.b32.xlu0 %v2445, 112
          %v2579 = vpop.permute.xlu0 %2578
          %2580 = vrot.lane.b32.xlu0 %v2446, 112
          %v2581 = vpop.permute.xlu0 %2580
          %2582 = vrot.lane.b32.xlu0 %v2447, 112
          %v2583 = vpop.permute.xlu0 %2582
          %2584 = vrot.lane.b32.xlu0 %v2448, 112
          %v2585 = vpop.permute.xlu0 %2584
          %2586 = vrot.lane.b32.xlu0 %v2449, 112
          %v2587 = vpop.permute.xlu0 %2586
          %2588 = vrot.lane.b32.xlu0 %v2450, 112
          %v2589 = vpop.permute.xlu0 %2588
          %2590 = vrot.lane.b32.xlu0 %v2451, 112
          %v2591 = vpop.permute.xlu0 %2590
          %2592 = vrot.lane.b32.xlu0 %v2452, 112
          %v2593 = vpop.permute.xlu0 %2592
          %2594 = vrot.lane.b32.xlu0 %v2453, 112
          %v2595 = vpop.permute.xlu0 %2594
          %2596 = vrot.lane.b32.xlu0 %v2454, 112
          %v2597 = vpop.permute.xlu0 %2596
          %2598 = vrot.lane.b32.xlu0 %v2455, 112
          %v2599 = vpop.permute.xlu0 %2598
          %2600 = vrot.lane.b32.xlu0 %v2456, 112
          %v2601 = vpop.permute.xlu0 %2600
          %2602 = vrot.lane.b32.xlu0 %v2457, 112
          %v2603 = vpop.permute.xlu0 %2602
          %2604 = vrot.lane.b32.xlu0 %v2458, 112
          %v2605 = vpop.permute.xlu0 %2604
          %2606 = vrot.lane.b32.xlu0 %v2459, 112
          %v2607 = vpop.permute.xlu0 %2606
          %2608 = vrot.lane.b32.xlu0 %v2460, 112
          %v2609 = vpop.permute.xlu0 %2608
          %2610 = vrot.lane.b32.xlu0 %v2461, 112
          %v2611 = vpop.permute.xlu0 %2610
          %2612 = vrot.lane.b32.xlu0 %v2462, 112
          %v2613 = vpop.permute.xlu0 %2612
          %2614 = vrot.lane.b32.xlu0 %v2463, 112
          %v2615 = vpop.permute.xlu0 %2614
          %2616 = vrot.lane.b32.xlu0 %v2464, 112
          %v2617 = vpop.permute.xlu0 %2616
          %2618 = vrot.lane.b32.xlu0 %v2465, 112
          %v2619 = vpop.permute.xlu0 %2618
          %2620 = vrot.lane.b32.xlu0 %v2466, 112
          %v2621 = vpop.permute.xlu0 %2620
          %2622 = vrot.lane.b32.xlu0 %v2467, 112
          %v2623 = vpop.permute.xlu0 %2622
          %v2676 = vadd.f32 %v2364, %v2521
          %v2677 = vadd.f32 %v2365, %v2523
          %v2678 = vadd.f32 %v2366, %v2525
          %v2679 = vadd.f32 %v2367, %v2527
          %v2680 = vadd.f32 %v2368, %v2529
          %v2681 = vadd.f32 %v2369, %v2531
          %v2682 = vadd.f32 %v2370, %v2533
          %v2683 = vadd.f32 %v2371, %v2535
          %v2684 = vadd.f32 %v2372, %v2537
          %v2685 = vadd.f32 %v2373, %v2539
          %v2686 = vadd.f32 %v2374, %v2541
          %v2687 = vadd.f32 %v2375, %v2543
          %v2688 = vadd.f32 %v2376, %v2545
          %v2689 = vadd.f32 %v2377, %v2547
          %v2690 = vadd.f32 %v2378, %v2549
          %v2691 = vadd.f32 %v2379, %v2551
          %v2692 = vadd.f32 %v2380, %v2553
          %v2693 = vadd.f32 %v2381, %v2555
          %v2694 = vadd.f32 %v2382, %v2557
          %v2695 = vadd.f32 %v2383, %v2559
          %v2696 = vadd.f32 %v2384, %v2561
          %v2697 = vadd.f32 %v2385, %v2563
          %v2698 = vadd.f32 %v2386, %v2565
          %v2699 = vadd.f32 %v2387, %v2567
          %v2700 = vadd.f32 %v2388, %v2569
          %v2701 = vadd.f32 %v2389, %v2571
          %v2702 = vadd.f32 %v2390, %v2573
          %v2703 = vadd.f32 %v2391, %v2575
          %v2704 = vadd.f32 %v2392, %v2577
          %v2705 = vadd.f32 %v2393, %v2579
          %v2706 = vadd.f32 %v2394, %v2581
          %v2707 = vadd.f32 %v2395, %v2583
          %v2708 = vadd.f32 %v2396, %v2585
          %v2709 = vadd.f32 %v2397, %v2587
          %v2710 = vadd.f32 %v2398, %v2589
          %v2711 = vadd.f32 %v2399, %v2591
          %v2712 = vadd.f32 %v2400, %v2593
          %v2713 = vadd.f32 %v2401, %v2595
          %v2714 = vadd.f32 %v2402, %v2597
          %v2715 = vadd.f32 %v2403, %v2599
          %v2716 = vadd.f32 %v2404, %v2601
          %v2717 = vadd.f32 %v2405, %v2603
          %v2718 = vadd.f32 %v2406, %v2605
          %v2719 = vadd.f32 %v2407, %v2607
          %v2720 = vadd.f32 %v2408, %v2609
          %v2721 = vadd.f32 %v2409, %v2611
          %v2722 = vadd.f32 %v2410, %v2613
          %v2723 = vadd.f32 %v2411, %v2615
          %v2724 = vadd.f32 %v2412, %v2617
          %v2725 = vadd.f32 %v2413, %v2619
          %v2726 = vadd.f32 %v2414, %v2621
          %v2727 = vadd.f32 %v2415, %v2623
          %v2728 = vld [vmem:[#allocation2 + $0x11] sm:$0xff]
          %v2729 = vld [vmem:[#allocation2 + $0x19] sm:$0xff]
          %v2730 = vld [vmem:[#allocation2 + $0x21] sm:$0xff]
          %v2731 = vld [vmem:[#allocation2 + $0x29] sm:$0xff]
          %v2732 = vld [vmem:[#allocation2 + $0x31] sm:$0xff]
          %v2733 = vld [vmem:[#allocation2 + $0x39] sm:$0xff]
          %v2734 = vld [vmem:[#allocation2 + $0x41] sm:$0xff]
          %v2735 = vld [vmem:[#allocation2 + $0x49] sm:$0xff]
          %v2736 = vld [vmem:[#allocation2 + $0x51] sm:$0xff]
          %v2737 = vld [vmem:[#allocation2 + $0x59] sm:$0xff]
          %v2738 = vld [vmem:[#allocation2 + $0x61] sm:$0xff]
          %v2739 = vld [vmem:[#allocation2 + $0x69] sm:$0xff]
          %v2740 = vld [vmem:[#allocation2 + $0x71] sm:$0xff]
          %v2741 = vld [vmem:[#allocation2 + $0x79] sm:$0xff]
          %v2742 = vld [vmem:[#allocation2 + $0x81] sm:$0xff]
          %v2743 = vld [vmem:[#allocation2 + $0x89] sm:$0xff]
          %v2744 = vld [vmem:[#allocation2 + $0x91] sm:$0xff]
          %v2745 = vld [vmem:[#allocation2 + $0x99] sm:$0xff]
          %v2746 = vld [vmem:[#allocation2 + $0xa1] sm:$0xff]
          %v2747 = vld [vmem:[#allocation2 + $0xa9] sm:$0xff]
          %v2748 = vld [vmem:[#allocation2 + $0xb1] sm:$0xff]
          %v2749 = vld [vmem:[#allocation2 + $0xb9] sm:$0xff]
          %v2750 = vld [vmem:[#allocation2 + $0xc1] sm:$0xff]
          %v2751 = vld [vmem:[#allocation2 + $0xc9] sm:$0xff]
          %v2752 = vld [vmem:[#allocation2 + $0xd1] sm:$0xff]
          %v2753 = vld [vmem:[#allocation2 + $0xd9] sm:$0xff]
          %v2754 = vld [vmem:[#allocation2 + $0xe1] sm:$0xff]
          %v2755 = vld [vmem:[#allocation2 + $0xe9] sm:$0xff]
          %v2756 = vld [vmem:[#allocation2 + $0xf1] sm:$0xff]
          %v2757 = vld [vmem:[#allocation2 + $0xf9] sm:$0xff]
          %v2758 = vld [vmem:[#allocation2 + $0x101] sm:$0xff]
          %v2759 = vld [vmem:[#allocation2 + $0x109] sm:$0xff]
          %v2760 = vld [vmem:[#allocation2 + $0x111] sm:$0xff]
          %v2761 = vld [vmem:[#allocation2 + $0x119] sm:$0xff]
          %v2762 = vld [vmem:[#allocation2 + $0x121] sm:$0xff]
          %v2763 = vld [vmem:[#allocation2 + $0x129] sm:$0xff]
          %v2764 = vld [vmem:[#allocation2 + $0x131] sm:$0xff]
          %v2765 = vld [vmem:[#allocation2 + $0x139] sm:$0xff]
          %v2766 = vld [vmem:[#allocation2 + $0x141] sm:$0xff]
          %v2767 = vld [vmem:[#allocation2 + $0x149] sm:$0xff]
          %v2768 = vld [vmem:[#allocation2 + $0x151] sm:$0xff]
          %v2769 = vld [vmem:[#allocation2 + $0x159] sm:$0xff]
          %v2770 = vld [vmem:[#allocation2 + $0x161] sm:$0xff]
          %v2771 = vld [vmem:[#allocation2 + $0x169] sm:$0xff]
          %v2772 = vld [vmem:[#allocation2 + $0x171] sm:$0xff]
          %v2773 = vld [vmem:[#allocation2 + $0x179] sm:$0xff]
          %v2774 = vld [vmem:[#allocation2 + $0x181] sm:$0xff]
          %v2775 = vld [vmem:[#allocation2 + $0x189] sm:$0xff]
          %v2776 = vld [vmem:[#allocation2 + $0x191] sm:$0xff]
          %v2777 = vld [vmem:[#allocation2 + $0x199] sm:$0xff]
          %v2778 = vld [vmem:[#allocation2 + $0x1a1] sm:$0xff]
          %v2779 = vld [vmem:[#allocation2 + $0x1a9] sm:$0xff]
          %2832 = vrot.lane.b32.xlu0 %v2728, 108
          %v2833 = vpop.permute.xlu0 %2832
          %2834 = vrot.lane.b32.xlu0 %v2729, 108
          %v2835 = vpop.permute.xlu0 %2834
          %2836 = vrot.lane.b32.xlu0 %v2730, 108
          %v2837 = vpop.permute.xlu0 %2836
          %2838 = vrot.lane.b32.xlu0 %v2731, 108
          %v2839 = vpop.permute.xlu0 %2838
          %2840 = vrot.lane.b32.xlu0 %v2732, 108
          %v2841 = vpop.permute.xlu0 %2840
          %2842 = vrot.lane.b32.xlu0 %v2733, 108
          %v2843 = vpop.permute.xlu0 %2842
          %2844 = vrot.lane.b32.xlu0 %v2734, 108
          %v2845 = vpop.permute.xlu0 %2844
          %2846 = vrot.lane.b32.xlu0 %v2735, 108
          %v2847 = vpop.permute.xlu0 %2846
          %2848 = vrot.lane.b32.xlu0 %v2736, 108
          %v2849 = vpop.permute.xlu0 %2848
          %2850 = vrot.lane.b32.xlu0 %v2737, 108
          %v2851 = vpop.permute.xlu0 %2850
          %2852 = vrot.lane.b32.xlu0 %v2738, 108
          %v2853 = vpop.permute.xlu0 %2852
          %2854 = vrot.lane.b32.xlu0 %v2739, 108
          %v2855 = vpop.permute.xlu0 %2854
          %2856 = vrot.lane.b32.xlu0 %v2740, 108
          %v2857 = vpop.permute.xlu0 %2856
          %2858 = vrot.lane.b32.xlu0 %v2741, 108
          %v2859 = vpop.permute.xlu0 %2858
          %2860 = vrot.lane.b32.xlu0 %v2742, 108
          %v2861 = vpop.permute.xlu0 %2860
          %2862 = vrot.lane.b32.xlu0 %v2743, 108
          %v2863 = vpop.permute.xlu0 %2862
          %2864 = vrot.lane.b32.xlu0 %v2744, 108
          %v2865 = vpop.permute.xlu0 %2864
          %2866 = vrot.lane.b32.xlu0 %v2745, 108
          %v2867 = vpop.permute.xlu0 %2866
          %2868 = vrot.lane.b32.xlu0 %v2746, 108
          %v2869 = vpop.permute.xlu0 %2868
          %2870 = vrot.lane.b32.xlu0 %v2747, 108
          %v2871 = vpop.permute.xlu0 %2870
          %2872 = vrot.lane.b32.xlu0 %v2748, 108
          %v2873 = vpop.permute.xlu0 %2872
          %2874 = vrot.lane.b32.xlu0 %v2749, 108
          %v2875 = vpop.permute.xlu0 %2874
          %2876 = vrot.lane.b32.xlu0 %v2750, 108
          %v2877 = vpop.permute.xlu0 %2876
          %2878 = vrot.lane.b32.xlu0 %v2751, 108
          %v2879 = vpop.permute.xlu0 %2878
          %2880 = vrot.lane.b32.xlu0 %v2752, 108
          %v2881 = vpop.permute.xlu0 %2880
          %2882 = vrot.lane.b32.xlu0 %v2753, 108
          %v2883 = vpop.permute.xlu0 %2882
          %2884 = vrot.lane.b32.xlu0 %v2754, 108
          %v2885 = vpop.permute.xlu0 %2884
          %2886 = vrot.lane.b32.xlu0 %v2755, 108
          %v2887 = vpop.permute.xlu0 %2886
          %2888 = vrot.lane.b32.xlu0 %v2756, 108
          %v2889 = vpop.permute.xlu0 %2888
          %2890 = vrot.lane.b32.xlu0 %v2757, 108
          %v2891 = vpop.permute.xlu0 %2890
          %2892 = vrot.lane.b32.xlu0 %v2758, 108
          %v2893 = vpop.permute.xlu0 %2892
          %2894 = vrot.lane.b32.xlu0 %v2759, 108
          %v2895 = vpop.permute.xlu0 %2894
          %2896 = vrot.lane.b32.xlu0 %v2760, 108
          %v2897 = vpop.permute.xlu0 %2896
          %2898 = vrot.lane.b32.xlu0 %v2761, 108
          %v2899 = vpop.permute.xlu0 %2898
          %2900 = vrot.lane.b32.xlu0 %v2762, 108
          %v2901 = vpop.permute.xlu0 %2900
          %2902 = vrot.lane.b32.xlu0 %v2763, 108
          %v2903 = vpop.permute.xlu0 %2902
          %2904 = vrot.lane.b32.xlu0 %v2764, 108
          %v2905 = vpop.permute.xlu0 %2904
          %2906 = vrot.lane.b32.xlu0 %v2765, 108
          %v2907 = vpop.permute.xlu0 %2906
          %2908 = vrot.lane.b32.xlu0 %v2766, 108
          %v2909 = vpop.permute.xlu0 %2908
          %2910 = vrot.lane.b32.xlu0 %v2767, 108
          %v2911 = vpop.permute.xlu0 %2910
          %2912 = vrot.lane.b32.xlu0 %v2768, 108
          %v2913 = vpop.permute.xlu0 %2912
          %2914 = vrot.lane.b32.xlu0 %v2769, 108
          %v2915 = vpop.permute.xlu0 %2914
          %2916 = vrot.lane.b32.xlu0 %v2770, 108
          %v2917 = vpop.permute.xlu0 %2916
          %2918 = vrot.lane.b32.xlu0 %v2771, 108
          %v2919 = vpop.permute.xlu0 %2918
          %2920 = vrot.lane.b32.xlu0 %v2772, 108
          %v2921 = vpop.permute.xlu0 %2920
          %2922 = vrot.lane.b32.xlu0 %v2773, 108
          %v2923 = vpop.permute.xlu0 %2922
          %2924 = vrot.lane.b32.xlu0 %v2774, 108
          %v2925 = vpop.permute.xlu0 %2924
          %2926 = vrot.lane.b32.xlu0 %v2775, 108
          %v2927 = vpop.permute.xlu0 %2926
          %2928 = vrot.lane.b32.xlu0 %v2776, 108
          %v2929 = vpop.permute.xlu0 %2928
          %2930 = vrot.lane.b32.xlu0 %v2777, 108
          %v2931 = vpop.permute.xlu0 %2930
          %2932 = vrot.lane.b32.xlu0 %v2778, 108
          %v2933 = vpop.permute.xlu0 %2932
          %2934 = vrot.lane.b32.xlu0 %v2779, 108
          %v2935 = vpop.permute.xlu0 %2934
          %v2988 = vadd.f32 %v2676, %v2833
          %v2989 = vadd.f32 %v2677, %v2835
          %v2990 = vadd.f32 %v2678, %v2837
          %v2991 = vadd.f32 %v2679, %v2839
          %v2992 = vadd.f32 %v2680, %v2841
          %v2993 = vadd.f32 %v2681, %v2843
          %v2994 = vadd.f32 %v2682, %v2845
          %v2995 = vadd.f32 %v2683, %v2847
          %v2996 = vadd.f32 %v2684, %v2849
          %v2997 = vadd.f32 %v2685, %v2851
          %v2998 = vadd.f32 %v2686, %v2853
          %v2999 = vadd.f32 %v2687, %v2855
          %v3000 = vadd.f32 %v2688, %v2857
          %v3001 = vadd.f32 %v2689, %v2859
          %v3002 = vadd.f32 %v2690, %v2861
          %v3003 = vadd.f32 %v2691, %v2863
          %v3004 = vadd.f32 %v2692, %v2865
          %v3005 = vadd.f32 %v2693, %v2867
          %v3006 = vadd.f32 %v2694, %v2869
          %v3007 = vadd.f32 %v2695, %v2871
          %v3008 = vadd.f32 %v2696, %v2873
          %v3009 = vadd.f32 %v2697, %v2875
          %v3010 = vadd.f32 %v2698, %v2877
          %v3011 = vadd.f32 %v2699, %v2879
          %v3012 = vadd.f32 %v2700, %v2881
          %v3013 = vadd.f32 %v2701, %v2883
          %v3014 = vadd.f32 %v2702, %v2885
          %v3015 = vadd.f32 %v2703, %v2887
          %v3016 = vadd.f32 %v2704, %v2889
          %v3017 = vadd.f32 %v2705, %v2891
          %v3018 = vadd.f32 %v2706, %v2893
          %v3019 = vadd.f32 %v2707, %v2895
          %v3020 = vadd.f32 %v2708, %v2897
          %v3021 = vadd.f32 %v2709, %v2899
          %v3022 = vadd.f32 %v2710, %v2901
          %v3023 = vadd.f32 %v2711, %v2903
          %v3024 = vadd.f32 %v2712, %v2905
          %v3025 = vadd.f32 %v2713, %v2907
          %v3026 = vadd.f32 %v2714, %v2909
          %v3027 = vadd.f32 %v2715, %v2911
          %v3028 = vadd.f32 %v2716, %v2913
          %v3029 = vadd.f32 %v2717, %v2915
          %v3030 = vadd.f32 %v2718, %v2917
          %v3031 = vadd.f32 %v2719, %v2919
          %v3032 = vadd.f32 %v2720, %v2921
          %v3033 = vadd.f32 %v2721, %v2923
          %v3034 = vadd.f32 %v2722, %v2925
          %v3035 = vadd.f32 %v2723, %v2927
          %v3036 = vadd.f32 %v2724, %v2929
          %v3037 = vadd.f32 %v2725, %v2931
          %v3038 = vadd.f32 %v2726, %v2933
          %v3039 = vadd.f32 %v2727, %v2935
          %v3040 = vld [vmem:[#allocation2 + $0x1b1] sm:$0xff]
          %3042 = vrot.lane.b32.xlu0 %v2729, 104
          %v3043 = vpop.permute.xlu0 %3042
          %3044 = vrot.lane.b32.xlu0 %v2730, 104
          %v3045 = vpop.permute.xlu0 %3044
          %3046 = vrot.lane.b32.xlu0 %v2731, 104
          %v3047 = vpop.permute.xlu0 %3046
          %3048 = vrot.lane.b32.xlu0 %v2732, 104
          %v3049 = vpop.permute.xlu0 %3048
          %3050 = vrot.lane.b32.xlu0 %v2733, 104
          %v3051 = vpop.permute.xlu0 %3050
          %3052 = vrot.lane.b32.xlu0 %v2734, 104
          %v3053 = vpop.permute.xlu0 %3052
          %3054 = vrot.lane.b32.xlu0 %v2735, 104
          %v3055 = vpop.permute.xlu0 %3054
          %3056 = vrot.lane.b32.xlu0 %v2736, 104
          %v3057 = vpop.permute.xlu0 %3056
          %3058 = vrot.lane.b32.xlu0 %v2737, 104
          %v3059 = vpop.permute.xlu0 %3058
          %3060 = vrot.lane.b32.xlu0 %v2738, 104
          %v3061 = vpop.permute.xlu0 %3060
          %3062 = vrot.lane.b32.xlu0 %v2739, 104
          %v3063 = vpop.permute.xlu0 %3062
          %3064 = vrot.lane.b32.xlu0 %v2740, 104
          %v3065 = vpop.permute.xlu0 %3064
          %3066 = vrot.lane.b32.xlu0 %v2741, 104
          %v3067 = vpop.permute.xlu0 %3066
          %3068 = vrot.lane.b32.xlu0 %v2742, 104
          %v3069 = vpop.permute.xlu0 %3068
          %3070 = vrot.lane.b32.xlu0 %v2743, 104
          %v3071 = vpop.permute.xlu0 %3070
          %3072 = vrot.lane.b32.xlu0 %v2744, 104
          %v3073 = vpop.permute.xlu0 %3072
          %3074 = vrot.lane.b32.xlu0 %v2745, 104
          %v3075 = vpop.permute.xlu0 %3074
          %3076 = vrot.lane.b32.xlu0 %v2746, 104
          %v3077 = vpop.permute.xlu0 %3076
          %3078 = vrot.lane.b32.xlu0 %v2747, 104
          %v3079 = vpop.permute.xlu0 %3078
          %3080 = vrot.lane.b32.xlu0 %v2748, 104
          %v3081 = vpop.permute.xlu0 %3080
          %3082 = vrot.lane.b32.xlu0 %v2749, 104
          %v3083 = vpop.permute.xlu0 %3082
          %3084 = vrot.lane.b32.xlu0 %v2750, 104
          %v3085 = vpop.permute.xlu0 %3084
          %3086 = vrot.lane.b32.xlu0 %v2751, 104
          %v3087 = vpop.permute.xlu0 %3086
          %3088 = vrot.lane.b32.xlu0 %v2752, 104
          %v3089 = vpop.permute.xlu0 %3088
          %3090 = vrot.lane.b32.xlu0 %v2753, 104
          %v3091 = vpop.permute.xlu0 %3090
          %3092 = vrot.lane.b32.xlu0 %v2754, 104
          %v3093 = vpop.permute.xlu0 %3092
          %3094 = vrot.lane.b32.xlu0 %v2755, 104
          %v3095 = vpop.permute.xlu0 %3094
          %3096 = vrot.lane.b32.xlu0 %v2756, 104
          %v3097 = vpop.permute.xlu0 %3096
          %3098 = vrot.lane.b32.xlu0 %v2757, 104
          %v3099 = vpop.permute.xlu0 %3098
          %3100 = vrot.lane.b32.xlu0 %v2758, 104
          %v3101 = vpop.permute.xlu0 %3100
          %3102 = vrot.lane.b32.xlu0 %v2759, 104
          %v3103 = vpop.permute.xlu0 %3102
          %3104 = vrot.lane.b32.xlu0 %v2760, 104
          %v3105 = vpop.permute.xlu0 %3104
          %3106 = vrot.lane.b32.xlu0 %v2761, 104
          %v3107 = vpop.permute.xlu0 %3106
          %3108 = vrot.lane.b32.xlu0 %v2762, 104
          %v3109 = vpop.permute.xlu0 %3108
          %3110 = vrot.lane.b32.xlu0 %v2763, 104
          %v3111 = vpop.permute.xlu0 %3110
          %3112 = vrot.lane.b32.xlu0 %v2764, 104
          %v3113 = vpop.permute.xlu0 %3112
          %3114 = vrot.lane.b32.xlu0 %v2765, 104
          %v3115 = vpop.permute.xlu0 %3114
          %3116 = vrot.lane.b32.xlu0 %v2766, 104
          %v3117 = vpop.permute.xlu0 %3116
          %3118 = vrot.lane.b32.xlu0 %v2767, 104
          %v3119 = vpop.permute.xlu0 %3118
          %3120 = vrot.lane.b32.xlu0 %v2768, 104
          %v3121 = vpop.permute.xlu0 %3120
          %3122 = vrot.lane.b32.xlu0 %v2769, 104
          %v3123 = vpop.permute.xlu0 %3122
          %3124 = vrot.lane.b32.xlu0 %v2770, 104
          %v3125 = vpop.permute.xlu0 %3124
          %3126 = vrot.lane.b32.xlu0 %v2771, 104
          %v3127 = vpop.permute.xlu0 %3126
          %3128 = vrot.lane.b32.xlu0 %v2772, 104
          %v3129 = vpop.permute.xlu0 %3128
          %3130 = vrot.lane.b32.xlu0 %v2773, 104
          %v3131 = vpop.permute.xlu0 %3130
          %3132 = vrot.lane.b32.xlu0 %v2774, 104
          %v3133 = vpop.permute.xlu0 %3132
          %3134 = vrot.lane.b32.xlu0 %v2775, 104
          %v3135 = vpop.permute.xlu0 %3134
          %3136 = vrot.lane.b32.xlu0 %v2776, 104
          %v3137 = vpop.permute.xlu0 %3136
          %3138 = vrot.lane.b32.xlu0 %v2777, 104
          %v3139 = vpop.permute.xlu0 %3138
          %3140 = vrot.lane.b32.xlu0 %v2778, 104
          %v3141 = vpop.permute.xlu0 %3140
          %3142 = vrot.lane.b32.xlu0 %v2779, 104
          %v3143 = vpop.permute.xlu0 %3142
          %3144 = vrot.lane.b32.xlu0 %v3040, 104
          %v3145 = vpop.permute.xlu0 %3144
          %v3198 = vadd.f32 %v2988, %v3043
          %v3199 = vadd.f32 %v2989, %v3045
          %v3200 = vadd.f32 %v2990, %v3047
          %v3201 = vadd.f32 %v2991, %v3049
          %v3202 = vadd.f32 %v2992, %v3051
          %v3203 = vadd.f32 %v2993, %v3053
          %v3204 = vadd.f32 %v2994, %v3055
          %v3205 = vadd.f32 %v2995, %v3057
          %v3206 = vadd.f32 %v2996, %v3059
          %v3207 = vadd.f32 %v2997, %v3061
          %v3208 = vadd.f32 %v2998, %v3063
          %v3209 = vadd.f32 %v2999, %v3065
          %v3210 = vadd.f32 %v3000, %v3067
          %v3211 = vadd.f32 %v3001, %v3069
          %v3212 = vadd.f32 %v3002, %v3071
          %v3213 = vadd.f32 %v3003, %v3073
          %v3214 = vadd.f32 %v3004, %v3075
          %v3215 = vadd.f32 %v3005, %v3077
          %v3216 = vadd.f32 %v3006, %v3079
          %v3217 = vadd.f32 %v3007, %v3081
          %v3218 = vadd.f32 %v3008, %v3083
          %v3219 = vadd.f32 %v3009, %v3085
          %v3220 = vadd.f32 %v3010, %v3087
          %v3221 = vadd.f32 %v3011, %v3089
          %v3222 = vadd.f32 %v3012, %v3091
          %v3223 = vadd.f32 %v3013, %v3093
          %v3224 = vadd.f32 %v3014, %v3095
          %v3225 = vadd.f32 %v3015, %v3097
          %v3226 = vadd.f32 %v3016, %v3099
          %v3227 = vadd.f32 %v3017, %v3101
          %v3228 = vadd.f32 %v3018, %v3103
          %v3229 = vadd.f32 %v3019, %v3105
          %v3230 = vadd.f32 %v3020, %v3107
          %v3231 = vadd.f32 %v3021, %v3109
          %v3232 = vadd.f32 %v3022, %v3111
          %v3233 = vadd.f32 %v3023, %v3113
          %v3234 = vadd.f32 %v3024, %v3115
          %v3235 = vadd.f32 %v3025, %v3117
          %v3236 = vadd.f32 %v3026, %v3119
          %v3237 = vadd.f32 %v3027, %v3121
          %v3238 = vadd.f32 %v3028, %v3123
          %v3239 = vadd.f32 %v3029, %v3125
          %v3240 = vadd.f32 %v3030, %v3127
          %v3241 = vadd.f32 %v3031, %v3129
          %v3242 = vadd.f32 %v3032, %v3131
          %v3243 = vadd.f32 %v3033, %v3133
          %v3244 = vadd.f32 %v3034, %v3135
          %v3245 = vadd.f32 %v3035, %v3137
          %v3246 = vadd.f32 %v3036, %v3139
          %v3247 = vadd.f32 %v3037, %v3141
          %v3248 = vadd.f32 %v3038, %v3143
          %v3249 = vadd.f32 %v3039, %v3145
          %v3250 = vld [vmem:[#allocation2 + $0x1a] sm:$0xff]
          %v3251 = vld [vmem:[#allocation2 + $0x22] sm:$0xff]
          %v3252 = vld [vmem:[#allocation2 + $0x2a] sm:$0xff]
          %v3253 = vld [vmem:[#allocation2 + $0x32] sm:$0xff]
          %v3254 = vld [vmem:[#allocation2 + $0x3a] sm:$0xff]
          %v3255 = vld [vmem:[#allocation2 + $0x42] sm:$0xff]
          %v3256 = vld [vmem:[#allocation2 + $0x4a] sm:$0xff]
          %v3257 = vld [vmem:[#allocation2 + $0x52] sm:$0xff]
          %v3258 = vld [vmem:[#allocation2 + $0x5a] sm:$0xff]
          %v3259 = vld [vmem:[#allocation2 + $0x62] sm:$0xff]
          %v3260 = vld [vmem:[#allocation2 + $0x6a] sm:$0xff]
          %v3261 = vld [vmem:[#allocation2 + $0x72] sm:$0xff]
          %v3262 = vld [vmem:[#allocation2 + $0x7a] sm:$0xff]
          %v3263 = vld [vmem:[#allocation2 + $0x82] sm:$0xff]
          %v3264 = vld [vmem:[#allocation2 + $0x8a] sm:$0xff]
          %v3265 = vld [vmem:[#allocation2 + $0x92] sm:$0xff]
          %v3266 = vld [vmem:[#allocation2 + $0x9a] sm:$0xff]
          %v3267 = vld [vmem:[#allocation2 + $0xa2] sm:$0xff]
          %v3268 = vld [vmem:[#allocation2 + $0xaa] sm:$0xff]
          %v3269 = vld [vmem:[#allocation2 + $0xb2] sm:$0xff]
          %v3270 = vld [vmem:[#allocation2 + $0xba] sm:$0xff]
          %v3271 = vld [vmem:[#allocation2 + $0xc2] sm:$0xff]
          %v3272 = vld [vmem:[#allocation2 + $0xca] sm:$0xff]
          %v3273 = vld [vmem:[#allocation2 + $0xd2] sm:$0xff]
          %v3274 = vld [vmem:[#allocation2 + $0xda] sm:$0xff]
          %v3275 = vld [vmem:[#allocation2 + $0xe2] sm:$0xff]
          %v3276 = vld [vmem:[#allocation2 + $0xea] sm:$0xff]
          %v3277 = vld [vmem:[#allocation2 + $0xf2] sm:$0xff]
          %v3278 = vld [vmem:[#allocation2 + $0xfa] sm:$0xff]
          %v3279 = vld [vmem:[#allocation2 + $0x102] sm:$0xff]
          %v3280 = vld [vmem:[#allocation2 + $0x10a] sm:$0xff]
          %v3281 = vld [vmem:[#allocation2 + $0x112] sm:$0xff]
          %v3282 = vld [vmem:[#allocation2 + $0x11a] sm:$0xff]
          %v3283 = vld [vmem:[#allocation2 + $0x122] sm:$0xff]
          %v3284 = vld [vmem:[#allocation2 + $0x12a] sm:$0xff]
          %v3285 = vld [vmem:[#allocation2 + $0x132] sm:$0xff]
          %v3286 = vld [vmem:[#allocation2 + $0x13a] sm:$0xff]
          %v3287 = vld [vmem:[#allocation2 + $0x142] sm:$0xff]
          %v3288 = vld [vmem:[#allocation2 + $0x14a] sm:$0xff]
          %v3289 = vld [vmem:[#allocation2 + $0x152] sm:$0xff]
          %v3290 = vld [vmem:[#allocation2 + $0x15a] sm:$0xff]
          %v3291 = vld [vmem:[#allocation2 + $0x162] sm:$0xff]
          %v3292 = vld [vmem:[#allocation2 + $0x16a] sm:$0xff]
          %v3293 = vld [vmem:[#allocation2 + $0x172] sm:$0xff]
          %v3294 = vld [vmem:[#allocation2 + $0x17a] sm:$0xff]
          %v3295 = vld [vmem:[#allocation2 + $0x182] sm:$0xff]
          %v3296 = vld [vmem:[#allocation2 + $0x18a] sm:$0xff]
          %v3297 = vld [vmem:[#allocation2 + $0x192] sm:$0xff]
          %v3298 = vld [vmem:[#allocation2 + $0x19a] sm:$0xff]
          %v3299 = vld [vmem:[#allocation2 + $0x1a2] sm:$0xff]
          %v3300 = vld [vmem:[#allocation2 + $0x1aa] sm:$0xff]
          %v3301 = vld [vmem:[#allocation2 + $0x1b2] sm:$0xff]
          %3354 = vrot.lane.b32.xlu0 %v3250, 100
          %v3355 = vpop.permute.xlu0 %3354
          %3356 = vrot.lane.b32.xlu0 %v3251, 100
          %v3357 = vpop.permute.xlu0 %3356
          %3358 = vrot.lane.b32.xlu0 %v3252, 100
          %v3359 = vpop.permute.xlu0 %3358
          %3360 = vrot.lane.b32.xlu0 %v3253, 100
          %v3361 = vpop.permute.xlu0 %3360
          %3362 = vrot.lane.b32.xlu0 %v3254, 100
          %v3363 = vpop.permute.xlu0 %3362
          %3364 = vrot.lane.b32.xlu0 %v3255, 100
          %v3365 = vpop.permute.xlu0 %3364
          %3366 = vrot.lane.b32.xlu0 %v3256, 100
          %v3367 = vpop.permute.xlu0 %3366
          %3368 = vrot.lane.b32.xlu0 %v3257, 100
          %v3369 = vpop.permute.xlu0 %3368
          %3370 = vrot.lane.b32.xlu0 %v3258, 100
          %v3371 = vpop.permute.xlu0 %3370
          %3372 = vrot.lane.b32.xlu0 %v3259, 100
          %v3373 = vpop.permute.xlu0 %3372
          %3374 = vrot.lane.b32.xlu0 %v3260, 100
          %v3375 = vpop.permute.xlu0 %3374
          %3376 = vrot.lane.b32.xlu0 %v3261, 100
          %v3377 = vpop.permute.xlu0 %3376
          %3378 = vrot.lane.b32.xlu0 %v3262, 100
          %v3379 = vpop.permute.xlu0 %3378
          %3380 = vrot.lane.b32.xlu0 %v3263, 100
          %v3381 = vpop.permute.xlu0 %3380
          %3382 = vrot.lane.b32.xlu0 %v3264, 100
          %v3383 = vpop.permute.xlu0 %3382
          %3384 = vrot.lane.b32.xlu0 %v3265, 100
          %v3385 = vpop.permute.xlu0 %3384
          %3386 = vrot.lane.b32.xlu0 %v3266, 100
          %v3387 = vpop.permute.xlu0 %3386
          %3388 = vrot.lane.b32.xlu0 %v3267, 100
          %v3389 = vpop.permute.xlu0 %3388
          %3390 = vrot.lane.b32.xlu0 %v3268, 100
          %v3391 = vpop.permute.xlu0 %3390
          %3392 = vrot.lane.b32.xlu0 %v3269, 100
          %v3393 = vpop.permute.xlu0 %3392
          %3394 = vrot.lane.b32.xlu0 %v3270, 100
          %v3395 = vpop.permute.xlu0 %3394
          %3396 = vrot.lane.b32.xlu0 %v3271, 100
          %v3397 = vpop.permute.xlu0 %3396
          %3398 = vrot.lane.b32.xlu0 %v3272, 100
          %v3399 = vpop.permute.xlu0 %3398
          %3400 = vrot.lane.b32.xlu0 %v3273, 100
          %v3401 = vpop.permute.xlu0 %3400
          %3402 = vrot.lane.b32.xlu0 %v3274, 100
          %v3403 = vpop.permute.xlu0 %3402
          %3404 = vrot.lane.b32.xlu0 %v3275, 100
          %v3405 = vpop.permute.xlu0 %3404
          %3406 = vrot.lane.b32.xlu0 %v3276, 100
          %v3407 = vpop.permute.xlu0 %3406
          %3408 = vrot.lane.b32.xlu0 %v3277, 100
          %v3409 = vpop.permute.xlu0 %3408
          %3410 = vrot.lane.b32.xlu0 %v3278, 100
          %v3411 = vpop.permute.xlu0 %3410
          %3412 = vrot.lane.b32.xlu0 %v3279, 100
          %v3413 = vpop.permute.xlu0 %3412
          %3414 = vrot.lane.b32.xlu0 %v3280, 100
          %v3415 = vpop.permute.xlu0 %3414
          %3416 = vrot.lane.b32.xlu0 %v3281, 100
          %v3417 = vpop.permute.xlu0 %3416
          %3418 = vrot.lane.b32.xlu0 %v3282, 100
          %v3419 = vpop.permute.xlu0 %3418
          %3420 = vrot.lane.b32.xlu0 %v3283, 100
          %v3421 = vpop.permute.xlu0 %3420
          %3422 = vrot.lane.b32.xlu0 %v3284, 100
          %v3423 = vpop.permute.xlu0 %3422
          %3424 = vrot.lane.b32.xlu0 %v3285, 100
          %v3425 = vpop.permute.xlu0 %3424
          %3426 = vrot.lane.b32.xlu0 %v3286, 100
          %v3427 = vpop.permute.xlu0 %3426
          %3428 = vrot.lane.b32.xlu0 %v3287, 100
          %v3429 = vpop.permute.xlu0 %3428
          %3430 = vrot.lane.b32.xlu0 %v3288, 100
          %v3431 = vpop.permute.xlu0 %3430
          %3432 = vrot.lane.b32.xlu0 %v3289, 100
          %v3433 = vpop.permute.xlu0 %3432
          %3434 = vrot.lane.b32.xlu0 %v3290, 100
          %v3435 = vpop.permute.xlu0 %3434
          %3436 = vrot.lane.b32.xlu0 %v3291, 100
          %v3437 = vpop.permute.xlu0 %3436
          %3438 = vrot.lane.b32.xlu0 %v3292, 100
          %v3439 = vpop.permute.xlu0 %3438
          %3440 = vrot.lane.b32.xlu0 %v3293, 100
          %v3441 = vpop.permute.xlu0 %3440
          %3442 = vrot.lane.b32.xlu0 %v3294, 100
          %v3443 = vpop.permute.xlu0 %3442
          %3444 = vrot.lane.b32.xlu0 %v3295, 100
          %v3445 = vpop.permute.xlu0 %3444
          %3446 = vrot.lane.b32.xlu0 %v3296, 100
          %v3447 = vpop.permute.xlu0 %3446
          %3448 = vrot.lane.b32.xlu0 %v3297, 100
          %v3449 = vpop.permute.xlu0 %3448
          %3450 = vrot.lane.b32.xlu0 %v3298, 100
          %v3451 = vpop.permute.xlu0 %3450
          %3452 = vrot.lane.b32.xlu0 %v3299, 100
          %v3453 = vpop.permute.xlu0 %3452
          %3454 = vrot.lane.b32.xlu0 %v3300, 100
          %v3455 = vpop.permute.xlu0 %3454
          %3456 = vrot.lane.b32.xlu0 %v3301, 100
          %v3457 = vpop.permute.xlu0 %3456
          %v3510 = vadd.f32 %v3198, %v3355
          %v3511 = vadd.f32 %v3199, %v3357
          %v3512 = vadd.f32 %v3200, %v3359
          %v3513 = vadd.f32 %v3201, %v3361
          %v3514 = vadd.f32 %v3202, %v3363
          %v3515 = vadd.f32 %v3203, %v3365
          %v3516 = vadd.f32 %v3204, %v3367
          %v3517 = vadd.f32 %v3205, %v3369
          %v3518 = vadd.f32 %v3206, %v3371
          %v3519 = vadd.f32 %v3207, %v3373
          %v3520 = vadd.f32 %v3208, %v3375
          %v3521 = vadd.f32 %v3209, %v3377
          %v3522 = vadd.f32 %v3210, %v3379
          %v3523 = vadd.f32 %v3211, %v3381
          %v3524 = vadd.f32 %v3212, %v3383
          %v3525 = vadd.f32 %v3213, %v3385
          %v3526 = vadd.f32 %v3214, %v3387
          %v3527 = vadd.f32 %v3215, %v3389
          %v3528 = vadd.f32 %v3216, %v3391
          %v3529 = vadd.f32 %v3217, %v3393
          %v3530 = vadd.f32 %v3218, %v3395
          %v3531 = vadd.f32 %v3219, %v3397
          %v3532 = vadd.f32 %v3220, %v3399
          %v3533 = vadd.f32 %v3221, %v3401
          %v3534 = vadd.f32 %v3222, %v3403
          %v3535 = vadd.f32 %v3223, %v3405
          %v3536 = vadd.f32 %v3224, %v3407
          %v3537 = vadd.f32 %v3225, %v3409
          %v3538 = vadd.f32 %v3226, %v3411
          %v3539 = vadd.f32 %v3227, %v3413
          %v3540 = vadd.f32 %v3228, %v3415
          %v3541 = vadd.f32 %v3229, %v3417
          %v3542 = vadd.f32 %v3230, %v3419
          %v3543 = vadd.f32 %v3231, %v3421
          %v3544 = vadd.f32 %v3232, %v3423
          %v3545 = vadd.f32 %v3233, %v3425
          %v3546 = vadd.f32 %v3234, %v3427
          %v3547 = vadd.f32 %v3235, %v3429
          %v3548 = vadd.f32 %v3236, %v3431
          %v3549 = vadd.f32 %v3237, %v3433
          %v3550 = vadd.f32 %v3238, %v3435
          %v3551 = vadd.f32 %v3239, %v3437
          %v3552 = vadd.f32 %v3240, %v3439
          %v3553 = vadd.f32 %v3241, %v3441
          %v3554 = vadd.f32 %v3242, %v3443
          %v3555 = vadd.f32 %v3243, %v3445
          %v3556 = vadd.f32 %v3244, %v3447
          %v3557 = vadd.f32 %v3245, %v3449
          %v3558 = vadd.f32 %v3246, %v3451
          %v3559 = vadd.f32 %v3247, %v3453
          %v3560 = vadd.f32 %v3248, %v3455
          %v3561 = vadd.f32 %v3249, %v3457
          %v3562 = vld [vmem:[#allocation2 + $0x1b] sm:$0xff]
          %v3563 = vld [vmem:[#allocation2 + $0x23] sm:$0xff]
          %v3564 = vld [vmem:[#allocation2 + $0x2b] sm:$0xff]
          %v3565 = vld [vmem:[#allocation2 + $0x33] sm:$0xff]
          %v3566 = vld [vmem:[#allocation2 + $0x3b] sm:$0xff]
          %v3567 = vld [vmem:[#allocation2 + $0x43] sm:$0xff]
          %v3568 = vld [vmem:[#allocation2 + $0x4b] sm:$0xff]
          %v3569 = vld [vmem:[#allocation2 + $0x53] sm:$0xff]
          %v3570 = vld [vmem:[#allocation2 + $0x5b] sm:$0xff]
          %v3571 = vld [vmem:[#allocation2 + $0x63] sm:$0xff]
          %v3572 = vld [vmem:[#allocation2 + $0x6b] sm:$0xff]
          %v3573 = vld [vmem:[#allocation2 + $0x73] sm:$0xff]
          %v3574 = vld [vmem:[#allocation2 + $0x7b] sm:$0xff]
          %v3575 = vld [vmem:[#allocation2 + $0x83] sm:$0xff]
          %v3576 = vld [vmem:[#allocation2 + $0x8b] sm:$0xff]
          %v3577 = vld [vmem:[#allocation2 + $0x93] sm:$0xff]
          %v3578 = vld [vmem:[#allocation2 + $0x9b] sm:$0xff]
          %v3579 = vld [vmem:[#allocation2 + $0xa3] sm:$0xff]
          %v3580 = vld [vmem:[#allocation2 + $0xab] sm:$0xff]
          %v3581 = vld [vmem:[#allocation2 + $0xb3] sm:$0xff]
          %v3582 = vld [vmem:[#allocation2 + $0xbb] sm:$0xff]
          %v3583 = vld [vmem:[#allocation2 + $0xc3] sm:$0xff]
          %v3584 = vld [vmem:[#allocation2 + $0xcb] sm:$0xff]
          %v3585 = vld [vmem:[#allocation2 + $0xd3] sm:$0xff]
          %v3586 = vld [vmem:[#allocation2 + $0xdb] sm:$0xff]
          %v3587 = vld [vmem:[#allocation2 + $0xe3] sm:$0xff]
          %v3588 = vld [vmem:[#allocation2 + $0xeb] sm:$0xff]
          %v3589 = vld [vmem:[#allocation2 + $0xf3] sm:$0xff]
          %v3590 = vld [vmem:[#allocation2 + $0xfb] sm:$0xff]
          %v3591 = vld [vmem:[#allocation2 + $0x103] sm:$0xff]
          %v3592 = vld [vmem:[#allocation2 + $0x10b] sm:$0xff]
          %v3593 = vld [vmem:[#allocation2 + $0x113] sm:$0xff]
          %v3594 = vld [vmem:[#allocation2 + $0x11b] sm:$0xff]
          %v3595 = vld [vmem:[#allocation2 + $0x123] sm:$0xff]
          %v3596 = vld [vmem:[#allocation2 + $0x12b] sm:$0xff]
          %v3597 = vld [vmem:[#allocation2 + $0x133] sm:$0xff]
          %v3598 = vld [vmem:[#allocation2 + $0x13b] sm:$0xff]
          %v3599 = vld [vmem:[#allocation2 + $0x143] sm:$0xff]
          %v3600 = vld [vmem:[#allocation2 + $0x14b] sm:$0xff]
          %v3601 = vld [vmem:[#allocation2 + $0x153] sm:$0xff]
          %v3602 = vld [vmem:[#allocation2 + $0x15b] sm:$0xff]
          %v3603 = vld [vmem:[#allocation2 + $0x163] sm:$0xff]
          %v3604 = vld [vmem:[#allocation2 + $0x16b] sm:$0xff]
          %v3605 = vld [vmem:[#allocation2 + $0x173] sm:$0xff]
          %v3606 = vld [vmem:[#allocation2 + $0x17b] sm:$0xff]
          %v3607 = vld [vmem:[#allocation2 + $0x183] sm:$0xff]
          %v3608 = vld [vmem:[#allocation2 + $0x18b] sm:$0xff]
          %v3609 = vld [vmem:[#allocation2 + $0x193] sm:$0xff]
          %v3610 = vld [vmem:[#allocation2 + $0x19b] sm:$0xff]
          %v3611 = vld [vmem:[#allocation2 + $0x1a3] sm:$0xff]
          %v3612 = vld [vmem:[#allocation2 + $0x1ab] sm:$0xff]
          %v3613 = vld [vmem:[#allocation2 + $0x1b3] sm:$0xff]
          %3666 = vrot.lane.b32.xlu0 %v3562, 96
          %v3667 = vpop.permute.xlu0 %3666
          %3668 = vrot.lane.b32.xlu0 %v3563, 96
          %v3669 = vpop.permute.xlu0 %3668
          %3670 = vrot.lane.b32.xlu0 %v3564, 96
          %v3671 = vpop.permute.xlu0 %3670
          %3672 = vrot.lane.b32.xlu0 %v3565, 96
          %v3673 = vpop.permute.xlu0 %3672
          %3674 = vrot.lane.b32.xlu0 %v3566, 96
          %v3675 = vpop.permute.xlu0 %3674
          %3676 = vrot.lane.b32.xlu0 %v3567, 96
          %v3677 = vpop.permute.xlu0 %3676
          %3678 = vrot.lane.b32.xlu0 %v3568, 96
          %v3679 = vpop.permute.xlu0 %3678
          %3680 = vrot.lane.b32.xlu0 %v3569, 96
          %v3681 = vpop.permute.xlu0 %3680
          %3682 = vrot.lane.b32.xlu0 %v3570, 96
          %v3683 = vpop.permute.xlu0 %3682
          %3684 = vrot.lane.b32.xlu0 %v3571, 96
          %v3685 = vpop.permute.xlu0 %3684
          %3686 = vrot.lane.b32.xlu0 %v3572, 96
          %v3687 = vpop.permute.xlu0 %3686
          %3688 = vrot.lane.b32.xlu0 %v3573, 96
          %v3689 = vpop.permute.xlu0 %3688
          %3690 = vrot.lane.b32.xlu0 %v3574, 96
          %v3691 = vpop.permute.xlu0 %3690
          %3692 = vrot.lane.b32.xlu0 %v3575, 96
          %v3693 = vpop.permute.xlu0 %3692
          %3694 = vrot.lane.b32.xlu0 %v3576, 96
          %v3695 = vpop.permute.xlu0 %3694
          %3696 = vrot.lane.b32.xlu0 %v3577, 96
          %v3697 = vpop.permute.xlu0 %3696
          %3698 = vrot.lane.b32.xlu0 %v3578, 96
          %v3699 = vpop.permute.xlu0 %3698
          %3700 = vrot.lane.b32.xlu0 %v3579, 96
          %v3701 = vpop.permute.xlu0 %3700
          %3702 = vrot.lane.b32.xlu0 %v3580, 96
          %v3703 = vpop.permute.xlu0 %3702
          %3704 = vrot.lane.b32.xlu0 %v3581, 96
          %v3705 = vpop.permute.xlu0 %3704
          %3706 = vrot.lane.b32.xlu0 %v3582, 96
          %v3707 = vpop.permute.xlu0 %3706
          %3708 = vrot.lane.b32.xlu0 %v3583, 96
          %v3709 = vpop.permute.xlu0 %3708
          %3710 = vrot.lane.b32.xlu0 %v3584, 96
          %v3711 = vpop.permute.xlu0 %3710
          %3712 = vrot.lane.b32.xlu0 %v3585, 96
          %v3713 = vpop.permute.xlu0 %3712
          %3714 = vrot.lane.b32.xlu0 %v3586, 96
          %v3715 = vpop.permute.xlu0 %3714
          %3716 = vrot.lane.b32.xlu0 %v3587, 96
          %v3717 = vpop.permute.xlu0 %3716
          %3718 = vrot.lane.b32.xlu0 %v3588, 96
          %v3719 = vpop.permute.xlu0 %3718
          %3720 = vrot.lane.b32.xlu0 %v3589, 96
          %v3721 = vpop.permute.xlu0 %3720
          %3722 = vrot.lane.b32.xlu0 %v3590, 96
          %v3723 = vpop.permute.xlu0 %3722
          %3724 = vrot.lane.b32.xlu0 %v3591, 96
          %v3725 = vpop.permute.xlu0 %3724
          %3726 = vrot.lane.b32.xlu0 %v3592, 96
          %v3727 = vpop.permute.xlu0 %3726
          %3728 = vrot.lane.b32.xlu0 %v3593, 96
          %v3729 = vpop.permute.xlu0 %3728
          %3730 = vrot.lane.b32.xlu0 %v3594, 96
          %v3731 = vpop.permute.xlu0 %3730
          %3732 = vrot.lane.b32.xlu0 %v3595, 96
          %v3733 = vpop.permute.xlu0 %3732
          %3734 = vrot.lane.b32.xlu0 %v3596, 96
          %v3735 = vpop.permute.xlu0 %3734
          %3736 = vrot.lane.b32.xlu0 %v3597, 96
          %v3737 = vpop.permute.xlu0 %3736
          %3738 = vrot.lane.b32.xlu0 %v3598, 96
          %v3739 = vpop.permute.xlu0 %3738
          %3740 = vrot.lane.b32.xlu0 %v3599, 96
          %v3741 = vpop.permute.xlu0 %3740
          %3742 = vrot.lane.b32.xlu0 %v3600, 96
          %v3743 = vpop.permute.xlu0 %3742
          %3744 = vrot.lane.b32.xlu0 %v3601, 96
          %v3745 = vpop.permute.xlu0 %3744
          %3746 = vrot.lane.b32.xlu0 %v3602, 96
          %v3747 = vpop.permute.xlu0 %3746
          %3748 = vrot.lane.b32.xlu0 %v3603, 96
          %v3749 = vpop.permute.xlu0 %3748
          %3750 = vrot.lane.b32.xlu0 %v3604, 96
          %v3751 = vpop.permute.xlu0 %3750
          %3752 = vrot.lane.b32.xlu0 %v3605, 96
          %v3753 = vpop.permute.xlu0 %3752
          %3754 = vrot.lane.b32.xlu0 %v3606, 96
          %v3755 = vpop.permute.xlu0 %3754
          %3756 = vrot.lane.b32.xlu0 %v3607, 96
          %v3757 = vpop.permute.xlu0 %3756
          %3758 = vrot.lane.b32.xlu0 %v3608, 96
          %v3759 = vpop.permute.xlu0 %3758
          %3760 = vrot.lane.b32.xlu0 %v3609, 96
          %v3761 = vpop.permute.xlu0 %3760
          %3762 = vrot.lane.b32.xlu0 %v3610, 96
          %v3763 = vpop.permute.xlu0 %3762
          %3764 = vrot.lane.b32.xlu0 %v3611, 96
          %v3765 = vpop.permute.xlu0 %3764
          %3766 = vrot.lane.b32.xlu0 %v3612, 96
          %v3767 = vpop.permute.xlu0 %3766
          %3768 = vrot.lane.b32.xlu0 %v3613, 96
          %v3769 = vpop.permute.xlu0 %3768
          %v3822 = vadd.f32 %v3510, %v3667
          %v3823 = vadd.f32 %v3511, %v3669
          %v3824 = vadd.f32 %v3512, %v3671
          %v3825 = vadd.f32 %v3513, %v3673
          %v3826 = vadd.f32 %v3514, %v3675
          %v3827 = vadd.f32 %v3515, %v3677
          %v3828 = vadd.f32 %v3516, %v3679
          %v3829 = vadd.f32 %v3517, %v3681
          %v3830 = vadd.f32 %v3518, %v3683
          %v3831 = vadd.f32 %v3519, %v3685
          %v3832 = vadd.f32 %v3520, %v3687
          %v3833 = vadd.f32 %v3521, %v3689
          %v3834 = vadd.f32 %v3522, %v3691
          %v3835 = vadd.f32 %v3523, %v3693
          %v3836 = vadd.f32 %v3524, %v3695
          %v3837 = vadd.f32 %v3525, %v3697
          %v3838 = vadd.f32 %v3526, %v3699
          %v3839 = vadd.f32 %v3527, %v3701
          %v3840 = vadd.f32 %v3528, %v3703
          %v3841 = vadd.f32 %v3529, %v3705
          %v3842 = vadd.f32 %v3530, %v3707
          %v3843 = vadd.f32 %v3531, %v3709
          %v3844 = vadd.f32 %v3532, %v3711
          %v3845 = vadd.f32 %v3533, %v3713
          %v3846 = vadd.f32 %v3534, %v3715
          %v3847 = vadd.f32 %v3535, %v3717
          %v3848 = vadd.f32 %v3536, %v3719
          %v3849 = vadd.f32 %v3537, %v3721
          %v3850 = vadd.f32 %v3538, %v3723
          %v3851 = vadd.f32 %v3539, %v3725
          %v3852 = vadd.f32 %v3540, %v3727
          %v3853 = vadd.f32 %v3541, %v3729
          %v3854 = vadd.f32 %v3542, %v3731
          %v3855 = vadd.f32 %v3543, %v3733
          %v3856 = vadd.f32 %v3544, %v3735
          %v3857 = vadd.f32 %v3545, %v3737
          %v3858 = vadd.f32 %v3546, %v3739
          %v3859 = vadd.f32 %v3547, %v3741
          %v3860 = vadd.f32 %v3548, %v3743
          %v3861 = vadd.f32 %v3549, %v3745
          %v3862 = vadd.f32 %v3550, %v3747
          %v3863 = vadd.f32 %v3551, %v3749
          %v3864 = vadd.f32 %v3552, %v3751
          %v3865 = vadd.f32 %v3553, %v3753
          %v3866 = vadd.f32 %v3554, %v3755
          %v3867 = vadd.f32 %v3555, %v3757
          %v3868 = vadd.f32 %v3556, %v3759
          %v3869 = vadd.f32 %v3557, %v3761
          %v3870 = vadd.f32 %v3558, %v3763
          %v3871 = vadd.f32 %v3559, %v3765
          %v3872 = vadd.f32 %v3560, %v3767
          %v3873 = vadd.f32 %v3561, %v3769
          %v3874 = vld [vmem:[%s2] sm:$0x1]
          %v3876 = vlaneseq
          %v3877 = vshrl.u32 %v3876, 7
          %v3878 = vsub.s32 0, %v3877
          %v3879 = vrot.slane %v3874, %v3878
          %v3881 = vadd.f32 %v3822, %v3879
          %v3882 = vadd.f32 %v3823, %v3879
          %v3883 = vadd.f32 %v3824, %v3879
          %v3884 = vadd.f32 %v3825, %v3879
          %v3885 = vadd.f32 %v3826, %v3879
          %v3886 = vadd.f32 %v3827, %v3879
          %v3887 = vadd.f32 %v3828, %v3879
          %v3888 = vadd.f32 %v3829, %v3879
          %v3889 = vadd.f32 %v3830, %v3879
          %v3890 = vadd.f32 %v3831, %v3879
          %v3891 = vadd.f32 %v3832, %v3879
          %v3892 = vadd.f32 %v3833, %v3879
          %v3893 = vadd.f32 %v3834, %v3879
          %v3894 = vadd.f32 %v3835, %v3879
          %v3895 = vadd.f32 %v3836, %v3879
          %v3896 = vadd.f32 %v3837, %v3879
          %v3897 = vadd.f32 %v3838, %v3879
          %v3898 = vadd.f32 %v3839, %v3879
          %v3899 = vadd.f32 %v3840, %v3879
          %v3900 = vadd.f32 %v3841, %v3879
          %v3901 = vadd.f32 %v3842, %v3879
          %v3902 = vadd.f32 %v3843, %v3879
          %v3903 = vadd.f32 %v3844, %v3879
          %v3904 = vadd.f32 %v3845, %v3879
          %v3905 = vadd.f32 %v3846, %v3879
          %v3906 = vadd.f32 %v3847, %v3879
          %v3907 = vadd.f32 %v3848, %v3879
          %v3908 = vadd.f32 %v3849, %v3879
          %v3909 = vadd.f32 %v3850, %v3879
          %v3910 = vadd.f32 %v3851, %v3879
          %v3911 = vadd.f32 %v3852, %v3879
          %v3912 = vadd.f32 %v3853, %v3879
          %v3913 = vadd.f32 %v3854, %v3879
          %v3914 = vadd.f32 %v3855, %v3879
          %v3915 = vadd.f32 %v3856, %v3879
          %v3916 = vadd.f32 %v3857, %v3879
          %v3917 = vadd.f32 %v3858, %v3879
          %v3918 = vadd.f32 %v3859, %v3879
          %v3919 = vadd.f32 %v3860, %v3879
          %v3920 = vadd.f32 %v3861, %v3879
          %v3921 = vadd.f32 %v3862, %v3879
          %v3922 = vadd.f32 %v3863, %v3879
          %v3923 = vadd.f32 %v3864, %v3879
          %v3924 = vadd.f32 %v3865, %v3879
          %v3925 = vadd.f32 %v3866, %v3879
          %v3926 = vadd.f32 %v3867, %v3879
          %v3927 = vadd.f32 %v3868, %v3879
          %v3928 = vadd.f32 %v3869, %v3879
          %v3929 = vadd.f32 %v3870, %v3879
          %v3930 = vadd.f32 %v3871, %v3879
          %v3931 = vadd.f32 %v3872, %v3879
          %v3932 = vadd.f32 %v3873, %v3879
          %v3933 = vmax.f32 %v3881, 0.0
          %v3934 = vmax.f32 %v3882, 0.0
          %v3935 = vmax.f32 %v3883, 0.0
          %v3936 = vmax.f32 %v3884, 0.0
          %v3937 = vmax.f32 %v3885, 0.0
          %v3938 = vmax.f32 %v3886, 0.0
          %v3939 = vmax.f32 %v3887, 0.0
          %v3940 = vmax.f32 %v3888, 0.0
          %v3941 = vmax.f32 %v3889, 0.0
          %v3942 = vmax.f32 %v3890, 0.0
          %v3943 = vmax.f32 %v3891, 0.0
          %v3944 = vmax.f32 %v3892, 0.0
          %v3945 = vmax.f32 %v3893, 0.0
          %v3946 = vmax.f32 %v3894, 0.0
          %v3947 = vmax.f32 %v3895, 0.0
          %v3948 = vmax.f32 %v3896, 0.0
          %v3949 = vmax.f32 %v3897, 0.0
          %v3950 = vmax.f32 %v3898, 0.0
          %v3951 = vmax.f32 %v3899, 0.0
          %v3952 = vmax.f32 %v3900, 0.0
          %v3953 = vmax.f32 %v3901, 0.0
          %v3954 = vmax.f32 %v3902, 0.0
          %v3955 = vmax.f32 %v3903, 0.0
          %v3956 = vmax.f32 %v3904, 0.0
          %v3957 = vmax.f32 %v3905, 0.0
          %v3958 = vmax.f32 %v3906, 0.0
          %v3959 = vmax.f32 %v3907, 0.0
          %v3960 = vmax.f32 %v3908, 0.0
          %v3961 = vmax.f32 %v3909, 0.0
          %v3962 = vmax.f32 %v3910, 0.0
          %v3963 = vmax.f32 %v3911, 0.0
          %v3964 = vmax.f32 %v3912, 0.0
          %v3965 = vmax.f32 %v3913, 0.0
          %v3966 = vmax.f32 %v3914, 0.0
          %v3967 = vmax.f32 %v3915, 0.0
          %v3968 = vmax.f32 %v3916, 0.0
          %v3969 = vmax.f32 %v3917, 0.0
          %v3970 = vmax.f32 %v3918, 0.0
          %v3971 = vmax.f32 %v3919, 0.0
          %v3972 = vmax.f32 %v3920, 0.0
          %v3973 = vmax.f32 %v3921, 0.0
          %v3974 = vmax.f32 %v3922, 0.0
          %v3975 = vmax.f32 %v3923, 0.0
          %v3976 = vmax.f32 %v3924, 0.0
          %v3977 = vmax.f32 %v3925, 0.0
          %v3978 = vmax.f32 %v3926, 0.0
          %v3979 = vmax.f32 %v3927, 0.0
          %v3980 = vmax.f32 %v3928, 0.0
          %v3981 = vmax.f32 %v3929, 0.0
          %v3982 = vmax.f32 %v3930, 0.0
          %v3983 = vmax.f32 %v3931, 0.0
          %v3984 = vmax.f32 %v3932, 0.0
          %vm3985 = vcmask 7168
          %3986 = vst.msk [vmem:[#allocation3] sm:$0xff] %vm3985, %v3933
          %3987 = vst.msk [vmem:[#allocation3 + $0x8] sm:$0xff] %vm3985, %v3934
          %3988 = vst.msk [vmem:[#allocation3 + $0x10] sm:$0xff] %vm3985, %v3935
          %3989 = vst.msk [vmem:[#allocation3 + $0x18] sm:$0xff] %vm3985, %v3936
          %3990 = vst.msk [vmem:[#allocation3 + $0x20] sm:$0xff] %vm3985, %v3937
          %3991 = vst.msk [vmem:[#allocation3 + $0x28] sm:$0xff] %vm3985, %v3938
          %3992 = vst.msk [vmem:[#allocation3 + $0x30] sm:$0xff] %vm3985, %v3939
          %3993 = vst.msk [vmem:[#allocation3 + $0x38] sm:$0xff] %vm3985, %v3940
          %3994 = vst.msk [vmem:[#allocation3 + $0x40] sm:$0xff] %vm3985, %v3941
          %3995 = vst.msk [vmem:[#allocation3 + $0x48] sm:$0xff] %vm3985, %v3942
          %3996 = vst.msk [vmem:[#allocation3 + $0x50] sm:$0xff] %vm3985, %v3943
          %3997 = vst.msk [vmem:[#allocation3 + $0x58] sm:$0xff] %vm3985, %v3944
          %3998 = vst.msk [vmem:[#allocation3 + $0x60] sm:$0xff] %vm3985, %v3945
          %4012 = vrot.lane.b32.xlu0 %v3933, 127
          %v4013 = vpop.permute.xlu0 %4012
          %4014 = vrot.lane.b32.xlu0 %v3934, 127
          %v4015 = vpop.permute.xlu0 %4014
          %4016 = vrot.lane.b32.xlu0 %v3935, 127
          %v4017 = vpop.permute.xlu0 %4016
          %4018 = vrot.lane.b32.xlu0 %v3936, 127
          %v4019 = vpop.permute.xlu0 %4018
          %4020 = vrot.lane.b32.xlu0 %v3937, 127
          %v4021 = vpop.permute.xlu0 %4020
          %4022 = vrot.lane.b32.xlu0 %v3938, 127
          %v4023 = vpop.permute.xlu0 %4022
          %4024 = vrot.lane.b32.xlu0 %v3939, 127
          %v4025 = vpop.permute.xlu0 %4024
          %4026 = vrot.lane.b32.xlu0 %v3940, 127
          %v4027 = vpop.permute.xlu0 %4026
          %4028 = vrot.lane.b32.xlu0 %v3941, 127
          %v4029 = vpop.permute.xlu0 %4028
          %4030 = vrot.lane.b32.xlu0 %v3942, 127
          %v4031 = vpop.permute.xlu0 %4030
          %4032 = vrot.lane.b32.xlu0 %v3943, 127
          %v4033 = vpop.permute.xlu0 %4032
          %4034 = vrot.lane.b32.xlu0 %v3944, 127
          %v4035 = vpop.permute.xlu0 %4034
          %4036 = vrot.lane.b32.xlu0 %v3945, 127
          %v4037 = vpop.permute.xlu0 %4036
          %4051 = vst.msk [vmem:[#allocation3 + $0x68] sm:$0xff] %vm3985, %v4013
          %4052 = vst.msk [vmem:[#allocation3 + $0x70] sm:$0xff] %vm3985, %v4015
          %4053 = vst.msk [vmem:[#allocation3 + $0x78] sm:$0xff] %vm3985, %v4017
          %4054 = vst.msk [vmem:[#allocation3 + $0x80] sm:$0xff] %vm3985, %v4019
          %4055 = vst.msk [vmem:[#allocation3 + $0x88] sm:$0xff] %vm3985, %v4021
          %4056 = vst.msk [vmem:[#allocation3 + $0x90] sm:$0xff] %vm3985, %v4023
          %4057 = vst.msk [vmem:[#allocation3 + $0x98] sm:$0xff] %vm3985, %v4025
          %4058 = vst.msk [vmem:[#allocation3 + $0xa0] sm:$0xff] %vm3985, %v4027
          %4059 = vst.msk [vmem:[#allocation3 + $0xa8] sm:$0xff] %vm3985, %v4029
          %4060 = vst.msk [vmem:[#allocation3 + $0xb0] sm:$0xff] %vm3985, %v4031
          %4061 = vst.msk [vmem:[#allocation3 + $0xb8] sm:$0xff] %vm3985, %v4033
          %4062 = vst.msk [vmem:[#allocation3 + $0xc0] sm:$0xff] %vm3985, %v4035
          %4063 = vst.msk [vmem:[#allocation3 + $0xc8] sm:$0xff] %vm3985, %v4037
          %4064 = vrot.lane.b32.xlu0 %v3933, 126
          %v4065 = vpop.permute.xlu0 %4064
          %4066 = vrot.lane.b32.xlu0 %v3934, 126
          %v4067 = vpop.permute.xlu0 %4066
          %4068 = vrot.lane.b32.xlu0 %v3935, 126
          %v4069 = vpop.permute.xlu0 %4068
          %4070 = vrot.lane.b32.xlu0 %v3936, 126
          %v4071 = vpop.permute.xlu0 %4070
          %4072 = vrot.lane.b32.xlu0 %v3937, 126
          %v4073 = vpop.permute.xlu0 %4072
          %4074 = vrot.lane.b32.xlu0 %v3938, 126
          %v4075 = vpop.permute.xlu0 %4074
          %4076 = vrot.lane.b32.xlu0 %v3939, 126
          %v4077 = vpop.permute.xlu0 %4076
          %4078 = vrot.lane.b32.xlu0 %v3940, 126
          %v4079 = vpop.permute.xlu0 %4078
          %4080 = vrot.lane.b32.xlu0 %v3941, 126
          %v4081 = vpop.permute.xlu0 %4080
          %4082 = vrot.lane.b32.xlu0 %v3942, 126
          %v4083 = vpop.permute.xlu0 %4082
          %4084 = vrot.lane.b32.xlu0 %v3943, 126
          %v4085 = vpop.permute.xlu0 %4084
          %4086 = vrot.lane.b32.xlu0 %v3944, 126
          %v4087 = vpop.permute.xlu0 %4086
          %4088 = vrot.lane.b32.xlu0 %v3945, 126
          %v4089 = vpop.permute.xlu0 %4088
          %4103 = vst.msk [vmem:[#allocation3 + $0xd0] sm:$0xff] %vm3985, %v4065
          %4104 = vst.msk [vmem:[#allocation3 + $0xd8] sm:$0xff] %vm3985, %v4067
          %4105 = vst.msk [vmem:[#allocation3 + $0xe0] sm:$0xff] %vm3985, %v4069
          %4106 = vst.msk [vmem:[#allocation3 + $0xe8] sm:$0xff] %vm3985, %v4071
          %4107 = vst.msk [vmem:[#allocation3 + $0xf0] sm:$0xff] %vm3985, %v4073
          %4108 = vst.msk [vmem:[#allocation3 + $0xf8] sm:$0xff] %vm3985, %v4075
          %4109 = vst.msk [vmem:[#allocation3 + $0x100] sm:$0xff] %vm3985, %v4077
          %4110 = vst.msk [vmem:[#allocation3 + $0x108] sm:$0xff] %vm3985, %v4079
          %4111 = vst.msk [vmem:[#allocation3 + $0x110] sm:$0xff] %vm3985, %v4081
          %4112 = vst.msk [vmem:[#allocation3 + $0x118] sm:$0xff] %vm3985, %v4083
          %4113 = vst.msk [vmem:[#allocation3 + $0x120] sm:$0xff] %vm3985, %v4085
          %4114 = vst.msk [vmem:[#allocation3 + $0x128] sm:$0xff] %vm3985, %v4087
          %4115 = vst.msk [vmem:[#allocation3 + $0x130] sm:$0xff] %vm3985, %v4089
          %4116 = vrot.lane.b32.xlu0 %v3933, 125
          %v4117 = vpop.permute.xlu0 %4116
          %4118 = vrot.lane.b32.xlu0 %v3934, 125
          %v4119 = vpop.permute.xlu0 %4118
          %4120 = vrot.lane.b32.xlu0 %v3935, 125
          %v4121 = vpop.permute.xlu0 %4120
          %4122 = vrot.lane.b32.xlu0 %v3936, 125
          %v4123 = vpop.permute.xlu0 %4122
          %4124 = vrot.lane.b32.xlu0 %v3937, 125
          %v4125 = vpop.permute.xlu0 %4124
          %4126 = vrot.lane.b32.xlu0 %v3938, 125
          %v4127 = vpop.permute.xlu0 %4126
          %4128 = vrot.lane.b32.xlu0 %v3939, 125
          %v4129 = vpop.permute.xlu0 %4128
          %4130 = vrot.lane.b32.xlu0 %v3940, 125
          %v4131 = vpop.permute.xlu0 %4130
          %4132 = vrot.lane.b32.xlu0 %v3941, 125
          %v4133 = vpop.permute.xlu0 %4132
          %4134 = vrot.lane.b32.xlu0 %v3942, 125
          %v4135 = vpop.permute.xlu0 %4134
          %4136 = vrot.lane.b32.xlu0 %v3943, 125
          %v4137 = vpop.permute.xlu0 %4136
          %4138 = vrot.lane.b32.xlu0 %v3944, 125
          %v4139 = vpop.permute.xlu0 %4138
          %4140 = vrot.lane.b32.xlu0 %v3945, 125
          %v4141 = vpop.permute.xlu0 %4140
          %4155 = vst.msk [vmem:[#allocation3 + $0x138] sm:$0xff] %vm3985, %v4117
          %4156 = vst.msk [vmem:[#allocation3 + $0x140] sm:$0xff] %vm3985, %v4119
          %4157 = vst.msk [vmem:[#allocation3 + $0x148] sm:$0xff] %vm3985, %v4121
          %4158 = vst.msk [vmem:[#allocation3 + $0x150] sm:$0xff] %vm3985, %v4123
          %4159 = vst.msk [vmem:[#allocation3 + $0x158] sm:$0xff] %vm3985, %v4125
          %4160 = vst.msk [vmem:[#allocation3 + $0x160] sm:$0xff] %vm3985, %v4127
          %4161 = vst.msk [vmem:[#allocation3 + $0x168] sm:$0xff] %vm3985, %v4129
          %4162 = vst.msk [vmem:[#allocation3 + $0x170] sm:$0xff] %vm3985, %v4131
          %4163 = vst.msk [vmem:[#allocation3 + $0x178] sm:$0xff] %vm3985, %v4133
          %4164 = vst.msk [vmem:[#allocation3 + $0x180] sm:$0xff] %vm3985, %v4135
          %4165 = vst.msk [vmem:[#allocation3 + $0x188] sm:$0xff] %vm3985, %v4137
          %4166 = vst.msk [vmem:[#allocation3 + $0x190] sm:$0xff] %vm3985, %v4139
          %4167 = vst.msk [vmem:[#allocation3 + $0x198] sm:$0xff] %vm3985, %v4141
          %4181 = vrot.lane.b32.xlu0 %v3946, 1
          %v4182 = vpop.permute.xlu0 %4181
          %4183 = vrot.lane.b32.xlu0 %v3947, 1
          %v4184 = vpop.permute.xlu0 %4183
          %4185 = vrot.lane.b32.xlu0 %v3948, 1
          %v4186 = vpop.permute.xlu0 %4185
          %4187 = vrot.lane.b32.xlu0 %v3949, 1
          %v4188 = vpop.permute.xlu0 %4187
          %4189 = vrot.lane.b32.xlu0 %v3950, 1
          %v4190 = vpop.permute.xlu0 %4189
          %4191 = vrot.lane.b32.xlu0 %v3951, 1
          %v4192 = vpop.permute.xlu0 %4191
          %4193 = vrot.lane.b32.xlu0 %v3952, 1
          %v4194 = vpop.permute.xlu0 %4193
          %4195 = vrot.lane.b32.xlu0 %v3953, 1
          %v4196 = vpop.permute.xlu0 %4195
          %4197 = vrot.lane.b32.xlu0 %v3954, 1
          %v4198 = vpop.permute.xlu0 %4197
          %4199 = vrot.lane.b32.xlu0 %v3955, 1
          %v4200 = vpop.permute.xlu0 %4199
          %4201 = vrot.lane.b32.xlu0 %v3956, 1
          %v4202 = vpop.permute.xlu0 %4201
          %4203 = vrot.lane.b32.xlu0 %v3957, 1
          %v4204 = vpop.permute.xlu0 %4203
          %4205 = vrot.lane.b32.xlu0 %v3958, 1
          %v4206 = vpop.permute.xlu0 %4205
          %vm4220 = vcmask 15368
          %4221 = vst.msk [vmem:[#allocation3] sm:$0xff] %vm4220, %v4182
          %4222 = vst.msk [vmem:[#allocation3 + $0x8] sm:$0xff] %vm4220, %v4184
          %4223 = vst.msk [vmem:[#allocation3 + $0x10] sm:$0xff] %vm4220, %v4186
          %4224 = vst.msk [vmem:[#allocation3 + $0x18] sm:$0xff] %vm4220, %v4188
          %4225 = vst.msk [vmem:[#allocation3 + $0x20] sm:$0xff] %vm4220, %v4190
          %4226 = vst.msk [vmem:[#allocation3 + $0x28] sm:$0xff] %vm4220, %v4192
          %4227 = vst.msk [vmem:[#allocation3 + $0x30] sm:$0xff] %vm4220, %v4194
          %4228 = vst.msk [vmem:[#allocation3 + $0x38] sm:$0xff] %vm4220, %v4196
          %4229 = vst.msk [vmem:[#allocation3 + $0x40] sm:$0xff] %vm4220, %v4198
          %4230 = vst.msk [vmem:[#allocation3 + $0x48] sm:$0xff] %vm4220, %v4200
          %4231 = vst.msk [vmem:[#allocation3 + $0x50] sm:$0xff] %vm4220, %v4202
          %4232 = vst.msk [vmem:[#allocation3 + $0x58] sm:$0xff] %vm4220, %v4204
          %4233 = vst.msk [vmem:[#allocation3 + $0x60] sm:$0xff] %vm4220, %v4206
          %4234 = vst.msk [vmem:[#allocation3 + $0x68] sm:$0xff] %vm4220, %v3946
          %4235 = vst.msk [vmem:[#allocation3 + $0x70] sm:$0xff] %vm4220, %v3947
          %4236 = vst.msk [vmem:[#allocation3 + $0x78] sm:$0xff] %vm4220, %v3948
          %4237 = vst.msk [vmem:[#allocation3 + $0x80] sm:$0xff] %vm4220, %v3949
          %4238 = vst.msk [vmem:[#allocation3 + $0x88] sm:$0xff] %vm4220, %v3950
          %4239 = vst.msk [vmem:[#allocation3 + $0x90] sm:$0xff] %vm4220, %v3951
          %4240 = vst.msk [vmem:[#allocation3 + $0x98] sm:$0xff] %vm4220, %v3952
          %4241 = vst.msk [vmem:[#allocation3 + $0xa0] sm:$0xff] %vm4220, %v3953
          %4242 = vst.msk [vmem:[#allocation3 + $0xa8] sm:$0xff] %vm4220, %v3954
          %4243 = vst.msk [vmem:[#allocation3 + $0xb0] sm:$0xff] %vm4220, %v3955
          %4244 = vst.msk [vmem:[#allocation3 + $0xb8] sm:$0xff] %vm4220, %v3956
          %4245 = vst.msk [vmem:[#allocation3 + $0xc0] sm:$0xff] %vm4220, %v3957
          %4246 = vst.msk [vmem:[#allocation3 + $0xc8] sm:$0xff] %vm4220, %v3958
          %4247 = vrot.lane.b32.xlu0 %v3946, 127
          %v4248 = vpop.permute.xlu0 %4247
          %4249 = vrot.lane.b32.xlu0 %v3947, 127
          %v4250 = vpop.permute.xlu0 %4249
          %4251 = vrot.lane.b32.xlu0 %v3948, 127
          %v4252 = vpop.permute.xlu0 %4251
          %4253 = vrot.lane.b32.xlu0 %v3949, 127
          %v4254 = vpop.permute.xlu0 %4253
          %4255 = vrot.lane.b32.xlu0 %v3950, 127
          %v4256 = vpop.permute.xlu0 %4255
          %4257 = vrot.lane.b32.xlu0 %v3951, 127
          %v4258 = vpop.permute.xlu0 %4257
          %4259 = vrot.lane.b32.xlu0 %v3952, 127
          %v4260 = vpop.permute.xlu0 %4259
          %4261 = vrot.lane.b32.xlu0 %v3953, 127
          %v4262 = vpop.permute.xlu0 %4261
          %4263 = vrot.lane.b32.xlu0 %v3954, 127
          %v4264 = vpop.permute.xlu0 %4263
          %4265 = vrot.lane.b32.xlu0 %v3955, 127
          %v4266 = vpop.permute.xlu0 %4265
          %4267 = vrot.lane.b32.xlu0 %v3956, 127
          %v4268 = vpop.permute.xlu0 %4267
          %4269 = vrot.lane.b32.xlu0 %v3957, 127
          %v4270 = vpop.permute.xlu0 %4269
          %4271 = vrot.lane.b32.xlu0 %v3958, 127
          %v4272 = vpop.permute.xlu0 %4271
          %4286 = vst.msk [vmem:[#allocation3 + $0xd0] sm:$0xff] %vm4220, %v4248
          %4287 = vst.msk [vmem:[#allocation3 + $0xd8] sm:$0xff] %vm4220, %v4250
          %4288 = vst.msk [vmem:[#allocation3 + $0xe0] sm:$0xff] %vm4220, %v4252
          %4289 = vst.msk [vmem:[#allocation3 + $0xe8] sm:$0xff] %vm4220, %v4254
          %4290 = vst.msk [vmem:[#allocation3 + $0xf0] sm:$0xff] %vm4220, %v4256
          %4291 = vst.msk [vmem:[#allocation3 + $0xf8] sm:$0xff] %vm4220, %v4258
          %4292 = vst.msk [vmem:[#allocation3 + $0x100] sm:$0xff] %vm4220, %v4260
          %4293 = vst.msk [vmem:[#allocation3 + $0x108] sm:$0xff] %vm4220, %v4262
          %4294 = vst.msk [vmem:[#allocation3 + $0x110] sm:$0xff] %vm4220, %v4264
          %4295 = vst.msk [vmem:[#allocation3 + $0x118] sm:$0xff] %vm4220, %v4266
          %4296 = vst.msk [vmem:[#allocation3 + $0x120] sm:$0xff] %vm4220, %v4268
          %4297 = vst.msk [vmem:[#allocation3 + $0x128] sm:$0xff] %vm4220, %v4270
          %4298 = vst.msk [vmem:[#allocation3 + $0x130] sm:$0xff] %vm4220, %v4272
          %4299 = vrot.lane.b32.xlu0 %v3946, 126
          %v4300 = vpop.permute.xlu0 %4299
          %4301 = vrot.lane.b32.xlu0 %v3947, 126
          %v4302 = vpop.permute.xlu0 %4301
          %4303 = vrot.lane.b32.xlu0 %v3948, 126
          %v4304 = vpop.permute.xlu0 %4303
          %4305 = vrot.lane.b32.xlu0 %v3949, 126
          %v4306 = vpop.permute.xlu0 %4305
          %4307 = vrot.lane.b32.xlu0 %v3950, 126
          %v4308 = vpop.permute.xlu0 %4307
          %4309 = vrot.lane.b32.xlu0 %v3951, 126
          %v4310 = vpop.permute.xlu0 %4309
          %4311 = vrot.lane.b32.xlu0 %v3952, 126
          %v4312 = vpop.permute.xlu0 %4311
          %4313 = vrot.lane.b32.xlu0 %v3953, 126
          %v4314 = vpop.permute.xlu0 %4313
          %4315 = vrot.lane.b32.xlu0 %v3954, 126
          %v4316 = vpop.permute.xlu0 %4315
          %4317 = vrot.lane.b32.xlu0 %v3955, 126
          %v4318 = vpop.permute.xlu0 %4317
          %4319 = vrot.lane.b32.xlu0 %v3956, 126
          %v4320 = vpop.permute.xlu0 %4319
          %4321 = vrot.lane.b32.xlu0 %v3957, 126
          %v4322 = vpop.permute.xlu0 %4321
          %4323 = vrot.lane.b32.xlu0 %v3958, 126
          %v4324 = vpop.permute.xlu0 %4323
          %4338 = vst.msk [vmem:[#allocation3 + $0x138] sm:$0xff] %vm4220, %v4300
          %4339 = vst.msk [vmem:[#allocation3 + $0x140] sm:$0xff] %vm4220, %v4302
          %4340 = vst.msk [vmem:[#allocation3 + $0x148] sm:$0xff] %vm4220, %v4304
          %4341 = vst.msk [vmem:[#allocation3 + $0x150] sm:$0xff] %vm4220, %v4306
          %4342 = vst.msk [vmem:[#allocation3 + $0x158] sm:$0xff] %vm4220, %v4308
          %4343 = vst.msk [vmem:[#allocation3 + $0x160] sm:$0xff] %vm4220, %v4310
          %4344 = vst.msk [vmem:[#allocation3 + $0x168] sm:$0xff] %vm4220, %v4312
          %4345 = vst.msk [vmem:[#allocation3 + $0x170] sm:$0xff] %vm4220, %v4314
          %4346 = vst.msk [vmem:[#allocation3 + $0x178] sm:$0xff] %vm4220, %v4316
          %4347 = vst.msk [vmem:[#allocation3 + $0x180] sm:$0xff] %vm4220, %v4318
          %4348 = vst.msk [vmem:[#allocation3 + $0x188] sm:$0xff] %vm4220, %v4320
          %4349 = vst.msk [vmem:[#allocation3 + $0x190] sm:$0xff] %vm4220, %v4322
          %4350 = vst.msk [vmem:[#allocation3 + $0x198] sm:$0xff] %vm4220, %v4324
          %4364 = vrot.lane.b32.xlu0 %v3959, 2
          %v4365 = vpop.permute.xlu0 %4364
          %4366 = vrot.lane.b32.xlu0 %v3960, 2
          %v4367 = vpop.permute.xlu0 %4366
          %4368 = vrot.lane.b32.xlu0 %v3961, 2
          %v4369 = vpop.permute.xlu0 %4368
          %4370 = vrot.lane.b32.xlu0 %v3962, 2
          %v4371 = vpop.permute.xlu0 %4370
          %4372 = vrot.lane.b32.xlu0 %v3963, 2
          %v4373 = vpop.permute.xlu0 %4372
          %4374 = vrot.lane.b32.xlu0 %v3964, 2
          %v4375 = vpop.permute.xlu0 %4374
          %4376 = vrot.lane.b32.xlu0 %v3965, 2
          %v4377 = vpop.permute.xlu0 %4376
          %4378 = vrot.lane.b32.xlu0 %v3966, 2
          %v4379 = vpop.permute.xlu0 %4378
          %4380 = vrot.lane.b32.xlu0 %v3967, 2
          %v4381 = vpop.permute.xlu0 %4380
          %4382 = vrot.lane.b32.xlu0 %v3968, 2
          %v4383 = vpop.permute.xlu0 %4382
          %4384 = vrot.lane.b32.xlu0 %v3969, 2
          %v4385 = vpop.permute.xlu0 %4384
          %4386 = vrot.lane.b32.xlu0 %v3970, 2
          %v4387 = vpop.permute.xlu0 %4386
          %4388 = vrot.lane.b32.xlu0 %v3971, 2
          %v4389 = vpop.permute.xlu0 %4388
          %vm4403 = vcmask 23568
          %4404 = vst.msk [vmem:[#allocation3] sm:$0xff] %vm4403, %v4365
          %4405 = vst.msk [vmem:[#allocation3 + $0x8] sm:$0xff] %vm4403, %v4367
          %4406 = vst.msk [vmem:[#allocation3 + $0x10] sm:$0xff] %vm4403, %v4369
          %4407 = vst.msk [vmem:[#allocation3 + $0x18] sm:$0xff] %vm4403, %v4371
          %4408 = vst.msk [vmem:[#allocation3 + $0x20] sm:$0xff] %vm4403, %v4373
          %4409 = vst.msk [vmem:[#allocation3 + $0x28] sm:$0xff] %vm4403, %v4375
          %4410 = vst.msk [vmem:[#allocation3 + $0x30] sm:$0xff] %vm4403, %v4377
          %4411 = vst.msk [vmem:[#allocation3 + $0x38] sm:$0xff] %vm4403, %v4379
          %4412 = vst.msk [vmem:[#allocation3 + $0x40] sm:$0xff] %vm4403, %v4381
          %4413 = vst.msk [vmem:[#allocation3 + $0x48] sm:$0xff] %vm4403, %v4383
          %4414 = vst.msk [vmem:[#allocation3 + $0x50] sm:$0xff] %vm4403, %v4385
          %4415 = vst.msk [vmem:[#allocation3 + $0x58] sm:$0xff] %vm4403, %v4387
          %4416 = vst.msk [vmem:[#allocation3 + $0x60] sm:$0xff] %vm4403, %v4389
          %4417 = vrot.lane.b32.xlu0 %v3959, 1
          %v4418 = vpop.permute.xlu0 %4417
          %4419 = vrot.lane.b32.xlu0 %v3960, 1
          %v4420 = vpop.permute.xlu0 %4419
          %4421 = vrot.lane.b32.xlu0 %v3961, 1
          %v4422 = vpop.permute.xlu0 %4421
          %4423 = vrot.lane.b32.xlu0 %v3962, 1
          %v4424 = vpop.permute.xlu0 %4423
          %4425 = vrot.lane.b32.xlu0 %v3963, 1
          %v4426 = vpop.permute.xlu0 %4425
          %4427 = vrot.lane.b32.xlu0 %v3964, 1
          %v4428 = vpop.permute.xlu0 %4427
          %4429 = vrot.lane.b32.xlu0 %v3965, 1
          %v4430 = vpop.permute.xlu0 %4429
          %4431 = vrot.lane.b32.xlu0 %v3966, 1
          %v4432 = vpop.permute.xlu0 %4431
          %4433 = vrot.lane.b32.xlu0 %v3967, 1
          %v4434 = vpop.permute.xlu0 %4433
          %4435 = vrot.lane.b32.xlu0 %v3968, 1
          %v4436 = vpop.permute.xlu0 %4435
          %4437 = vrot.lane.b32.xlu0 %v3969, 1
          %v4438 = vpop.permute.xlu0 %4437
          %4439 = vrot.lane.b32.xlu0 %v3970, 1
          %v4440 = vpop.permute.xlu0 %4439
          %4441 = vrot.lane.b32.xlu0 %v3971, 1
          %v4442 = vpop.permute.xlu0 %4441
          %4456 = vst.msk [vmem:[#allocation3 + $0x68] sm:$0xff] %vm4403, %v4418
          %4457 = vst.msk [vmem:[#allocation3 + $0x70] sm:$0xff] %vm4403, %v4420
          %4458 = vst.msk [vmem:[#allocation3 + $0x78] sm:$0xff] %vm4403, %v4422
          %4459 = vst.msk [vmem:[#allocation3 + $0x80] sm:$0xff] %vm4403, %v4424
          %4460 = vst.msk [vmem:[#allocation3 + $0x88] sm:$0xff] %vm4403, %v4426
          %4461 = vst.msk [vmem:[#allocation3 + $0x90] sm:$0xff] %vm4403, %v4428
          %4462 = vst.msk [vmem:[#allocation3 + $0x98] sm:$0xff] %vm4403, %v4430
          %4463 = vst.msk [vmem:[#allocation3 + $0xa0] sm:$0xff] %vm4403, %v4432
          %4464 = vst.msk [vmem:[#allocation3 + $0xa8] sm:$0xff] %vm4403, %v4434
          %4465 = vst.msk [vmem:[#allocation3 + $0xb0] sm:$0xff] %vm4403, %v4436
          %4466 = vst.msk [vmem:[#allocation3 + $0xb8] sm:$0xff] %vm4403, %v4438
          %4467 = vst.msk [vmem:[#allocation3 + $0xc0] sm:$0xff] %vm4403, %v4440
          %4468 = vst.msk [vmem:[#allocation3 + $0xc8] sm:$0xff] %vm4403, %v4442
          %4469 = vst.msk [vmem:[#allocation3 + $0xd0] sm:$0xff] %vm4403, %v3959
          %4470 = vst.msk [vmem:[#allocation3 + $0xd8] sm:$0xff] %vm4403, %v3960
          %4471 = vst.msk [vmem:[#allocation3 + $0xe0] sm:$0xff] %vm4403, %v3961
          %4472 = vst.msk [vmem:[#allocation3 + $0xe8] sm:$0xff] %vm4403, %v3962
          %4473 = vst.msk [vmem:[#allocation3 + $0xf0] sm:$0xff] %vm4403, %v3963
          %4474 = vst.msk [vmem:[#allocation3 + $0xf8] sm:$0xff] %vm4403, %v3964
          %4475 = vst.msk [vmem:[#allocation3 + $0x100] sm:$0xff] %vm4403, %v3965
          %4476 = vst.msk [vmem:[#allocation3 + $0x108] sm:$0xff] %vm4403, %v3966
          %4477 = vst.msk [vmem:[#allocation3 + $0x110] sm:$0xff] %vm4403, %v3967
          %4478 = vst.msk [vmem:[#allocation3 + $0x118] sm:$0xff] %vm4403, %v3968
          %4479 = vst.msk [vmem:[#allocation3 + $0x120] sm:$0xff] %vm4403, %v3969
          %4480 = vst.msk [vmem:[#allocation3 + $0x128] sm:$0xff] %vm4403, %v3970
          %4481 = vst.msk [vmem:[#allocation3 + $0x130] sm:$0xff] %vm4403, %v3971
          %4482 = vrot.lane.b32.xlu0 %v3959, 127
          %v4483 = vpop.permute.xlu0 %4482
          %4484 = vrot.lane.b32.xlu0 %v3960, 127
          %v4485 = vpop.permute.xlu0 %4484
          %4486 = vrot.lane.b32.xlu0 %v3961, 127
          %v4487 = vpop.permute.xlu0 %4486
          %4488 = vrot.lane.b32.xlu0 %v3962, 127
          %v4489 = vpop.permute.xlu0 %4488
          %4490 = vrot.lane.b32.xlu0 %v3963, 127
          %v4491 = vpop.permute.xlu0 %4490
          %4492 = vrot.lane.b32.xlu0 %v3964, 127
          %v4493 = vpop.permute.xlu0 %4492
          %4494 = vrot.lane.b32.xlu0 %v3965, 127
          %v4495 = vpop.permute.xlu0 %4494
          %4496 = vrot.lane.b32.xlu0 %v3966, 127
          %v4497 = vpop.permute.xlu0 %4496
          %4498 = vrot.lane.b32.xlu0 %v3967, 127
          %v4499 = vpop.permute.xlu0 %4498
          %4500 = vrot.lane.b32.xlu0 %v3968, 127
          %v4501 = vpop.permute.xlu0 %4500
          %4502 = vrot.lane.b32.xlu0 %v3969, 127
          %v4503 = vpop.permute.xlu0 %4502
          %4504 = vrot.lane.b32.xlu0 %v3970, 127
          %v4505 = vpop.permute.xlu0 %4504
          %4506 = vrot.lane.b32.xlu0 %v3971, 127
          %v4507 = vpop.permute.xlu0 %4506
          %4521 = vst.msk [vmem:[#allocation3 + $0x138] sm:$0xff] %vm4403, %v4483
          %4522 = vst.msk [vmem:[#allocation3 + $0x140] sm:$0xff] %vm4403, %v4485
          %4523 = vst.msk [vmem:[#allocation3 + $0x148] sm:$0xff] %vm4403, %v4487
          %4524 = vst.msk [vmem:[#allocation3 + $0x150] sm:$0xff] %vm4403, %v4489
          %4525 = vst.msk [vmem:[#allocation3 + $0x158] sm:$0xff] %vm4403, %v4491
          %4526 = vst.msk [vmem:[#allocation3 + $0x160] sm:$0xff] %vm4403, %v4493
          %4527 = vst.msk [vmem:[#allocation3 + $0x168] sm:$0xff] %vm4403, %v4495
          %4528 = vst.msk [vmem:[#allocation3 + $0x170] sm:$0xff] %vm4403, %v4497
          %4529 = vst.msk [vmem:[#allocation3 + $0x178] sm:$0xff] %vm4403, %v4499
          %4530 = vst.msk [vmem:[#allocation3 + $0x180] sm:$0xff] %vm4403, %v4501
          %4531 = vst.msk [vmem:[#allocation3 + $0x188] sm:$0xff] %vm4403, %v4503
          %4532 = vst.msk [vmem:[#allocation3 + $0x190] sm:$0xff] %vm4403, %v4505
          %4533 = vst.msk [vmem:[#allocation3 + $0x198] sm:$0xff] %vm4403, %v4507
          %4547 = vrot.lane.b32.xlu0 %v3972, 3
          %v4548 = vpop.permute.xlu0 %4547
          %4549 = vrot.lane.b32.xlu0 %v3973, 3
          %v4550 = vpop.permute.xlu0 %4549
          %4551 = vrot.lane.b32.xlu0 %v3974, 3
          %v4552 = vpop.permute.xlu0 %4551
          %4553 = vrot.lane.b32.xlu0 %v3975, 3
          %v4554 = vpop.permute.xlu0 %4553
          %4555 = vrot.lane.b32.xlu0 %v3976, 3
          %v4556 = vpop.permute.xlu0 %4555
          %4557 = vrot.lane.b32.xlu0 %v3977, 3
          %v4558 = vpop.permute.xlu0 %4557
          %4559 = vrot.lane.b32.xlu0 %v3978, 3
          %v4560 = vpop.permute.xlu0 %4559
          %4561 = vrot.lane.b32.xlu0 %v3979, 3
          %v4562 = vpop.permute.xlu0 %4561
          %4563 = vrot.lane.b32.xlu0 %v3980, 3
          %v4564 = vpop.permute.xlu0 %4563
          %4565 = vrot.lane.b32.xlu0 %v3981, 3
          %v4566 = vpop.permute.xlu0 %4565
          %4567 = vrot.lane.b32.xlu0 %v3982, 3
          %v4568 = vpop.permute.xlu0 %4567
          %4569 = vrot.lane.b32.xlu0 %v3983, 3
          %v4570 = vpop.permute.xlu0 %4569
          %4571 = vrot.lane.b32.xlu0 %v3984, 3
          %v4572 = vpop.permute.xlu0 %4571
          %vm4586 = vcmask 31768
          %4587 = vst.msk [vmem:[#allocation3] sm:$0xff] %vm4586, %v4548
          %4588 = vst.msk [vmem:[#allocation3 + $0x8] sm:$0xff] %vm4586, %v4550
          %4589 = vst.msk [vmem:[#allocation3 + $0x10] sm:$0xff] %vm4586, %v4552
          %4590 = vst.msk [vmem:[#allocation3 + $0x18] sm:$0xff] %vm4586, %v4554
          %4591 = vst.msk [vmem:[#allocation3 + $0x20] sm:$0xff] %vm4586, %v4556
          %4592 = vst.msk [vmem:[#allocation3 + $0x28] sm:$0xff] %vm4586, %v4558
          %4593 = vst.msk [vmem:[#allocation3 + $0x30] sm:$0xff] %vm4586, %v4560
          %4594 = vst.msk [vmem:[#allocation3 + $0x38] sm:$0xff] %vm4586, %v4562
          %4595 = vst.msk [vmem:[#allocation3 + $0x40] sm:$0xff] %vm4586, %v4564
          %4596 = vst.msk [vmem:[#allocation3 + $0x48] sm:$0xff] %vm4586, %v4566
          %4597 = vst.msk [vmem:[#allocation3 + $0x50] sm:$0xff] %vm4586, %v4568
          %4598 = vst.msk [vmem:[#allocation3 + $0x58] sm:$0xff] %vm4586, %v4570
          %4599 = vst.msk [vmem:[#allocation3 + $0x60] sm:$0xff] %vm4586, %v4572
          %4600 = vrot.lane.b32.xlu0 %v3972, 2
          %v4601 = vpop.permute.xlu0 %4600
          %4602 = vrot.lane.b32.xlu0 %v3973, 2
          %v4603 = vpop.permute.xlu0 %4602
          %4604 = vrot.lane.b32.xlu0 %v3974, 2
          %v4605 = vpop.permute.xlu0 %4604
          %4606 = vrot.lane.b32.xlu0 %v3975, 2
          %v4607 = vpop.permute.xlu0 %4606
          %4608 = vrot.lane.b32.xlu0 %v3976, 2
          %v4609 = vpop.permute.xlu0 %4608
          %4610 = vrot.lane.b32.xlu0 %v3977, 2
          %v4611 = vpop.permute.xlu0 %4610
          %4612 = vrot.lane.b32.xlu0 %v3978, 2
          %v4613 = vpop.permute.xlu0 %4612
          %4614 = vrot.lane.b32.xlu0 %v3979, 2
          %v4615 = vpop.permute.xlu0 %4614
          %4616 = vrot.lane.b32.xlu0 %v3980, 2
          %v4617 = vpop.permute.xlu0 %4616
          %4618 = vrot.lane.b32.xlu0 %v3981, 2
          %v4619 = vpop.permute.xlu0 %4618
          %4620 = vrot.lane.b32.xlu0 %v3982, 2
          %v4621 = vpop.permute.xlu0 %4620
          %4622 = vrot.lane.b32.xlu0 %v3983, 2
          %v4623 = vpop.permute.xlu0 %4622
          %4624 = vrot.lane.b32.xlu0 %v3984, 2
          %v4625 = vpop.permute.xlu0 %4624
          %4639 = vst.msk [vmem:[#allocation3 + $0x68] sm:$0xff] %vm4586, %v4601
          %4640 = vst.msk [vmem:[#allocation3 + $0x70] sm:$0xff] %vm4586, %v4603
          %4641 = vst.msk [vmem:[#allocation3 + $0x78] sm:$0xff] %vm4586, %v4605
          %4642 = vst.msk [vmem:[#allocation3 + $0x80] sm:$0xff] %vm4586, %v4607
          %4643 = vst.msk [vmem:[#allocation3 + $0x88] sm:$0xff] %vm4586, %v4609
          %4644 = vst.msk [vmem:[#allocation3 + $0x90] sm:$0xff] %vm4586, %v4611
          %4645 = vst.msk [vmem:[#allocation3 + $0x98] sm:$0xff] %vm4586, %v4613
          %4646 = vst.msk [vmem:[#allocation3 + $0xa0] sm:$0xff] %vm4586, %v4615
          %4647 = vst.msk [vmem:[#allocation3 + $0xa8] sm:$0xff] %vm4586, %v4617
          %4648 = vst.msk [vmem:[#allocation3 + $0xb0] sm:$0xff] %vm4586, %v4619
          %4649 = vst.msk [vmem:[#allocation3 + $0xb8] sm:$0xff] %vm4586, %v4621
          %4650 = vst.msk [vmem:[#allocation3 + $0xc0] sm:$0xff] %vm4586, %v4623
          %4651 = vst.msk [vmem:[#allocation3 + $0xc8] sm:$0xff] %vm4586, %v4625
          %4652 = vrot.lane.b32.xlu0 %v3972, 1
          %v4653 = vpop.permute.xlu0 %4652
          %4654 = vrot.lane.b32.xlu0 %v3973, 1
          %v4655 = vpop.permute.xlu0 %4654
          %4656 = vrot.lane.b32.xlu0 %v3974, 1
          %v4657 = vpop.permute.xlu0 %4656
          %4658 = vrot.lane.b32.xlu0 %v3975, 1
          %v4659 = vpop.permute.xlu0 %4658
          %4660 = vrot.lane.b32.xlu0 %v3976, 1
          %v4661 = vpop.permute.xlu0 %4660
          %4662 = vrot.lane.b32.xlu0 %v3977, 1
          %v4663 = vpop.permute.xlu0 %4662
          %4664 = vrot.lane.b32.xlu0 %v3978, 1
          %v4665 = vpop.permute.xlu0 %4664
          %4666 = vrot.lane.b32.xlu0 %v3979, 1
          %v4667 = vpop.permute.xlu0 %4666
          %4668 = vrot.lane.b32.xlu0 %v3980, 1
          %v4669 = vpop.permute.xlu0 %4668
          %4670 = vrot.lane.b32.xlu0 %v3981, 1
          %v4671 = vpop.permute.xlu0 %4670
          %4672 = vrot.lane.b32.xlu0 %v3982, 1
          %v4673 = vpop.permute.xlu0 %4672
          %4674 = vrot.lane.b32.xlu0 %v3983, 1
          %v4675 = vpop.permute.xlu0 %4674
          %4676 = vrot.lane.b32.xlu0 %v3984, 1
          %v4677 = vpop.permute.xlu0 %4676
          %4691 = vst.msk [vmem:[#allocation3 + $0xd0] sm:$0xff] %vm4586, %v4653
          %4692 = vst.msk [vmem:[#allocation3 + $0xd8] sm:$0xff] %vm4586, %v4655
          %4693 = vst.msk [vmem:[#allocation3 + $0xe0] sm:$0xff] %vm4586, %v4657
          %4694 = vst.msk [vmem:[#allocation3 + $0xe8] sm:$0xff] %vm4586, %v4659
          %4695 = vst.msk [vmem:[#allocation3 + $0xf0] sm:$0xff] %vm4586, %v4661
          %4696 = vst.msk [vmem:[#allocation3 + $0xf8] sm:$0xff] %vm4586, %v4663
          %4697 = vst.msk [vmem:[#allocation3 + $0x100] sm:$0xff] %vm4586, %v4665
          %4698 = vst.msk [vmem:[#allocation3 + $0x108] sm:$0xff] %vm4586, %v4667
          %4699 = vst.msk [vmem:[#allocation3 + $0x110] sm:$0xff] %vm4586, %v4669
          %4700 = vst.msk [vmem:[#allocation3 + $0x118] sm:$0xff] %vm4586, %v4671
          %4701 = vst.msk [vmem:[#allocation3 + $0x120] sm:$0xff] %vm4586, %v4673
          %4702 = vst.msk [vmem:[#allocation3 + $0x128] sm:$0xff] %vm4586, %v4675
          %4703 = vst.msk [vmem:[#allocation3 + $0x130] sm:$0xff] %vm4586, %v4677
          %4704 = vst.msk [vmem:[#allocation3 + $0x138] sm:$0xff] %vm4586, %v3972
          %4705 = vst.msk [vmem:[#allocation3 + $0x140] sm:$0xff] %vm4586, %v3973
          %4706 = vst.msk [vmem:[#allocation3 + $0x148] sm:$0xff] %vm4586, %v3974
          %4707 = vst.msk [vmem:[#allocation3 + $0x150] sm:$0xff] %vm4586, %v3975
          %4708 = vst.msk [vmem:[#allocation3 + $0x158] sm:$0xff] %vm4586, %v3976
          %4709 = vst.msk [vmem:[#allocation3 + $0x160] sm:$0xff] %vm4586, %v3977
          %4710 = vst.msk [vmem:[#allocation3 + $0x168] sm:$0xff] %vm4586, %v3978
          %4711 = vst.msk [vmem:[#allocation3 + $0x170] sm:$0xff] %vm4586, %v3979
          %4712 = vst.msk [vmem:[#allocation3 + $0x178] sm:$0xff] %vm4586, %v3980
          %4713 = vst.msk [vmem:[#allocation3 + $0x180] sm:$0xff] %vm4586, %v3981
          %4714 = vst.msk [vmem:[#allocation3 + $0x188] sm:$0xff] %vm4586, %v3982
          %4715 = vst.msk [vmem:[#allocation3 + $0x190] sm:$0xff] %vm4586, %v3983
          %4716 = vst.msk [vmem:[#allocation3 + $0x198] sm:$0xff] %vm4586, %v3984
          %v4717 = vld [vmem:[#allocation3] sm:$0xff]
          %v4718 = vld [vmem:[#allocation3 + $0x8] sm:$0xff]
          %v4719 = vld [vmem:[#allocation3 + $0x10] sm:$0xff]
          %v4720 = vld [vmem:[#allocation3 + $0x18] sm:$0xff]
          %v4721 = vld [vmem:[#allocation3 + $0x20] sm:$0xff]
          %v4722 = vld [vmem:[#allocation3 + $0x28] sm:$0xff]
          %v4723 = vld [vmem:[#allocation3 + $0x30] sm:$0xff]
          %v4724 = vld [vmem:[#allocation3 + $0x38] sm:$0xff]
          %v4725 = vld [vmem:[#allocation3 + $0x40] sm:$0xff]
          %v4726 = vld [vmem:[#allocation3 + $0x48] sm:$0xff]
          %v4727 = vld [vmem:[#allocation3 + $0x50] sm:$0xff]
          %v4728 = vld [vmem:[#allocation3 + $0x58] sm:$0xff]
          %v4729 = vld [vmem:[#allocation3 + $0x60] sm:$0xff]
          %v4730 = vld [vmem:[#allocation3 + $0x68] sm:$0xff]
          %v4731 = vld [vmem:[#allocation3 + $0x70] sm:$0xff]
          %v4732 = vld [vmem:[#allocation3 + $0x78] sm:$0xff]
          %v4733 = vld [vmem:[#allocation3 + $0x80] sm:$0xff]
          %v4734 = vld [vmem:[#allocation3 + $0x88] sm:$0xff]
          %v4735 = vld [vmem:[#allocation3 + $0x90] sm:$0xff]
          %v4736 = vld [vmem:[#allocation3 + $0x98] sm:$0xff]
          %v4737 = vld [vmem:[#allocation3 + $0xa0] sm:$0xff]
          %v4738 = vld [vmem:[#allocation3 + $0xa8] sm:$0xff]
          %v4739 = vld [vmem:[#allocation3 + $0xb0] sm:$0xff]
          %v4740 = vld [vmem:[#allocation3 + $0xb8] sm:$0xff]
          %v4741 = vld [vmem:[#allocation3 + $0xc0] sm:$0xff]
          %v4742 = vld [vmem:[#allocation3 + $0xc8] sm:$0xff]
          %v4743 = vld [vmem:[#allocation3 + $0xd0] sm:$0xff]
          %v4744 = vld [vmem:[#allocation3 + $0xd8] sm:$0xff]
          %v4745 = vld [vmem:[#allocation3 + $0xe0] sm:$0xff]
          %v4746 = vld [vmem:[#allocation3 + $0xe8] sm:$0xff]
          %v4747 = vld [vmem:[#allocation3 + $0xf0] sm:$0xff]
          %v4748 = vld [vmem:[#allocation3 + $0xf8] sm:$0xff]
          %v4749 = vld [vmem:[#allocation3 + $0x100] sm:$0xff]
          %v4750 = vld [vmem:[#allocation3 + $0x108] sm:$0xff]
          %v4751 = vld [vmem:[#allocation3 + $0x110] sm:$0xff]
          %v4752 = vld [vmem:[#allocation3 + $0x118] sm:$0xff]
          %v4753 = vld [vmem:[#allocation3 + $0x120] sm:$0xff]
          %v4754 = vld [vmem:[#allocation3 + $0x128] sm:$0xff]
          %v4755 = vld [vmem:[#allocation3 + $0x130] sm:$0xff]
          %v4756 = vld [vmem:[#allocation3 + $0x138] sm:$0xff]
          %v4757 = vld [vmem:[#allocation3 + $0x140] sm:$0xff]
          %v4758 = vld [vmem:[#allocation3 + $0x148] sm:$0xff]
          %v4759 = vld [vmem:[#allocation3 + $0x150] sm:$0xff]
          %v4760 = vld [vmem:[#allocation3 + $0x158] sm:$0xff]
          %v4761 = vld [vmem:[#allocation3 + $0x160] sm:$0xff]
          %v4762 = vld [vmem:[#allocation3 + $0x168] sm:$0xff]
          %v4763 = vld [vmem:[#allocation3 + $0x170] sm:$0xff]
          %v4764 = vld [vmem:[#allocation3 + $0x178] sm:$0xff]
          %v4765 = vld [vmem:[#allocation3 + $0x180] sm:$0xff]
          %v4766 = vld [vmem:[#allocation3 + $0x188] sm:$0xff]
          %v4767 = vld [vmem:[#allocation3 + $0x190] sm:$0xff]
          %v4768 = vld [vmem:[#allocation3 + $0x198] sm:$0xff]
          %4769 = vxpose.xlu0.b32.start [1/16] %v4717, 128
          %4770 = vxpose.xlu0.b32.cont [2/16] %v4718, 128
          %4771 = vxpose.xlu0.b32.cont [3/16] %v4719, 128
          %4772 = vxpose.xlu0.b32.cont [4/16] %v4720, 128
          %4773 = vxpose.xlu0.b32.cont [5/16] %v4721, 128
          %4774 = vxpose.xlu0.b32.cont [6/16] %v4722, 128
          %4775 = vxpose.xlu0.b32.cont [7/16] %v4723, 128
          %4776 = vxpose.xlu0.b32.cont [8/16] %v4724, 128
          %4777 = vxpose.xlu0.b32.cont [9/16] %v4725, 128
          %4778 = vxpose.xlu0.b32.cont [10/16] %v4726, 128
          %4779 = vxpose.xlu0.b32.cont [11/16] %v4727, 128
          %4780 = vxpose.xlu0.b32.cont [12/16] %v4728, 128
          %4781 = vxpose.xlu0.b32.cont [13/16] %v4729, 128
          %4782 = vxpose.xlu0.b32.cont [14/16] %v4730, 128
          %4783 = vxpose.xlu0.b32.cont [15/16] %v4731, 128
          %4784 = vxpose.xlu0.b32.end [16/16] %v4732, 128
          %v4785 = vpop.trf.xlu0
          %v4786 = vpop.trf.xlu0
          %v4787 = vpop.trf.xlu0
          %v4788 = vpop.trf.xlu0
          %v4789 = vpop.trf.xlu0
          %v4790 = vpop.trf.xlu0
          %v4791 = vpop.trf.xlu0
          %v4792 = vpop.trf.xlu0
          %v4793 = vpop.trf.xlu0
          %v4794 = vpop.trf.xlu0
          %v4795 = vpop.trf.xlu0
          %v4796 = vpop.trf.xlu0
          %v4797 = vpop.trf.xlu0
          %v4798 = vpop.trf.xlu0
          %v4799 = vpop.trf.xlu0
          %v4800 = vpop.trf.xlu0
          %4801 = vxpose.xlu0.b32.start [1/16] %v4733, 128
          %4802 = vxpose.xlu0.b32.cont [2/16] %v4734, 128
          %4803 = vxpose.xlu0.b32.cont [3/16] %v4735, 128
          %4804 = vxpose.xlu0.b32.cont [4/16] %v4736, 128
          %4805 = vxpose.xlu0.b32.cont [5/16] %v4737, 128
          %4806 = vxpose.xlu0.b32.cont [6/16] %v4738, 128
          %4807 = vxpose.xlu0.b32.cont [7/16] %v4739, 128
          %4808 = vxpose.xlu0.b32.cont [8/16] %v4740, 128
          %4809 = vxpose.xlu0.b32.cont [9/16] %v4741, 128
          %4810 = vxpose.xlu0.b32.cont [10/16] %v4742, 128
          %4811 = vxpose.xlu0.b32.cont [11/16] %v4743, 128
          %4812 = vxpose.xlu0.b32.cont [12/16] %v4744, 128
          %4813 = vxpose.xlu0.b32.cont [13/16] %v4745, 128
          %4814 = vxpose.xlu0.b32.cont [14/16] %v4746, 128
          %4815 = vxpose.xlu0.b32.cont [15/16] %v4747, 128
          %4816 = vxpose.xlu0.b32.end [16/16] %v4748, 128
          %v4817 = vpop.trf.xlu0
          %v4818 = vpop.trf.xlu0
          %v4819 = vpop.trf.xlu0
          %v4820 = vpop.trf.xlu0
          %v4821 = vpop.trf.xlu0
          %v4822 = vpop.trf.xlu0
          %v4823 = vpop.trf.xlu0
          %v4824 = vpop.trf.xlu0
          %v4825 = vpop.trf.xlu0
          %v4826 = vpop.trf.xlu0
          %v4827 = vpop.trf.xlu0
          %v4828 = vpop.trf.xlu0
          %v4829 = vpop.trf.xlu0
          %v4830 = vpop.trf.xlu0
          %v4831 = vpop.trf.xlu0
          %v4832 = vpop.trf.xlu0
          %4833 = vxpose.xlu0.b32.start [1/16] %v4749, 128
          %4834 = vxpose.xlu0.b32.cont [2/16] %v4750, 128
          %4835 = vxpose.xlu0.b32.cont [3/16] %v4751, 128
          %4836 = vxpose.xlu0.b32.cont [4/16] %v4752, 128
          %4837 = vxpose.xlu0.b32.cont [5/16] %v4753, 128
          %4838 = vxpose.xlu0.b32.cont [6/16] %v4754, 128
          %4839 = vxpose.xlu0.b32.cont [7/16] %v4755, 128
          %4840 = vxpose.xlu0.b32.cont [8/16] %v4756, 128
          %4841 = vxpose.xlu0.b32.cont [9/16] %v4757, 128
          %4842 = vxpose.xlu0.b32.cont [10/16] %v4758, 128
          %4843 = vxpose.xlu0.b32.cont [11/16] %v4759, 128
          %4844 = vxpose.xlu0.b32.cont [12/16] %v4760, 128
          %4845 = vxpose.xlu0.b32.cont [13/16] %v4761, 128
          %4846 = vxpose.xlu0.b32.cont [14/16] %v4762, 128
          %4847 = vxpose.xlu0.b32.cont [15/16] %v4763, 128
          %4848 = vxpose.xlu0.b32.end [16/16] %v4764, 128
          %v4849 = vpop.trf.xlu0
          %v4850 = vpop.trf.xlu0
          %v4851 = vpop.trf.xlu0
          %v4852 = vpop.trf.xlu0
          %v4853 = vpop.trf.xlu0
          %v4854 = vpop.trf.xlu0
          %v4855 = vpop.trf.xlu0
          %v4856 = vpop.trf.xlu0
          %v4857 = vpop.trf.xlu0
          %v4858 = vpop.trf.xlu0
          %v4859 = vpop.trf.xlu0
          %v4860 = vpop.trf.xlu0
          %v4861 = vpop.trf.xlu0
          %v4862 = vpop.trf.xlu0
          %v4863 = vpop.trf.xlu0
          %v4864 = vpop.trf.xlu0
          %4865 = vxpose.xlu0.b32.start [1/16] %v4765, 128
          %4866 = vxpose.xlu0.b32.cont [2/16] %v4766, 128
          %4867 = vxpose.xlu0.b32.cont [3/16] %v4767, 128
          %4868 = vxpose.xlu0.b32.cont [4/16] %v4768, 128
          %4869 = vxpose.xlu0.b32.cont [5/16] 0.0, 128
          %4870 = vxpose.xlu0.b32.cont [6/16] 0.0, 128
          %4871 = vxpose.xlu0.b32.cont [7/16] 0.0, 128
          %4872 = vxpose.xlu0.b32.cont [8/16] 0.0, 128
          %4873 = vxpose.xlu0.b32.cont [9/16] 0.0, 128
          %4874 = vxpose.xlu0.b32.cont [10/16] 0.0, 128
          %4875 = vxpose.xlu0.b32.cont [11/16] 0.0, 128
          %4876 = vxpose.xlu0.b32.cont [12/16] 0.0, 128
          %4877 = vxpose.xlu0.b32.cont [13/16] 0.0, 128
          %4878 = vxpose.xlu0.b32.cont [14/16] 0.0, 128
          %4879 = vxpose.xlu0.b32.cont [15/16] 0.0, 128
          %4880 = vxpose.xlu0.b32.end [16/16] 0.0, 128
          %v4881 = vpop.trf.xlu0
          %v4882 = vpop.trf.xlu0
          %v4883 = vpop.trf.xlu0
          %v4884 = vpop.trf.xlu0
          %v4885 = vpop.trf.xlu0
          %v4886 = vpop.trf.xlu0
          %v4887 = vpop.trf.xlu0
          %v4888 = vpop.trf.xlu0
          %v4889 = vpop.trf.xlu0
          %v4890 = vpop.trf.xlu0
          %v4891 = vpop.trf.xlu0
          %v4892 = vpop.trf.xlu0
          %v4893 = vpop.trf.xlu0
          %v4894 = vpop.trf.xlu0
          %v4895 = vpop.trf.xlu0
          %v4896 = vpop.trf.xlu0
          %v4897 = vld [vmem:[%s3] sm:$0xff]
          %v4898 = vld [vmem:[%s3 + $0x8] sm:$0xff]
          %v4899 = vld [vmem:[%s3 + $0x10] sm:$0xff]
          %v4900 = vld [vmem:[%s3 + $0x18] sm:$0xff]
          %v4901 = vld [vmem:[%s3 + $0x20] sm:$0xff]
          %v4902 = vld [vmem:[%s3 + $0x28] sm:$0xff]
          %v4903 = vld [vmem:[%s3 + $0x30] sm:$0xff]
          %v4904 = vld [vmem:[%s3 + $0x38] sm:$0xff]
          %v4905 = vld [vmem:[%s3 + $0x40] sm:$0xff]
          %v4906 = vld [vmem:[%s3 + $0x48] sm:$0xff]
          %v4907 = vld [vmem:[%s3 + $0x50] sm:$0xff]
          %v4908 = vld [vmem:[%s3 + $0x58] sm:$0xff]
          %v4909 = vld [vmem:[%s3 + $0x60] sm:$0xff]
          %v4910 = vld [vmem:[%s3 + $0x68] sm:$0xff]
          %v4911 = vld [vmem:[%s3 + $0x70] sm:$0xff]
          %v4912 = vld [vmem:[%s3 + $0x78] sm:$0xff]
          %v4913 = vld [vmem:[%s3 + $0x80] sm:$0xff]
          %v4914 = vld [vmem:[%s3 + $0x88] sm:$0xff]
          %v4915 = vld [vmem:[%s3 + $0x90] sm:$0xff]
          %v4916 = vld [vmem:[%s3 + $0x98] sm:$0xff]
          %v4917 = vld [vmem:[%s3 + $0xa0] sm:$0xff]
          %v4918 = vld [vmem:[%s3 + $0xa8] sm:$0xff]
          %v4919 = vld [vmem:[%s3 + $0xb0] sm:$0xff]
          %v4920 = vld [vmem:[%s3 + $0xb8] sm:$0xff]
          %v4921 = vld [vmem:[%s3 + $0xc0] sm:$0xff]
          %v4922 = vld [vmem:[%s3 + $0xc8] sm:$0xff]
          %v4923 = vld [vmem:[%s3 + $0xd0] sm:$0xff]
          %v4924 = vld [vmem:[%s3 + $0xd8] sm:$0xff]
          %v4925 = vld [vmem:[%s3 + $0xe0] sm:$0xff]
          %v4926 = vld [vmem:[%s3 + $0xe8] sm:$0xff]
          %v4927 = vld [vmem:[%s3 + $0xf0] sm:$0xff]
          %v4928 = vld [vmem:[%s3 + $0xf8] sm:$0xff]
          %v4929 = vld [vmem:[%s3 + $0x100] sm:$0xff]
          %v4930 = vld [vmem:[%s3 + $0x108] sm:$0xff]
          %v4931 = vld [vmem:[%s3 + $0x110] sm:$0xff]
          %v4932 = vld [vmem:[%s3 + $0x118] sm:$0xff]
          %v4933 = vld [vmem:[%s3 + $0x120] sm:$0xff]
          %v4934 = vld [vmem:[%s3 + $0x128] sm:$0xff]
          %v4935 = vld [vmem:[%s3 + $0x130] sm:$0xff]
          %v4936 = vld [vmem:[%s3 + $0x138] sm:$0xff]
          %v4937 = vld [vmem:[%s3 + $0x140] sm:$0xff]
          %v4938 = vld [vmem:[%s3 + $0x148] sm:$0xff]
          %v4939 = vld [vmem:[%s3 + $0x150] sm:$0xff]
          %v4940 = vld [vmem:[%s3 + $0x158] sm:$0xff]
          %v4941 = vld [vmem:[%s3 + $0x160] sm:$0xff]
          %v4942 = vld [vmem:[%s3 + $0x168] sm:$0xff]
          %v4943 = vld [vmem:[%s3 + $0x170] sm:$0xff]
          %v4944 = vld [vmem:[%s3 + $0x178] sm:$0xff]
          %v4945 = vld [vmem:[%s3 + $0x180] sm:$0xff]
          %v4946 = vld [vmem:[%s3 + $0x188] sm:$0xff]
          %v4947 = vld [vmem:[%s3 + $0x190] sm:$0xff]
          %v4948 = vld [vmem:[%s3 + $0x198] sm:$0xff]
          %v4949 = vld [vmem:[%s3 + $0x1a0] sm:$0xff]
          %v4950 = vld [vmem:[%s3 + $0x1a8] sm:$0xff]
          %v4951 = vld [vmem:[%s3 + $0x1b0] sm:$0xff]
          %v4952 = vld [vmem:[%s3 + $0x1b8] sm:$0xff]
          %v4953 = vld [vmem:[%s3 + $0x1c0] sm:$0xff]
          %v4954 = vld [vmem:[%s3 + $0x1c8] sm:$0xff]
          %v4955 = vld [vmem:[%s3 + $0x1d0] sm:$0xff]
          %v4956 = vld [vmem:[%s3 + $0x1d8] sm:$0xff]
          %v4957 = vld [vmem:[%s3 + $0x1e0] sm:$0xff]
          %v4958 = vld [vmem:[%s3 + $0x1e8] sm:$0xff]
          %v4959 = vld [vmem:[%s3 + $0x1f0] sm:$0xff]
          %v4960 = vld [vmem:[%s3 + $0x1f8] sm:$0xff]
          %v4961 = vld [vmem:[%s3 + $0x200] sm:$0xff]
          %v4962 = vld [vmem:[%s3 + $0x208] sm:$0xff]
          %v4963 = vld [vmem:[%s3 + $0x210] sm:$0xff]
          %v4964 = vld [vmem:[%s3 + $0x218] sm:$0xff]
          %v4965 = vld [vmem:[%s3 + $0x220] sm:$0xff]
          %v4966 = vld [vmem:[%s3 + $0x228] sm:$0xff]
          %v4967 = vld [vmem:[%s3 + $0x230] sm:$0xff]
          %v4968 = vld [vmem:[%s3 + $0x238] sm:$0xff]
          %v4969 = vld [vmem:[%s3 + $0x240] sm:$0xff]
          %v4970 = vld [vmem:[%s3 + $0x248] sm:$0xff]
          %v4971 = vld [vmem:[%s3 + $0x250] sm:$0xff]
          %v4972 = vld [vmem:[%s3 + $0x258] sm:$0xff]
          %v4973 = vld [vmem:[%s3 + $0x260] sm:$0xff]
          %v4974 = vld [vmem:[%s3 + $0x268] sm:$0xff]
          %v4975 = vld [vmem:[%s3 + $0x270] sm:$0xff]
          %v4976 = vld [vmem:[%s3 + $0x278] sm:$0xff]
          %v4977 = vld [vmem:[%s3 + $0x280] sm:$0xff]
          %v4978 = vld [vmem:[%s3 + $0x288] sm:$0xff]
          %v4979 = vld [vmem:[%s3 + $0x290] sm:$0xff]
          %v4980 = vld [vmem:[%s3 + $0x298] sm:$0xff]
          %v4981 = vld [vmem:[%s3 + $0x2a0] sm:$0xff]
          %v4982 = vld [vmem:[%s3 + $0x2a8] sm:$0xff]
          %v4983 = vld [vmem:[%s3 + $0x2b0] sm:$0xff]
          %v4984 = vld [vmem:[%s3 + $0x2b8] sm:$0xff]
          %v4985 = vld [vmem:[%s3 + $0x2c0] sm:$0xff]
          %v4986 = vld [vmem:[%s3 + $0x2c8] sm:$0xff]
          %v4987 = vld [vmem:[%s3 + $0x2d0] sm:$0xff]
          %v4988 = vld [vmem:[%s3 + $0x2d8] sm:$0xff]
          %v4989 = vld [vmem:[%s3 + $0x2e0] sm:$0xff]
          %v4990 = vld [vmem:[%s3 + $0x2e8] sm:$0xff]
          %v4991 = vld [vmem:[%s3 + $0x2f0] sm:$0xff]
          %v4992 = vld [vmem:[%s3 + $0x2f8] sm:$0xff]
          %v4993 = vld [vmem:[%s3 + $0x300] sm:$0xff]
          %v4994 = vld [vmem:[%s3 + $0x308] sm:$0xff]
          %v4995 = vld [vmem:[%s3 + $0x310] sm:$0xff]
          %v4996 = vld [vmem:[%s3 + $0x318] sm:$0xff]
          %v4997 = vld [vmem:[%s3 + $0x320] sm:$0xff]
          %v4998 = vld [vmem:[%s3 + $0x328] sm:$0xff]
          %v4999 = vld [vmem:[%s3 + $0x330] sm:$0xff]
          %v5000 = vld [vmem:[%s3 + $0x338] sm:$0xff]
          %v5001 = vld [vmem:[%s4] sm:$0x3]
          %v5003 = vlaneseq
          %v5004 = vshrl.u32 %v5003, 7
          %v5005 = vsub.s32 0, %v5004
          %v5006 = vrot.slane %v5001, %v5005
          %v5007 = vlaneseq
          %v5008 = vshrl.u32 %v5007, 7
          %v5009 = vsub.s32 1, %v5008
          %v5010 = vrot.slane %v5001, %v5009
          %vm5013 = vcmask 261120
          %v5015 = vsel %vm5013, %v4881, 0
          %5017 = vmatprep.subr.mxu0 %v4928
          %5018 = vmatpush1.msra.mxu0 %v4927
          %5019 = vmatprep.subr.mxu0 %v4926
          %5020 = vmatpush1.msra.mxu0 %v4925
          %5021 = vmatprep.subr.mxu0 %v4924
          %5022 = vmatpush1.msra.mxu0 %v4923
          %5023 = vmatprep.subr.mxu0 %v4922
          %5024 = vmatpush1.msra.mxu0 %v4921
          %5025 = vmatprep.subr.mxu0 %v4920
          %5026 = vmatpush1.msra.mxu0 %v4919
          %5027 = vmatprep.subr.mxu0 %v4918
          %5028 = vmatpush1.msra.mxu0 %v4917
          %5029 = vmatprep.subr.mxu0 %v4916
          %5030 = vmatpush1.msra.mxu0 %v4915
          %5031 = vmatprep.subr.mxu0 %v4914
          %5032 = vmatpush1.msra.mxu0 %v4913
          %5033 = vmatprep.subr.mxu0 %v4912
          %5034 = vmatpush1.msra.mxu0 %v4911
          %5035 = vmatprep.subr.mxu0 %v4910
          %5036 = vmatpush1.msra.mxu0 %v4909
          %5037 = vmatprep.subr.mxu0 %v4908
          %5038 = vmatpush1.msra.mxu0 %v4907
          %5039 = vmatprep.subr.mxu0 %v4906
          %5040 = vmatpush1.msra.mxu0 %v4905
          %5041 = vmatprep.subr.mxu0 %v4904
          %5042 = vmatpush1.msra.mxu0 %v4903
          %5043 = vmatprep.subr.mxu0 %v4902
          %5044 = vmatpush1.msra.mxu0 %v4901
          %5045 = vmatprep.subr.mxu0 %v4900
          %5046 = vmatpush1.msra.mxu0 %v4899
          %5047 = vmatprep.subr.mxu0 %v4898
          %5048 = vmatpush1.msra.mxu0 %v4897
          %5049 = vmatprep.subr.mxu0 %v4960
          %5050 = vmatpush2.msra.mxu0 %v4959
          %5051 = vmatprep.subr.mxu0 %v4958
          %5052 = vmatpush2.msra.mxu0 %v4957
          %5053 = vmatprep.subr.mxu0 %v4956
          %5054 = vmatpush2.msra.mxu0 %v4955
          %5055 = vmatprep.subr.mxu0 %v4954
          %5056 = vmatpush2.msra.mxu0 %v4953
          %5057 = vmatprep.subr.mxu0 %v4952
          %5058 = vmatpush2.msra.mxu0 %v4951
          %5059 = vmatprep.subr.mxu0 %v4950
          %5060 = vmatpush2.msra.mxu0 %v4949
          %5061 = vmatprep.subr.mxu0 %v4948
          %5062 = vmatpush2.msra.mxu0 %v4947
          %5063 = vmatprep.subr.mxu0 %v4946
          %5064 = vmatpush2.msra.mxu0 %v4945
          %5065 = vmatprep.subr.mxu0 %v4944
          %5066 = vmatpush2.msra.mxu0 %v4943
          %5067 = vmatprep.subr.mxu0 %v4942
          %5068 = vmatpush2.msra.mxu0 %v4941
          %5069 = vmatprep.subr.mxu0 %v4940
          %5070 = vmatpush2.msra.mxu0 %v4939
          %5071 = vmatprep.subr.mxu0 %v4938
          %5072 = vmatpush2.msra.mxu0 %v4937
          %5073 = vmatprep.subr.mxu0 %v4936
          %5074 = vmatpush2.msra.mxu0 %v4935
          %5075 = vmatprep.subr.mxu0 %v4934
          %5076 = vmatpush2.msra.mxu0 %v4933
          %5077 = vmatprep.subr.mxu0 %v4932
          %5078 = vmatpush2.msra.mxu0 %v4931
          %5079 = vmatprep.subr.mxu0 %v4930
          %5080 = vmatpush2.msra.mxu0 %v4929
          %5081 = vmatprep.mubr.f32.mxu0 %v4817
          %5082 = vmatmul.mubr.f32.gmra.mxu0 %v4785
          %v5083 = vpop.f32.mrf.mxu0
          %v5084 = vadd.f32 %v5006, %v5083
          %v5085 = vpop.f32.mrf.mxu0
          %v5086 = vadd.f32 %v5010, %v5085
          %5087 = vdwg.mxu0
          %5088 = vmatprep.subr.mxu0 %v4992
          %5089 = vmatpush1.msra.mxu0 %v4991
          %5090 = vmatprep.subr.mxu0 %v4990
          %5091 = vmatpush1.msra.mxu0 %v4989
          %5092 = vmatprep.subr.mxu0 %v4988
          %5093 = vmatpush1.msra.mxu0 %v4987
          %5094 = vmatprep.subr.mxu0 %v4986
          %5095 = vmatpush1.msra.mxu0 %v4985
          %5096 = vmatprep.subr.mxu0 %v4984
          %5097 = vmatpush1.msra.mxu0 %v4983
          %5098 = vmatprep.subr.mxu0 %v4982
          %5099 = vmatpush1.msra.mxu0 %v4981
          %5100 = vmatprep.subr.mxu0 %v4980
          %5101 = vmatpush1.msra.mxu0 %v4979
          %5102 = vmatprep.subr.mxu0 %v4978
          %5103 = vmatpush1.msra.mxu0 %v4977
          %5104 = vmatprep.subr.mxu0 %v4976
          %5105 = vmatpush1.msra.mxu0 %v4975
          %5106 = vmatprep.subr.mxu0 %v4974
          %5107 = vmatpush1.msra.mxu0 %v4973
          %5108 = vmatprep.subr.mxu0 %v4972
          %5109 = vmatpush1.msra.mxu0 %v4971
          %5110 = vmatprep.subr.mxu0 %v4970
          %5111 = vmatpush1.msra.mxu0 %v4969
          %5112 = vmatprep.subr.mxu0 %v4968
          %5113 = vmatpush1.msra.mxu0 %v4967
          %5114 = vmatprep.subr.mxu0 %v4966
          %5115 = vmatpush1.msra.mxu0 %v4965
          %5116 = vmatprep.subr.mxu0 %v4964
          %5117 = vmatpush1.msra.mxu0 %v4963
          %5118 = vmatprep.subr.mxu0 %v4962
          %5119 = vmatpush1.msra.mxu0 %v4961
          %5120 = vmatprep.subr.mxu0 0.0
          %5121 = vmatpush2.msra.mxu0 0.0
          %5122 = vmatprep.subr.mxu0 0.0
          %5123 = vmatpush2.msra.mxu0 0.0
          %5124 = vmatprep.subr.mxu0 0.0
          %5125 = vmatpush2.msra.mxu0 0.0
          %5126 = vmatprep.subr.mxu0 0.0
          %5127 = vmatpush2.msra.mxu0 0.0
          %5128 = vmatprep.subr.mxu0 0.0
          %5129 = vmatpush2.msra.mxu0 0.0
          %5130 = vmatprep.subr.mxu0 0.0
          %5131 = vmatpush2.msra.mxu0 0.0
          %5132 = vmatprep.subr.mxu0 0.0
          %5133 = vmatpush2.msra.mxu0 0.0
          %5134 = vmatprep.subr.mxu0 0.0
          %5135 = vmatpush2.msra.mxu0 0.0
          %5136 = vmatprep.subr.mxu0 0.0
          %5137 = vmatpush2.msra.mxu0 0.0
          %5138 = vmatprep.subr.mxu0 0.0
          %5139 = vmatpush2.msra.mxu0 0.0
          %5140 = vmatprep.subr.mxu0 0.0
          %5141 = vmatpush2.msra.mxu0 0.0
          %5142 = vmatprep.subr.mxu0 0.0
          %5143 = vmatpush2.msra.mxu0 0.0
          %5144 = vmatprep.subr.mxu0 %v5000
          %5145 = vmatpush2.msra.mxu0 %v4999
          %5146 = vmatprep.subr.mxu0 %v4998
          %5147 = vmatpush2.msra.mxu0 %v4997
          %5148 = vmatprep.subr.mxu0 %v4996
          %5149 = vmatpush2.msra.mxu0 %v4995
          %5150 = vmatprep.subr.mxu0 %v4994
          %5151 = vmatpush2.msra.mxu0 %v4993
          %5152 = vmatprep.mubr.f32.mxu0 %v5015
          %5153 = vmatmul.mubr.f32.gmra.mxu0 %v4849
          %v5154 = vpop.f32.mrf.mxu0
          %v5155 = vadd.f32 %v5084, %v5154
          %v5156 = vpop.f32.mrf.mxu0
          %v5157 = vadd.f32 %v5086, %v5156
          %5158 = vdwg.mxu0
          %v5161 = vcombine.low %v5155, %v5157
          %5163 = vst [vmem:[%s521] sm:$0xff] %v5161
        $region86: #{go_policy_forward.1} parent=73 // pred_fallthru
          _
        %p5164 = scmp.lt.s32.totalorder %s20, 1
        %s5165 = scalar_select %p5164, %s20, 1
        %s5166 = smul.addr %s5165, 2
        %s5167 = smul.addr %s5166, 4
        %s5168 = scalar_lea.vmem %s5, %s5167
        // Predicated region
        $region87: #{go_policy_forward.1} parent=73 // pred_check
          %p5169 = pneg %p163
        $region88: #{go_policy_forward.1} parent=73 // pred_check_branch
          %5171 = sbr.rel (%p5169) target = $region90
        $region89: #{go_policy_forward.1} parent=73 // pred_region
          _
        $region90: #{go_policy_forward.1} parent=73 // pred_fallthru
          _
      $region74: #{go_policy_forward.1} parent=5 // pred_fallthru
        _
      %p5172 = scmp.le.s32.totalorder 2, %s11
      // Predicated region
      $region91: #{go_policy_forward.1} parent=5 // pred_check
        %p5173 = pneg %p5172
      $region92: #{go_policy_forward.1} parent=5 // pred_check_branch
        %5175 = sbr.rel (%p5173) target = $region94
      $region93: #{go_policy_forward.1} parent=5 // pred_region
        %s5176 = ssub.s32 %s11, 2
        // Predicated region
        $region95: #{go_policy_forward.1} parent=93 // pred_check
          %p5177 = pneg %p169
        $region96: #{go_policy_forward.1} parent=93 // pred_check_branch
          %5179 = sbr.rel (%p5177) target = $region98
        $region97: #{go_policy_forward.1} parent=93 // pred_region
          %p5180 = scmp.lt.s32.totalorder %s22, 1
          %s5181 = scalar_select %p5180, %s22, 1
          %s5182 = smul.addr %s5181, 2
          %s5183 = smul.addr %s5182, 4
          %s5184 = scalar_lea.vmem %s5, %s5183
        $region98: #{go_policy_forward.1} parent=93 // pred_fallthru
          _
      $region94: #{go_policy_forward.1} parent=5 // pred_fallthru
        _
    $region6: #{go_policy_forward.1} parent=1 // loop_footer
      %s15 = sadd.s32 1, %s11
    $region7: #{go_policy_forward.1} parent=1 // loop_footer_branch
      %10 = sbr.rel target = $region3
    $region8: #{go_policy_forward.1} parent=1 // loop_exit
      _

</llo_original>
